<compile_context>
chip_gen: v5e
topology: v5e:2x2
jax: 0.10.0
libtpu: 0.0.40
codegen_flags: <defaults>
</compile_context>

<pallas_src>
import functools
import math

import jax
import jax.numpy as jnp
from jax.experimental import pallas as pl
from jax.experimental.pallas import tpu as pltpu


# ----------------------------------------------------------------------------
# In-kernel helpers
# ----------------------------------------------------------------------------
def _layer_norm(x, gamma, beta, eps=1e-5):
    mu = jnp.mean(x, axis=-1, keepdims=True)
    var = jnp.mean((x - mu) ** 2, axis=-1, keepdims=True)
    return (x - mu) * jax.lax.rsqrt(var + eps) * gamma + beta


# ----------------------------------------------------------------------------
# One fused kernel: PE add -> L x (MHA + AddNorm + FFN + AddNorm) -> FNclf
#                   -> case3 reduction + h_emb[:, 0, :]
# Activations are kept as a single (B*S, H) 2-D tile resident in VMEM.
# ----------------------------------------------------------------------------
def fused_model1_kernel(num_layers, num_heads, batch, seq, case3,
                        x_ref, pe_ref, mask_ref, red_ref, sel_ref,
                        wq_ref, bq_ref, wk_ref, bk_ref, wv_ref, bv_ref,
                        wo_ref, bo_ref,
                        g1_ref, be1_ref, wf1_ref, bf1_ref, wf2_ref, bf2_ref,
                        g2_ref, be2_ref,
                        w1_ref, b1_ref, w2_ref, b2_ref,
                        scores_ref, emb0_ref):
    H = x_ref.shape[-1]
    dh = H // num_heads
    scale = 1.0 / math.sqrt(dh)

    # embedding scale + positional encoding (PE pre-tiled over batch on host)
    h = x_ref[...] * math.sqrt(H) + pe_ref[...]            # (B*S, H)
    mask = mask_ref[...]                                    # (B*S, B*S), 0 / -1e9

    for l in range(num_layers):                             # static unroll
        # ---- multi-head self-attention ----
        acc = None
        for hd in range(num_heads):                         # static unroll
            i = l * num_heads + hd
            q = jnp.dot(h, wq_ref[i], preferred_element_type=jnp.float32) + bq_ref[i]
            k = jnp.dot(h, wk_ref[i], preferred_element_type=jnp.float32) + bk_ref[i]
            v = jnp.dot(h, wv_ref[i], preferred_element_type=jnp.float32) + bv_ref[i]
            # full (B*S, B*S) scores; cross-batch entries killed by the mask
            s = jnp.dot(q, k.T, preferred_element_type=jnp.float32) * scale + mask
            s = s - jnp.max(s, axis=-1, keepdims=True)
            p = jnp.exp(s)
            p = p * pl.reciprocal(jnp.sum(p, axis=-1, keepdims=True), approx=True)
            o = jnp.dot(p, v, preferred_element_type=jnp.float32)            # (B*S, dh)
            c = jnp.dot(o, wo_ref[i], preferred_element_type=jnp.float32)    # (B*S, H)
            acc = c if acc is None else acc + c
        attn = acc + bo_ref[l]

        h = _layer_norm(h + attn, g1_ref[l], be1_ref[l])

        # ---- position-wise FFN ----
        f = jnp.dot(h, wf1_ref[l], preferred_element_type=jnp.float32) + bf1_ref[l]
        f = jnp.maximum(f, 0.0)
        f = jnp.dot(f, wf2_ref[l], preferred_element_type=jnp.float32) + bf2_ref[l]

        h = _layer_norm(h + f, g2_ref[l], be2_ref[l])

    # ---- classifier head (FNclf) ----
    e = jnp.dot(h, w1_ref[...], preferred_element_type=jnp.float32) + b1_ref[...]
    e = jnp.maximum(e, 0.0)                                 # (B*S, H) == h_emb
    sc = jnp.dot(e, w2_ref[...], preferred_element_type=jnp.float32) + b2_ref[...]

    # h_emb[:, 0, :] via a (B, B*S) selector matmul -> lane-dense (B, H) output
    emb0_ref[...] = jnp.dot(sel_ref[...], e, preferred_element_type=jnp.float32)

    # case3 sequence reduction fused in-kernel -> (B, O) output
    if case3 == "max":
        rows = [jnp.max(sc[b * seq:(b + 1) * seq, :], axis=0, keepdims=True)
                for b in range(batch)]
        scores_ref[...] = jnp.concatenate(rows, axis=0)
    else:  # 'mean' / 'h0' via the precomputed reduction matrix
        scores_ref[...] = jnp.dot(red_ref[...], sc, preferred_element_type=jnp.float32)


# ----------------------------------------------------------------------------
# Host-side parameter packing & auxiliary constant inputs
# ----------------------------------------------------------------------------
def sinusoidal_pe(seq_len, dim):
    pos = jnp.arange(seq_len, dtype=jnp.float32)[:, None]
    i = jnp.arange(0, dim, 2, dtype=jnp.float32)[None, :]
    angles = pos / jnp.power(10000.0, i / dim)
    pe = jnp.zeros((seq_len, dim), jnp.float32)
    pe = pe.at[:, 0::2].set(jnp.sin(angles))
    pe = pe.at[:, 1::2].set(jnp.cos(angles))
    return pe


def init_params(key, num_hiddens, ffn_hiddens, out_dim, num_layers):
    H, Fh = num_hiddens, ffn_hiddens
    params = {"layers": []}

    def lin(key, fan_in, shape):
        return jax.random.normal(key, shape, jnp.float32) / math.sqrt(fan_in)

    for _ in range(num_layers):
        keys = jax.random.split(key, 7)
        key = keys[0]
        layer = {
            "wq": lin(keys[1], H, (H, H)),  "bq": jnp.zeros((1, H), jnp.float32),
            "wk": lin(keys[2], H, (H, H)),  "bk": jnp.zeros((1, H), jnp.float32),
            "wv": lin(keys[3], H, (H, H)),  "bv": jnp.zeros((1, H), jnp.float32),
            "wo": lin(keys[4], H, (H, H)),  "bo": jnp.zeros((1, H), jnp.float32),
            "g1": jnp.ones((1, H), jnp.float32), "be1": jnp.zeros((1, H), jnp.float32),
            "wf1": lin(keys[5], H, (H, Fh)), "bf1": jnp.zeros((1, Fh), jnp.float32),
            "wf2": lin(keys[6], Fh, (Fh, H)), "bf2": jnp.zeros((1, H), jnp.float32),
            "g2": jnp.ones((1, H), jnp.float32), "be2": jnp.zeros((1, H), jnp.float32),
        }
        params["layers"].append(layer)

    k1, k2 = jax.random.split(key)
    params["clf"] = {
        "w1": jax.random.normal(k1, (H, H), jnp.float32) / math.sqrt(H),
        "b1": jnp.zeros((1, H), jnp.float32),
        "w2": jax.random.normal(k2, (H, out_dim), jnp.float32) / math.sqrt(H),
        "b2": jnp.zeros((1, out_dim), jnp.float32),
    }
    return params


def _pack_params(params, num_heads):
    """Stack per-layer params and pre-split attention weights per head."""
    layers = params["layers"]
    H = layers[0]["wq"].shape[0]
    dh = H // num_heads

    def split_cols(w):   # (H, H) -> (nh, H, dh): columns of head h
        return w.reshape(H, num_heads, dh).transpose(1, 0, 2)

    def split_bias(b):   # (1, H) -> (nh, 1, dh)
        return b.reshape(num_heads, dh)[:, None, :]

    def split_rows(w):   # (H, H) -> (nh, dh, H): rows of head h
        return w.reshape(num_heads, dh, H)

    cat = lambda fn, name: jnp.concatenate([fn(l[name]) for l in layers], axis=0)
    stk = lambda name: jnp.stack([l[name] for l in layers], axis=0)

    return {
        "wq": cat(split_cols, "wq"), "bq": cat(split_bias, "bq"),
        "wk": cat(split_cols, "wk"), "bk": cat(split_bias, "bk"),
        "wv": cat(split_cols, "wv"), "bv": cat(split_bias, "bv"),
        "wo": cat(split_rows, "wo"), "bo": stk("bo"),
        "g1": stk("g1"), "be1": stk("be1"),
        "wf1": stk("wf1"), "bf1": stk("bf1"),
        "wf2": stk("wf2"), "bf2": stk("bf2"),
        "g2": stk("g2"), "be2": stk("be2"),
    }


def _aux_inputs(B, S, H, case3):
    pe_tiled = jnp.tile(sinusoidal_pe(S, H), (B, 1))                   # (B*S, H)
    row = jnp.arange(B * S) // S
    mask = jnp.where(row[:, None] == row[None, :], 0.0, -1e9).astype(jnp.float32)
    sel = (jnp.arange(B)[:, None] * S ==
           jnp.arange(B * S)[None, :]).astype(jnp.float32)             # picks row b*S
    if case3 == "mean":
        red = jnp.where(jnp.arange(B)[:, None] == row[None, :],
                        1.0 / S, 0.0).astype(jnp.float32)
    else:  # 'h0' (and dummy for 'max', unused in that branch)
        red = sel
    return pe_tiled, mask, red, sel


# ----------------------------------------------------------------------------
# Full forward (single fused pallas_call + tiny JAX glue for argmax)
# ----------------------------------------------------------------------------
def model1_forward(X, params, *, num_heads, case3="mean"):
    """X: (B, walk_length, num_hiddens) float32.
    Returns (scores, preds, news_pred, h_emb[:, 0, :]) like Model1.forward."""
    B, S, H = X.shape
    L = len(params["layers"])
    O = params["clf"]["w2"].shape[1]

    p = _pack_params(params, num_heads)
    pe_tiled, mask, red, sel = _aux_inputs(B, S, H, case3)
    x2d = X.reshape(B * S, H)

    clf = params["clf"]
    operands = (x2d, pe_tiled, mask, red, sel,
                p["wq"], p["bq"], p["wk"], p["bk"], p["wv"], p["bv"],
                p["wo"], p["bo"],
                p["g1"], p["be1"], p["wf1"], p["bf1"], p["wf2"], p["bf2"],
                p["g2"], p["be2"],
                clf["w1"], clf["b1"], clf["w2"], clf["b2"])

    def full_spec(arr):
        nd = arr.ndim
        return pl.BlockSpec(arr.shape, lambda i, nd=nd: (0,) * nd)

    in_specs = [full_spec(a) for a in operands]
    out_specs = [pl.BlockSpec((B, O), lambda i: (0, 0)),
                 pl.BlockSpec((B, H), lambda i: (0, 0))]

    kernel = functools.partial(fused_model1_kernel, L, num_heads, B, S, case3)
    scores, emb0 = pl.pallas_call(
        kernel,
        out_shape=(jax.ShapeDtypeStruct((B, O), jnp.float32),
                   jax.ShapeDtypeStruct((B, H), jnp.float32)),
        grid=(1,),
        in_specs=in_specs,
        out_specs=out_specs,
        compiler_params=pltpu.CompilerParams(dimension_semantics=("arbitrary",)),
    )(*operands)

    news_pred = 0
    preds = jnp.argmax(jax.nn.softmax(scores, axis=-1), axis=-1)
    return scores, preds, news_pred, emb0


if __name__ == "__main__":
    # Small config consistent with Model1's constructor.
    batch = 2
    walk_length = 8
    num_hiddens = 32     # = query_size = key_size = value_size = ffn_num_input
    ffn_num_hiddens = 64
    num_heads = 4
    num_layers = 2
    out_dim = 4

    key = jax.random.PRNGKey(0)
    k_x, k_p = jax.random.split(key)
    X = jax.random.normal(k_x, (batch, walk_length, num_hiddens), jnp.float32)
    params = init_params(k_p, num_hiddens, ffn_num_hiddens, out_dim, num_layers)

    scores, preds, news_pred, h0 = model1_forward(
        X, params, num_heads=num_heads, case3="mean")
    jax.block_until_ready((scores, preds, h0))

    assert scores.shape == (batch, out_dim)
    assert preds.shape == (batch,)
    assert h0.shape == (batch, num_hiddens)
    print("KERNEL_OK")
</pallas_src>

<mosaic_0001>
module attributes {stable_mosaic.version = 11 : i64} {
  func.func @fused_model1_kernel(%arg0: i32, %arg1: memref<16x32xf32, #tpu.memory_space<vmem>>, %arg2: memref<16x32xf32, #tpu.memory_space<vmem>>, %arg3: memref<16x16xf32, #tpu.memory_space<vmem>>, %arg4: memref<2x16xf32, #tpu.memory_space<vmem>>, %arg5: memref<2x16xf32, #tpu.memory_space<vmem>>, %arg6: memref<8x32x8xf32, #tpu.memory_space<vmem>>, %arg7: memref<8x1x8xf32, #tpu.memory_space<vmem>>, %arg8: memref<8x32x8xf32, #tpu.memory_space<vmem>>, %arg9: memref<8x1x8xf32, #tpu.memory_space<vmem>>, %arg10: memref<8x32x8xf32, #tpu.memory_space<vmem>>, %arg11: memref<8x1x8xf32, #tpu.memory_space<vmem>>, %arg12: memref<8x8x32xf32, #tpu.memory_space<vmem>>, %arg13: memref<2x1x32xf32, #tpu.memory_space<vmem>>, %arg14: memref<2x1x32xf32, #tpu.memory_space<vmem>>, %arg15: memref<2x1x32xf32, #tpu.memory_space<vmem>>, %arg16: memref<2x32x64xf32, #tpu.memory_space<vmem>>, %arg17: memref<2x1x64xf32, #tpu.memory_space<vmem>>, %arg18: memref<2x64x32xf32, #tpu.memory_space<vmem>>, %arg19: memref<2x1x32xf32, #tpu.memory_space<vmem>>, %arg20: memref<2x1x32xf32, #tpu.memory_space<vmem>>, %arg21: memref<2x1x32xf32, #tpu.memory_space<vmem>>, %arg22: memref<32x32xf32, #tpu.memory_space<vmem>>, %arg23: memref<1x32xf32, #tpu.memory_space<vmem>>, %arg24: memref<32x4xf32, #tpu.memory_space<vmem>>, %arg25: memref<1x4xf32, #tpu.memory_space<vmem>>, %arg26: memref<2x4xf32, #tpu.memory_space<vmem>>, %arg27: memref<2x32xf32, #tpu.memory_space<vmem>>) attributes {dimension_semantics = [#tpu.dimension_semantics<arbitrary>], iteration_bounds = array<i64: 1>, scalar_prefetch = 0 : i64, scratch_operands = 0 : i64, tpu.core_type = #tpu.core_type<tc>, window_params = [{pipeline_mode = #tpu.pipeline_mode<synchronous>, transform_indices = @transform_0, window_bounds = array<i64: 16, 32>}, {pipeline_mode = #tpu.pipeline_mode<synchronous>, transform_indices = @transform_1, window_bounds = array<i64: 16, 32>}, {pipeline_mode = #tpu.pipeline_mode<synchronous>, transform_indices = @transform_2, window_bounds = array<i64: 16, 16>}, {pipeline_mode = #tpu.pipeline_mode<synchronous>, transform_indices = @transform_3, window_bounds = array<i64: 2, 16>}, {pipeline_mode = #tpu.pipeline_mode<synchronous>, transform_indices = @transform_4, window_bounds = array<i64: 2, 16>}, {pipeline_mode = #tpu.pipeline_mode<synchronous>, transform_indices = @transform_5, window_bounds = array<i64: 8, 32, 8>}, {pipeline_mode = #tpu.pipeline_mode<synchronous>, transform_indices = @transform_6, window_bounds = array<i64: 8, 1, 8>}, {pipeline_mode = #tpu.pipeline_mode<synchronous>, transform_indices = @transform_7, window_bounds = array<i64: 8, 32, 8>}, {pipeline_mode = #tpu.pipeline_mode<synchronous>, transform_indices = @transform_8, window_bounds = array<i64: 8, 1, 8>}, {pipeline_mode = #tpu.pipeline_mode<synchronous>, transform_indices = @transform_9, window_bounds = array<i64: 8, 32, 8>}, {pipeline_mode = #tpu.pipeline_mode<synchronous>, transform_indices = @transform_10, window_bounds = array<i64: 8, 1, 8>}, {pipeline_mode = #tpu.pipeline_mode<synchronous>, transform_indices = @transform_11, window_bounds = array<i64: 8, 8, 32>}, {pipeline_mode = #tpu.pipeline_mode<synchronous>, transform_indices = @transform_12, window_bounds = array<i64: 2, 1, 32>}, {pipeline_mode = #tpu.pipeline_mode<synchronous>, transform_indices = @transform_13, window_bounds = array<i64: 2, 1, 32>}, {pipeline_mode = #tpu.pipeline_mode<synchronous>, transform_indices = @transform_14, window_bounds = array<i64: 2, 1, 32>}, {pipeline_mode = #tpu.pipeline_mode<synchronous>, transform_indices = @transform_15, window_bounds = array<i64: 2, 32, 64>}, {pipeline_mode = #tpu.pipeline_mode<synchronous>, transform_indices = @transform_16, window_bounds = array<i64: 2, 1, 64>}, {pipeline_mode = #tpu.pipeline_mode<synchronous>, transform_indices = @transform_17, window_bounds = array<i64: 2, 64, 32>}, {pipeline_mode = #tpu.pipeline_mode<synchronous>, transform_indices = @transform_18, window_bounds = array<i64: 2, 1, 32>}, {pipeline_mode = #tpu.pipeline_mode<synchronous>, transform_indices = @transform_19, window_bounds = array<i64: 2, 1, 32>}, {pipeline_mode = #tpu.pipeline_mode<synchronous>, transform_indices = @transform_20, window_bounds = array<i64: 2, 1, 32>}, {pipeline_mode = #tpu.pipeline_mode<synchronous>, transform_indices = @transform_21, window_bounds = array<i64: 32, 32>}, {pipeline_mode = #tpu.pipeline_mode<synchronous>, transform_indices = @transform_22, window_bounds = array<i64: 1, 32>}, {pipeline_mode = #tpu.pipeline_mode<synchronous>, transform_indices = @transform_23, window_bounds = array<i64: 32, 4>}, {pipeline_mode = #tpu.pipeline_mode<synchronous>, transform_indices = @transform_24, window_bounds = array<i64: 1, 4>}, {pipeline_mode = #tpu.pipeline_mode<synchronous>, transform_indices = @transform_25, window_bounds = array<i64: 2, 4>}, {pipeline_mode = #tpu.pipeline_mode<synchronous>, transform_indices = @transform_26, window_bounds = array<i64: 2, 32>}]} {
    %c0 = arith.constant 0 : index
    %c0_0 = arith.constant 0 : index
    %0 = vector.load %arg1[%c0, %c0_0] : memref<16x32xf32, #tpu.memory_space<vmem>>, vector<16x32xf32>
    %cst = arith.constant 5.65685415 : f32
    %1 = vector.broadcast %cst : f32 to vector<16x32xf32>
    %2 = arith.mulf %0, %1 : vector<16x32xf32>
    %c0_1 = arith.constant 0 : index
    %c0_2 = arith.constant 0 : index
    %3 = vector.load %arg2[%c0_1, %c0_2] : memref<16x32xf32, #tpu.memory_space<vmem>>, vector<16x32xf32>
    %4 = arith.addf %2, %3 : vector<16x32xf32>
    %c0_3 = arith.constant 0 : index
    %c0_4 = arith.constant 0 : index
    %5 = vector.load %arg3[%c0_3, %c0_4] : memref<16x16xf32, #tpu.memory_space<vmem>>, vector<16x16xf32>
    %c0_5 = arith.constant 0 : index
    %c0_6 = arith.constant 0 : index
    %c0_7 = arith.constant 0 : index
    %6 = vector.load %arg6[%c0_5, %c0_6, %c0_7] : memref<8x32x8xf32, #tpu.memory_space<vmem>>, vector<1x32x8xf32>
    %7 = vector.shape_cast %6 : vector<1x32x8xf32> to vector<32x8xf32>
    %cst_8 = arith.constant dense<0.000000e+00> : vector<16x8xf32>
    %8 = tpu.matmul %4, %7, %cst_8 {dimension_numbers = #tpu.dot_dimension_numbers<[1], [0], [0], [1], [0, 0, 1, 1], [], []>} : vector<16x32xf32>, vector<32x8xf32>, vector<16x8xf32> -> vector<16x8xf32>
    %c0_9 = arith.constant 0 : index
    %c0_10 = arith.constant 0 : index
    %c0_11 = arith.constant 0 : index
    %9 = vector.load %arg7[%c0_9, %c0_10, %c0_11] : memref<8x1x8xf32, #tpu.memory_space<vmem>>, vector<1x1x8xf32>
    %10 = vector.shape_cast %9 : vector<1x1x8xf32> to vector<1x8xf32>
    %11 = vector.broadcast %10 : vector<1x8xf32> to vector<16x8xf32>
    %12 = arith.addf %8, %11 : vector<16x8xf32>
    %c0_12 = arith.constant 0 : index
    %c0_13 = arith.constant 0 : index
    %c0_14 = arith.constant 0 : index
    %13 = vector.load %arg8[%c0_12, %c0_13, %c0_14] : memref<8x32x8xf32, #tpu.memory_space<vmem>>, vector<1x32x8xf32>
    %14 = vector.shape_cast %13 : vector<1x32x8xf32> to vector<32x8xf32>
    %cst_15 = arith.constant dense<0.000000e+00> : vector<16x8xf32>
    %15 = tpu.matmul %4, %14, %cst_15 {dimension_numbers = #tpu.dot_dimension_numbers<[1], [0], [0], [1], [0, 0, 1, 1], [], []>} : vector<16x32xf32>, vector<32x8xf32>, vector<16x8xf32> -> vector<16x8xf32>
    %c0_16 = arith.constant 0 : index
    %c0_17 = arith.constant 0 : index
    %c0_18 = arith.constant 0 : index
    %16 = vector.load %arg9[%c0_16, %c0_17, %c0_18] : memref<8x1x8xf32, #tpu.memory_space<vmem>>, vector<1x1x8xf32>
    %17 = vector.shape_cast %16 : vector<1x1x8xf32> to vector<1x8xf32>
    %18 = vector.broadcast %17 : vector<1x8xf32> to vector<16x8xf32>
    %19 = arith.addf %15, %18 : vector<16x8xf32>
    %c0_19 = arith.constant 0 : index
    %c0_20 = arith.constant 0 : index
    %c0_21 = arith.constant 0 : index
    %20 = vector.load %arg10[%c0_19, %c0_20, %c0_21] : memref<8x32x8xf32, #tpu.memory_space<vmem>>, vector<1x32x8xf32>
    %21 = vector.shape_cast %20 : vector<1x32x8xf32> to vector<32x8xf32>
    %cst_22 = arith.constant dense<0.000000e+00> : vector<16x8xf32>
    %22 = tpu.matmul %4, %21, %cst_22 {dimension_numbers = #tpu.dot_dimension_numbers<[1], [0], [0], [1], [0, 0, 1, 1], [], []>} : vector<16x32xf32>, vector<32x8xf32>, vector<16x8xf32> -> vector<16x8xf32>
    %c0_23 = arith.constant 0 : index
    %c0_24 = arith.constant 0 : index
    %c0_25 = arith.constant 0 : index
    %23 = vector.load %arg11[%c0_23, %c0_24, %c0_25] : memref<8x1x8xf32, #tpu.memory_space<vmem>>, vector<1x1x8xf32>
    %24 = vector.shape_cast %23 : vector<1x1x8xf32> to vector<1x8xf32>
    %25 = vector.broadcast %24 : vector<1x8xf32> to vector<16x8xf32>
    %26 = arith.addf %22, %25 : vector<16x8xf32>
    %27 = tpu.transpose %19, [1, 0] : vector<16x8xf32> -> vector<8x16xf32>
    %cst_26 = arith.constant dense<0.000000e+00> : vector<16x16xf32>
    %28 = tpu.matmul %12, %27, %cst_26 {dimension_numbers = #tpu.dot_dimension_numbers<[1], [0], [0], [1], [0, 0, 1, 1], [], []>} : vector<16x8xf32>, vector<8x16xf32>, vector<16x16xf32> -> vector<16x16xf32>
    %cst_27 = arith.constant 0.353553385 : f32
    %29 = vector.broadcast %cst_27 : f32 to vector<16x16xf32>
    %30 = arith.mulf %28, %29 : vector<16x16xf32>
    %31 = arith.addf %30, %5 : vector<16x16xf32>
    %cst_28 = arith.constant dense<0xFF800000> : vector<16xf32>
    %32 = vector.multi_reduction <maximumf>, %31, %cst_28 [1] : vector<16x16xf32> to vector<16xf32>
    %33 = vector.shape_cast %32 : vector<16xf32> to vector<16x1xf32>
    %34 = vector.broadcast %33 : vector<16x1xf32> to vector<16x16xf32>
    %35 = arith.subf %31, %34 : vector<16x16xf32>
    %36 = math.exp %35 : vector<16x16xf32>
    %cst_29 = arith.constant dense<0.000000e+00> : vector<16xf32>
    %37 = vector.multi_reduction <add>, %36, %cst_29 [1] : vector<16x16xf32> to vector<16xf32>
    %38 = vector.shape_cast %37 : vector<16xf32> to vector<16x1xf32>
    %39 = tpu.reciprocal %38 {approx = true} : vector<16x1xf32> -> vector<16x1xf32>
    %40 = vector.broadcast %39 : vector<16x1xf32> to vector<16x16xf32>
    %41 = arith.mulf %36, %40 : vector<16x16xf32>
    %cst_30 = arith.constant dense<0.000000e+00> : vector<16x8xf32>
    %42 = tpu.matmul %41, %26, %cst_30 {dimension_numbers = #tpu.dot_dimension_numbers<[1], [0], [0], [1], [0, 0, 1, 1], [], []>} : vector<16x16xf32>, vector<16x8xf32>, vector<16x8xf32> -> vector<16x8xf32>
    %c0_31 = arith.constant 0 : index
    %c0_32 = arith.constant 0 : index
    %c0_33 = arith.constant 0 : index
    %43 = vector.load %arg12[%c0_31, %c0_32, %c0_33] : memref<8x8x32xf32, #tpu.memory_space<vmem>>, vector<1x8x32xf32>
    %44 = vector.shape_cast %43 : vector<1x8x32xf32> to vector<8x32xf32>
    %cst_34 = arith.constant dense<0.000000e+00> : vector<16x32xf32>
    %45 = tpu.matmul %42, %44, %cst_34 {dimension_numbers = #tpu.dot_dimension_numbers<[1], [0], [0], [1], [0, 0, 1, 1], [], []>} : vector<16x8xf32>, vector<8x32xf32>, vector<16x32xf32> -> vector<16x32xf32>
    %c1 = arith.constant 1 : index
    %c0_35 = arith.constant 0 : index
    %c0_36 = arith.constant 0 : index
    %46 = vector.load %arg6[%c1, %c0_35, %c0_36] : memref<8x32x8xf32, #tpu.memory_space<vmem>>, vector<1x32x8xf32>
    %47 = vector.shape_cast %46 : vector<1x32x8xf32> to vector<32x8xf32>
    %cst_37 = arith.constant dense<0.000000e+00> : vector<16x8xf32>
    %48 = tpu.matmul %4, %47, %cst_37 {dimension_numbers = #tpu.dot_dimension_numbers<[1], [0], [0], [1], [0, 0, 1, 1], [], []>} : vector<16x32xf32>, vector<32x8xf32>, vector<16x8xf32> -> vector<16x8xf32>
    %c1_38 = arith.constant 1 : index
    %c0_39 = arith.constant 0 : index
    %c0_40 = arith.constant 0 : index
    %49 = vector.load %arg7[%c1_38, %c0_39, %c0_40] : memref<8x1x8xf32, #tpu.memory_space<vmem>>, vector<1x1x8xf32>
    %50 = vector.shape_cast %49 : vector<1x1x8xf32> to vector<1x8xf32>
    %51 = vector.broadcast %50 : vector<1x8xf32> to vector<16x8xf32>
    %52 = arith.addf %48, %51 : vector<16x8xf32>
    %c1_41 = arith.constant 1 : index
    %c0_42 = arith.constant 0 : index
    %c0_43 = arith.constant 0 : index
    %53 = vector.load %arg8[%c1_41, %c0_42, %c0_43] : memref<8x32x8xf32, #tpu.memory_space<vmem>>, vector<1x32x8xf32>
    %54 = vector.shape_cast %53 : vector<1x32x8xf32> to vector<32x8xf32>
    %cst_44 = arith.constant dense<0.000000e+00> : vector<16x8xf32>
    %55 = tpu.matmul %4, %54, %cst_44 {dimension_numbers = #tpu.dot_dimension_numbers<[1], [0], [0], [1], [0, 0, 1, 1], [], []>} : vector<16x32xf32>, vector<32x8xf32>, vector<16x8xf32> -> vector<16x8xf32>
    %c1_45 = arith.constant 1 : index
    %c0_46 = arith.constant 0 : index
    %c0_47 = arith.constant 0 : index
    %56 = vector.load %arg9[%c1_45, %c0_46, %c0_47] : memref<8x1x8xf32, #tpu.memory_space<vmem>>, vector<1x1x8xf32>
    %57 = vector.shape_cast %56 : vector<1x1x8xf32> to vector<1x8xf32>
    %58 = vector.broadcast %57 : vector<1x8xf32> to vector<16x8xf32>
    %59 = arith.addf %55, %58 : vector<16x8xf32>
    %c1_48 = arith.constant 1 : index
    %c0_49 = arith.constant 0 : index
    %c0_50 = arith.constant 0 : index
    %60 = vector.load %arg10[%c1_48, %c0_49, %c0_50] : memref<8x32x8xf32, #tpu.memory_space<vmem>>, vector<1x32x8xf32>
    %61 = vector.shape_cast %60 : vector<1x32x8xf32> to vector<32x8xf32>
    %cst_51 = arith.constant dense<0.000000e+00> : vector<16x8xf32>
    %62 = tpu.matmul %4, %61, %cst_51 {dimension_numbers = #tpu.dot_dimension_numbers<[1], [0], [0], [1], [0, 0, 1, 1], [], []>} : vector<16x32xf32>, vector<32x8xf32>, vector<16x8xf32> -> vector<16x8xf32>
    %c1_52 = arith.constant 1 : index
    %c0_53 = arith.constant 0 : index
    %c0_54 = arith.constant 0 : index
    %63 = vector.load %arg11[%c1_52, %c0_53, %c0_54] : memref<8x1x8xf32, #tpu.memory_space<vmem>>, vector<1x1x8xf32>
    %64 = vector.shape_cast %63 : vector<1x1x8xf32> to vector<1x8xf32>
    %65 = vector.broadcast %64 : vector<1x8xf32> to vector<16x8xf32>
    %66 = arith.addf %62, %65 : vector<16x8xf32>
    %67 = tpu.transpose %59, [1, 0] : vector<16x8xf32> -> vector<8x16xf32>
    %cst_55 = arith.constant dense<0.000000e+00> : vector<16x16xf32>
    %68 = tpu.matmul %52, %67, %cst_55 {dimension_numbers = #tpu.dot_dimension_numbers<[1], [0], [0], [1], [0, 0, 1, 1], [], []>} : vector<16x8xf32>, vector<8x16xf32>, vector<16x16xf32> -> vector<16x16xf32>
    %cst_56 = arith.constant 0.353553385 : f32
    %69 = vector.broadcast %cst_56 : f32 to vector<16x16xf32>
    %70 = arith.mulf %68, %69 : vector<16x16xf32>
    %71 = arith.addf %70, %5 : vector<16x16xf32>
    %cst_57 = arith.constant dense<0xFF800000> : vector<16xf32>
    %72 = vector.multi_reduction <maximumf>, %71, %cst_57 [1] : vector<16x16xf32> to vector<16xf32>
    %73 = vector.shape_cast %72 : vector<16xf32> to vector<16x1xf32>
    %74 = vector.broadcast %73 : vector<16x1xf32> to vector<16x16xf32>
    %75 = arith.subf %71, %74 : vector<16x16xf32>
    %76 = math.exp %75 : vector<16x16xf32>
    %cst_58 = arith.constant dense<0.000000e+00> : vector<16xf32>
    %77 = vector.multi_reduction <add>, %76, %cst_58 [1] : vector<16x16xf32> to vector<16xf32>
    %78 = vector.shape_cast %77 : vector<16xf32> to vector<16x1xf32>
    %79 = tpu.reciprocal %78 {approx = true} : vector<16x1xf32> -> vector<16x1xf32>
    %80 = vector.broadcast %79 : vector<16x1xf32> to vector<16x16xf32>
    %81 = arith.mulf %76, %80 : vector<16x16xf32>
    %cst_59 = arith.constant dense<0.000000e+00> : vector<16x8xf32>
    %82 = tpu.matmul %81, %66, %cst_59 {dimension_numbers = #tpu.dot_dimension_numbers<[1], [0], [0], [1], [0, 0, 1, 1], [], []>} : vector<16x16xf32>, vector<16x8xf32>, vector<16x8xf32> -> vector<16x8xf32>
    %c1_60 = arith.constant 1 : index
    %c0_61 = arith.constant 0 : index
    %c0_62 = arith.constant 0 : index
    %83 = vector.load %arg12[%c1_60, %c0_61, %c0_62] : memref<8x8x32xf32, #tpu.memory_space<vmem>>, vector<1x8x32xf32>
    %84 = vector.shape_cast %83 : vector<1x8x32xf32> to vector<8x32xf32>
    %cst_63 = arith.constant dense<0.000000e+00> : vector<16x32xf32>
    %85 = tpu.matmul %82, %84, %cst_63 {dimension_numbers = #tpu.dot_dimension_numbers<[1], [0], [0], [1], [0, 0, 1, 1], [], []>} : vector<16x8xf32>, vector<8x32xf32>, vector<16x32xf32> -> vector<16x32xf32>
    %86 = arith.addf %45, %85 : vector<16x32xf32>
    %c2 = arith.constant 2 : index
    %c0_64 = arith.constant 0 : index
    %c0_65 = arith.constant 0 : index
    %87 = vector.load %arg6[%c2, %c0_64, %c0_65] : memref<8x32x8xf32, #tpu.memory_space<vmem>>, vector<1x32x8xf32>
    %88 = vector.shape_cast %87 : vector<1x32x8xf32> to vector<32x8xf32>
    %cst_66 = arith.constant dense<0.000000e+00> : vector<16x8xf32>
    %89 = tpu.matmul %4, %88, %cst_66 {dimension_numbers = #tpu.dot_dimension_numbers<[1], [0], [0], [1], [0, 0, 1, 1], [], []>} : vector<16x32xf32>, vector<32x8xf32>, vector<16x8xf32> -> vector<16x8xf32>
    %c2_67 = arith.constant 2 : index
    %c0_68 = arith.constant 0 : index
    %c0_69 = arith.constant 0 : index
    %90 = vector.load %arg7[%c2_67, %c0_68, %c0_69] : memref<8x1x8xf32, #tpu.memory_space<vmem>>, vector<1x1x8xf32>
    %91 = vector.shape_cast %90 : vector<1x1x8xf32> to vector<1x8xf32>
    %92 = vector.broadcast %91 : vector<1x8xf32> to vector<16x8xf32>
    %93 = arith.addf %89, %92 : vector<16x8xf32>
    %c2_70 = arith.constant 2 : index
    %c0_71 = arith.constant 0 : index
    %c0_72 = arith.constant 0 : index
    %94 = vector.load %arg8[%c2_70, %c0_71, %c0_72] : memref<8x32x8xf32, #tpu.memory_space<vmem>>, vector<1x32x8xf32>
    %95 = vector.shape_cast %94 : vector<1x32x8xf32> to vector<32x8xf32>
    %cst_73 = arith.constant dense<0.000000e+00> : vector<16x8xf32>
    %96 = tpu.matmul %4, %95, %cst_73 {dimension_numbers = #tpu.dot_dimension_numbers<[1], [0], [0], [1], [0, 0, 1, 1], [], []>} : vector<16x32xf32>, vector<32x8xf32>, vector<16x8xf32> -> vector<16x8xf32>
    %c2_74 = arith.constant 2 : index
    %c0_75 = arith.constant 0 : index
    %c0_76 = arith.constant 0 : index
    %97 = vector.load %arg9[%c2_74, %c0_75, %c0_76] : memref<8x1x8xf32, #tpu.memory_space<vmem>>, vector<1x1x8xf32>
    %98 = vector.shape_cast %97 : vector<1x1x8xf32> to vector<1x8xf32>
    %99 = vector.broadcast %98 : vector<1x8xf32> to vector<16x8xf32>
    %100 = arith.addf %96, %99 : vector<16x8xf32>
    %c2_77 = arith.constant 2 : index
    %c0_78 = arith.constant 0 : index
    %c0_79 = arith.constant 0 : index
    %101 = vector.load %arg10[%c2_77, %c0_78, %c0_79] : memref<8x32x8xf32, #tpu.memory_space<vmem>>, vector<1x32x8xf32>
    %102 = vector.shape_cast %101 : vector<1x32x8xf32> to vector<32x8xf32>
    %cst_80 = arith.constant dense<0.000000e+00> : vector<16x8xf32>
    %103 = tpu.matmul %4, %102, %cst_80 {dimension_numbers = #tpu.dot_dimension_numbers<[1], [0], [0], [1], [0, 0, 1, 1], [], []>} : vector<16x32xf32>, vector<32x8xf32>, vector<16x8xf32> -> vector<16x8xf32>
    %c2_81 = arith.constant 2 : index
    %c0_82 = arith.constant 0 : index
    %c0_83 = arith.constant 0 : index
    %104 = vector.load %arg11[%c2_81, %c0_82, %c0_83] : memref<8x1x8xf32, #tpu.memory_space<vmem>>, vector<1x1x8xf32>
    %105 = vector.shape_cast %104 : vector<1x1x8xf32> to vector<1x8xf32>
    %106 = vector.broadcast %105 : vector<1x8xf32> to vector<16x8xf32>
    %107 = arith.addf %103, %106 : vector<16x8xf32>
    %108 = tpu.transpose %100, [1, 0] : vector<16x8xf32> -> vector<8x16xf32>
    %cst_84 = arith.constant dense<0.000000e+00> : vector<16x16xf32>
    %109 = tpu.matmul %93, %108, %cst_84 {dimension_numbers = #tpu.dot_dimension_numbers<[1], [0], [0], [1], [0, 0, 1, 1], [], []>} : vector<16x8xf32>, vector<8x16xf32>, vector<16x16xf32> -> vector<16x16xf32>
    %cst_85 = arith.constant 0.353553385 : f32
    %110 = vector.broadcast %cst_85 : f32 to vector<16x16xf32>
    %111 = arith.mulf %109, %110 : vector<16x16xf32>
    %112 = arith.addf %111, %5 : vector<16x16xf32>
    %cst_86 = arith.constant dense<0xFF800000> : vector<16xf32>
    %113 = vector.multi_reduction <maximumf>, %112, %cst_86 [1] : vector<16x16xf32> to vector<16xf32>
    %114 = vector.shape_cast %113 : vector<16xf32> to vector<16x1xf32>
    %115 = vector.broadcast %114 : vector<16x1xf32> to vector<16x16xf32>
    %116 = arith.subf %112, %115 : vector<16x16xf32>
    %117 = math.exp %116 : vector<16x16xf32>
    %cst_87 = arith.constant dense<0.000000e+00> : vector<16xf32>
    %118 = vector.multi_reduction <add>, %117, %cst_87 [1] : vector<16x16xf32> to vector<16xf32>
    %119 = vector.shape_cast %118 : vector<16xf32> to vector<16x1xf32>
    %120 = tpu.reciprocal %119 {approx = true} : vector<16x1xf32> -> vector<16x1xf32>
    %121 = vector.broadcast %120 : vector<16x1xf32> to vector<16x16xf32>
    %122 = arith.mulf %117, %121 : vector<16x16xf32>
    %cst_88 = arith.constant dense<0.000000e+00> : vector<16x8xf32>
    %123 = tpu.matmul %122, %107, %cst_88 {dimension_numbers = #tpu.dot_dimension_numbers<[1], [0], [0], [1], [0, 0, 1, 1], [], []>} : vector<16x16xf32>, vector<16x8xf32>, vector<16x8xf32> -> vector<16x8xf32>
    %c2_89 = arith.constant 2 : index
    %c0_90 = arith.constant 0 : index
    %c0_91 = arith.constant 0 : index
    %124 = vector.load %arg12[%c2_89, %c0_90, %c0_91] : memref<8x8x32xf32, #tpu.memory_space<vmem>>, vector<1x8x32xf32>
    %125 = vector.shape_cast %124 : vector<1x8x32xf32> to vector<8x32xf32>
    %cst_92 = arith.constant dense<0.000000e+00> : vector<16x32xf32>
    %126 = tpu.matmul %123, %125, %cst_92 {dimension_numbers = #tpu.dot_dimension_numbers<[1], [0], [0], [1], [0, 0, 1, 1], [], []>} : vector<16x8xf32>, vector<8x32xf32>, vector<16x32xf32> -> vector<16x32xf32>
    %127 = arith.addf %86, %126 : vector<16x32xf32>
    %c3 = arith.constant 3 : index
    %c0_93 = arith.constant 0 : index
    %c0_94 = arith.constant 0 : index
    %128 = vector.load %arg6[%c3, %c0_93, %c0_94] : memref<8x32x8xf32, #tpu.memory_space<vmem>>, vector<1x32x8xf32>
    %129 = vector.shape_cast %128 : vector<1x32x8xf32> to vector<32x8xf32>
    %cst_95 = arith.constant dense<0.000000e+00> : vector<16x8xf32>
    %130 = tpu.matmul %4, %129, %cst_95 {dimension_numbers = #tpu.dot_dimension_numbers<[1], [0], [0], [1], [0, 0, 1, 1], [], []>} : vector<16x32xf32>, vector<32x8xf32>, vector<16x8xf32> -> vector<16x8xf32>
    %c3_96 = arith.constant 3 : index
    %c0_97 = arith.constant 0 : index
    %c0_98 = arith.constant 0 : index
    %131 = vector.load %arg7[%c3_96, %c0_97, %c0_98] : memref<8x1x8xf32, #tpu.memory_space<vmem>>, vector<1x1x8xf32>
    %132 = vector.shape_cast %131 : vector<1x1x8xf32> to vector<1x8xf32>
    %133 = vector.broadcast %132 : vector<1x8xf32> to vector<16x8xf32>
    %134 = arith.addf %130, %133 : vector<16x8xf32>
    %c3_99 = arith.constant 3 : index
    %c0_100 = arith.constant 0 : index
    %c0_101 = arith.constant 0 : index
    %135 = vector.load %arg8[%c3_99, %c0_100, %c0_101] : memref<8x32x8xf32, #tpu.memory_space<vmem>>, vector<1x32x8xf32>
    %136 = vector.shape_cast %135 : vector<1x32x8xf32> to vector<32x8xf32>
    %cst_102 = arith.constant dense<0.000000e+00> : vector<16x8xf32>
    %137 = tpu.matmul %4, %136, %cst_102 {dimension_numbers = #tpu.dot_dimension_numbers<[1], [0], [0], [1], [0, 0, 1, 1], [], []>} : vector<16x32xf32>, vector<32x8xf32>, vector<16x8xf32> -> vector<16x8xf32>
    %c3_103 = arith.constant 3 : index
    %c0_104 = arith.constant 0 : index
    %c0_105 = arith.constant 0 : index
    %138 = vector.load %arg9[%c3_103, %c0_104, %c0_105] : memref<8x1x8xf32, #tpu.memory_space<vmem>>, vector<1x1x8xf32>
    %139 = vector.shape_cast %138 : vector<1x1x8xf32> to vector<1x8xf32>
    %140 = vector.broadcast %139 : vector<1x8xf32> to vector<16x8xf32>
    %141 = arith.addf %137, %140 : vector<16x8xf32>
    %c3_106 = arith.constant 3 : index
    %c0_107 = arith.constant 0 : index
    %c0_108 = arith.constant 0 : index
    %142 = vector.load %arg10[%c3_106, %c0_107, %c0_108] : memref<8x32x8xf32, #tpu.memory_space<vmem>>, vector<1x32x8xf32>
    %143 = vector.shape_cast %142 : vector<1x32x8xf32> to vector<32x8xf32>
    %cst_109 = arith.constant dense<0.000000e+00> : vector<16x8xf32>
    %144 = tpu.matmul %4, %143, %cst_109 {dimension_numbers = #tpu.dot_dimension_numbers<[1], [0], [0], [1], [0, 0, 1, 1], [], []>} : vector<16x32xf32>, vector<32x8xf32>, vector<16x8xf32> -> vector<16x8xf32>
    %c3_110 = arith.constant 3 : index
    %c0_111 = arith.constant 0 : index
    %c0_112 = arith.constant 0 : index
    %145 = vector.load %arg11[%c3_110, %c0_111, %c0_112] : memref<8x1x8xf32, #tpu.memory_space<vmem>>, vector<1x1x8xf32>
    %146 = vector.shape_cast %145 : vector<1x1x8xf32> to vector<1x8xf32>
    %147 = vector.broadcast %146 : vector<1x8xf32> to vector<16x8xf32>
    %148 = arith.addf %144, %147 : vector<16x8xf32>
    %149 = tpu.transpose %141, [1, 0] : vector<16x8xf32> -> vector<8x16xf32>
    %cst_113 = arith.constant dense<0.000000e+00> : vector<16x16xf32>
    %150 = tpu.matmul %134, %149, %cst_113 {dimension_numbers = #tpu.dot_dimension_numbers<[1], [0], [0], [1], [0, 0, 1, 1], [], []>} : vector<16x8xf32>, vector<8x16xf32>, vector<16x16xf32> -> vector<16x16xf32>
    %cst_114 = arith.constant 0.353553385 : f32
    %151 = vector.broadcast %cst_114 : f32 to vector<16x16xf32>
    %152 = arith.mulf %150, %151 : vector<16x16xf32>
    %153 = arith.addf %152, %5 : vector<16x16xf32>
    %cst_115 = arith.constant dense<0xFF800000> : vector<16xf32>
    %154 = vector.multi_reduction <maximumf>, %153, %cst_115 [1] : vector<16x16xf32> to vector<16xf32>
    %155 = vector.shape_cast %154 : vector<16xf32> to vector<16x1xf32>
    %156 = vector.broadcast %155 : vector<16x1xf32> to vector<16x16xf32>
    %157 = arith.subf %153, %156 : vector<16x16xf32>
    %158 = math.exp %157 : vector<16x16xf32>
    %cst_116 = arith.constant dense<0.000000e+00> : vector<16xf32>
    %159 = vector.multi_reduction <add>, %158, %cst_116 [1] : vector<16x16xf32> to vector<16xf32>
    %160 = vector.shape_cast %159 : vector<16xf32> to vector<16x1xf32>
    %161 = tpu.reciprocal %160 {approx = true} : vector<16x1xf32> -> vector<16x1xf32>
    %162 = vector.broadcast %161 : vector<16x1xf32> to vector<16x16xf32>
    %163 = arith.mulf %158, %162 : vector<16x16xf32>
    %cst_117 = arith.constant dense<0.000000e+00> : vector<16x8xf32>
    %164 = tpu.matmul %163, %148, %cst_117 {dimension_numbers = #tpu.dot_dimension_numbers<[1], [0], [0], [1], [0, 0, 1, 1], [], []>} : vector<16x16xf32>, vector<16x8xf32>, vector<16x8xf32> -> vector<16x8xf32>
    %c3_118 = arith.constant 3 : index
    %c0_119 = arith.constant 0 : index
    %c0_120 = arith.constant 0 : index
    %165 = vector.load %arg12[%c3_118, %c0_119, %c0_120] : memref<8x8x32xf32, #tpu.memory_space<vmem>>, vector<1x8x32xf32>
    %166 = vector.shape_cast %165 : vector<1x8x32xf32> to vector<8x32xf32>
    %cst_121 = arith.constant dense<0.000000e+00> : vector<16x32xf32>
    %167 = tpu.matmul %164, %166, %cst_121 {dimension_numbers = #tpu.dot_dimension_numbers<[1], [0], [0], [1], [0, 0, 1, 1], [], []>} : vector<16x8xf32>, vector<8x32xf32>, vector<16x32xf32> -> vector<16x32xf32>
    %168 = arith.addf %127, %167 : vector<16x32xf32>
    %c0_122 = arith.constant 0 : index
    %c0_123 = arith.constant 0 : index
    %c0_124 = arith.constant 0 : index
    %169 = vector.load %arg13[%c0_122, %c0_123, %c0_124] : memref<2x1x32xf32, #tpu.memory_space<vmem>>, vector<1x1x32xf32>
    %170 = vector.shape_cast %169 : vector<1x1x32xf32> to vector<1x32xf32>
    %171 = vector.broadcast %170 : vector<1x32xf32> to vector<16x32xf32>
    %172 = arith.addf %168, %171 : vector<16x32xf32>
    %173 = arith.addf %4, %172 : vector<16x32xf32>
    %c0_125 = arith.constant 0 : index
    %c0_126 = arith.constant 0 : index
    %c0_127 = arith.constant 0 : index
    %174 = vector.load %arg14[%c0_125, %c0_126, %c0_127] : memref<2x1x32xf32, #tpu.memory_space<vmem>>, vector<1x1x32xf32>
    %175 = vector.shape_cast %174 : vector<1x1x32xf32> to vector<1x32xf32>
    %c0_128 = arith.constant 0 : index
    %c0_129 = arith.constant 0 : index
    %c0_130 = arith.constant 0 : index
    %176 = vector.load %arg15[%c0_128, %c0_129, %c0_130] : memref<2x1x32xf32, #tpu.memory_space<vmem>>, vector<1x1x32xf32>
    %177 = vector.shape_cast %176 : vector<1x1x32xf32> to vector<1x32xf32>
    %cst_131 = arith.constant dense<0.000000e+00> : vector<16xf32>
    %178 = vector.multi_reduction <add>, %173, %cst_131 [1] : vector<16x32xf32> to vector<16xf32>
    %179 = vector.shape_cast %178 : vector<16xf32> to vector<16x1xf32>
    %cst_132 = arith.constant 3.200000e+01 : f32
    %180 = vector.broadcast %cst_132 : f32 to vector<16x1xf32>
    %181 = arith.divf %179, %180 : vector<16x1xf32>
    %182 = vector.broadcast %181 : vector<16x1xf32> to vector<16x32xf32>
    %183 = arith.subf %173, %182 : vector<16x32xf32>
    %184 = arith.mulf %183, %183 : vector<16x32xf32>
    %cst_133 = arith.constant dense<0.000000e+00> : vector<16xf32>
    %185 = vector.multi_reduction <add>, %184, %cst_133 [1] : vector<16x32xf32> to vector<16xf32>
    %186 = vector.shape_cast %185 : vector<16xf32> to vector<16x1xf32>
    %cst_134 = arith.constant 3.200000e+01 : f32
    %187 = vector.broadcast %cst_134 : f32 to vector<16x1xf32>
    %188 = arith.divf %186, %187 : vector<16x1xf32>
    %189 = vector.broadcast %181 : vector<16x1xf32> to vector<16x32xf32>
    %190 = arith.subf %173, %189 : vector<16x32xf32>
    %cst_135 = arith.constant 9.99999974E-6 : f32
    %191 = vector.broadcast %cst_135 : f32 to vector<16x1xf32>
    %192 = arith.addf %188, %191 : vector<16x1xf32>
    %193 = math.rsqrt %192 : vector<16x1xf32>
    %194 = vector.broadcast %193 : vector<16x1xf32> to vector<16x32xf32>
    %195 = arith.mulf %190, %194 : vector<16x32xf32>
    %196 = vector.broadcast %175 : vector<1x32xf32> to vector<16x32xf32>
    %197 = arith.mulf %195, %196 : vector<16x32xf32>
    %198 = vector.broadcast %177 : vector<1x32xf32> to vector<16x32xf32>
    %199 = arith.addf %197, %198 : vector<16x32xf32>
    %c0_136 = arith.constant 0 : index
    %c0_137 = arith.constant 0 : index
    %c0_138 = arith.constant 0 : index
    %200 = vector.load %arg16[%c0_136, %c0_137, %c0_138] : memref<2x32x64xf32, #tpu.memory_space<vmem>>, vector<1x32x64xf32>
    %201 = vector.shape_cast %200 : vector<1x32x64xf32> to vector<32x64xf32>
    %cst_139 = arith.constant dense<0.000000e+00> : vector<16x64xf32>
    %202 = tpu.matmul %199, %201, %cst_139 {dimension_numbers = #tpu.dot_dimension_numbers<[1], [0], [0], [1], [0, 0, 1, 1], [], []>} : vector<16x32xf32>, vector<32x64xf32>, vector<16x64xf32> -> vector<16x64xf32>
    %c0_140 = arith.constant 0 : index
    %c0_141 = arith.constant 0 : index
    %c0_142 = arith.constant 0 : index
    %203 = vector.load %arg17[%c0_140, %c0_141, %c0_142] : memref<2x1x64xf32, #tpu.memory_space<vmem>>, vector<1x1x64xf32>
    %204 = vector.shape_cast %203 : vector<1x1x64xf32> to vector<1x64xf32>
    %205 = vector.broadcast %204 : vector<1x64xf32> to vector<16x64xf32>
    %206 = arith.addf %202, %205 : vector<16x64xf32>
    %cst_143 = arith.constant 0.000000e+00 : f32
    %207 = vector.broadcast %cst_143 : f32 to vector<16x64xf32>
    %208 = arith.maximumf %206, %207 : vector<16x64xf32>
    %c0_144 = arith.constant 0 : index
    %c0_145 = arith.constant 0 : index
    %c0_146 = arith.constant 0 : index
    %209 = vector.load %arg18[%c0_144, %c0_145, %c0_146] : memref<2x64x32xf32, #tpu.memory_space<vmem>>, vector<1x64x32xf32>
    %210 = vector.shape_cast %209 : vector<1x64x32xf32> to vector<64x32xf32>
    %cst_147 = arith.constant dense<0.000000e+00> : vector<16x32xf32>
    %211 = tpu.matmul %208, %210, %cst_147 {dimension_numbers = #tpu.dot_dimension_numbers<[1], [0], [0], [1], [0, 0, 1, 1], [], []>} : vector<16x64xf32>, vector<64x32xf32>, vector<16x32xf32> -> vector<16x32xf32>
    %c0_148 = arith.constant 0 : index
    %c0_149 = arith.constant 0 : index
    %c0_150 = arith.constant 0 : index
    %212 = vector.load %arg19[%c0_148, %c0_149, %c0_150] : memref<2x1x32xf32, #tpu.memory_space<vmem>>, vector<1x1x32xf32>
    %213 = vector.shape_cast %212 : vector<1x1x32xf32> to vector<1x32xf32>
    %214 = vector.broadcast %213 : vector<1x32xf32> to vector<16x32xf32>
    %215 = arith.addf %211, %214 : vector<16x32xf32>
    %216 = arith.addf %199, %215 : vector<16x32xf32>
    %c0_151 = arith.constant 0 : index
    %c0_152 = arith.constant 0 : index
    %c0_153 = arith.constant 0 : index
    %217 = vector.load %arg20[%c0_151, %c0_152, %c0_153] : memref<2x1x32xf32, #tpu.memory_space<vmem>>, vector<1x1x32xf32>
    %218 = vector.shape_cast %217 : vector<1x1x32xf32> to vector<1x32xf32>
    %c0_154 = arith.constant 0 : index
    %c0_155 = arith.constant 0 : index
    %c0_156 = arith.constant 0 : index
    %219 = vector.load %arg21[%c0_154, %c0_155, %c0_156] : memref<2x1x32xf32, #tpu.memory_space<vmem>>, vector<1x1x32xf32>
    %220 = vector.shape_cast %219 : vector<1x1x32xf32> to vector<1x32xf32>
    %cst_157 = arith.constant dense<0.000000e+00> : vector<16xf32>
    %221 = vector.multi_reduction <add>, %216, %cst_157 [1] : vector<16x32xf32> to vector<16xf32>
    %222 = vector.shape_cast %221 : vector<16xf32> to vector<16x1xf32>
    %cst_158 = arith.constant 3.200000e+01 : f32
    %223 = vector.broadcast %cst_158 : f32 to vector<16x1xf32>
    %224 = arith.divf %222, %223 : vector<16x1xf32>
    %225 = vector.broadcast %224 : vector<16x1xf32> to vector<16x32xf32>
    %226 = arith.subf %216, %225 : vector<16x32xf32>
    %227 = arith.mulf %226, %226 : vector<16x32xf32>
    %cst_159 = arith.constant dense<0.000000e+00> : vector<16xf32>
    %228 = vector.multi_reduction <add>, %227, %cst_159 [1] : vector<16x32xf32> to vector<16xf32>
    %229 = vector.shape_cast %228 : vector<16xf32> to vector<16x1xf32>
    %cst_160 = arith.constant 3.200000e+01 : f32
    %230 = vector.broadcast %cst_160 : f32 to vector<16x1xf32>
    %231 = arith.divf %229, %230 : vector<16x1xf32>
    %232 = vector.broadcast %224 : vector<16x1xf32> to vector<16x32xf32>
    %233 = arith.subf %216, %232 : vector<16x32xf32>
    %cst_161 = arith.constant 9.99999974E-6 : f32
    %234 = vector.broadcast %cst_161 : f32 to vector<16x1xf32>
    %235 = arith.addf %231, %234 : vector<16x1xf32>
    %236 = math.rsqrt %235 : vector<16x1xf32>
    %237 = vector.broadcast %236 : vector<16x1xf32> to vector<16x32xf32>
    %238 = arith.mulf %233, %237 : vector<16x32xf32>
    %239 = vector.broadcast %218 : vector<1x32xf32> to vector<16x32xf32>
    %240 = arith.mulf %238, %239 : vector<16x32xf32>
    %241 = vector.broadcast %220 : vector<1x32xf32> to vector<16x32xf32>
    %242 = arith.addf %240, %241 : vector<16x32xf32>
    %c4 = arith.constant 4 : index
    %c0_162 = arith.constant 0 : index
    %c0_163 = arith.constant 0 : index
    %243 = vector.load %arg6[%c4, %c0_162, %c0_163] : memref<8x32x8xf32, #tpu.memory_space<vmem>>, vector<1x32x8xf32>
    %244 = vector.shape_cast %243 : vector<1x32x8xf32> to vector<32x8xf32>
    %cst_164 = arith.constant dense<0.000000e+00> : vector<16x8xf32>
    %245 = tpu.matmul %242, %244, %cst_164 {dimension_numbers = #tpu.dot_dimension_numbers<[1], [0], [0], [1], [0, 0, 1, 1], [], []>} : vector<16x32xf32>, vector<32x8xf32>, vector<16x8xf32> -> vector<16x8xf32>
    %c4_165 = arith.constant 4 : index
    %c0_166 = arith.constant 0 : index
    %c0_167 = arith.constant 0 : index
    %246 = vector.load %arg7[%c4_165, %c0_166, %c0_167] : memref<8x1x8xf32, #tpu.memory_space<vmem>>, vector<1x1x8xf32>
    %247 = vector.shape_cast %246 : vector<1x1x8xf32> to vector<1x8xf32>
    %248 = vector.broadcast %247 : vector<1x8xf32> to vector<16x8xf32>
    %249 = arith.addf %245, %248 : vector<16x8xf32>
    %c4_168 = arith.constant 4 : index
    %c0_169 = arith.constant 0 : index
    %c0_170 = arith.constant 0 : index
    %250 = vector.load %arg8[%c4_168, %c0_169, %c0_170] : memref<8x32x8xf32, #tpu.memory_space<vmem>>, vector<1x32x8xf32>
    %251 = vector.shape_cast %250 : vector<1x32x8xf32> to vector<32x8xf32>
    %cst_171 = arith.constant dense<0.000000e+00> : vector<16x8xf32>
    %252 = tpu.matmul %242, %251, %cst_171 {dimension_numbers = #tpu.dot_dimension_numbers<[1], [0], [0], [1], [0, 0, 1, 1], [], []>} : vector<16x32xf32>, vector<32x8xf32>, vector<16x8xf32> -> vector<16x8xf32>
    %c4_172 = arith.constant 4 : index
    %c0_173 = arith.constant 0 : index
    %c0_174 = arith.constant 0 : index
    %253 = vector.load %arg9[%c4_172, %c0_173, %c0_174] : memref<8x1x8xf32, #tpu.memory_space<vmem>>, vector<1x1x8xf32>
    %254 = vector.shape_cast %253 : vector<1x1x8xf32> to vector<1x8xf32>
    %255 = vector.broadcast %254 : vector<1x8xf32> to vector<16x8xf32>
    %256 = arith.addf %252, %255 : vector<16x8xf32>
    %c4_175 = arith.constant 4 : index
    %c0_176 = arith.constant 0 : index
    %c0_177 = arith.constant 0 : index
    %257 = vector.load %arg10[%c4_175, %c0_176, %c0_177] : memref<8x32x8xf32, #tpu.memory_space<vmem>>, vector<1x32x8xf32>
    %258 = vector.shape_cast %257 : vector<1x32x8xf32> to vector<32x8xf32>
    %cst_178 = arith.constant dense<0.000000e+00> : vector<16x8xf32>
    %259 = tpu.matmul %242, %258, %cst_178 {dimension_numbers = #tpu.dot_dimension_numbers<[1], [0], [0], [1], [0, 0, 1, 1], [], []>} : vector<16x32xf32>, vector<32x8xf32>, vector<16x8xf32> -> vector<16x8xf32>
    %c4_179 = arith.constant 4 : index
    %c0_180 = arith.constant 0 : index
    %c0_181 = arith.constant 0 : index
    %260 = vector.load %arg11[%c4_179, %c0_180, %c0_181] : memref<8x1x8xf32, #tpu.memory_space<vmem>>, vector<1x1x8xf32>
    %261 = vector.shape_cast %260 : vector<1x1x8xf32> to vector<1x8xf32>
    %262 = vector.broadcast %261 : vector<1x8xf32> to vector<16x8xf32>
    %263 = arith.addf %259, %262 : vector<16x8xf32>
    %264 = tpu.transpose %256, [1, 0] : vector<16x8xf32> -> vector<8x16xf32>
    %cst_182 = arith.constant dense<0.000000e+00> : vector<16x16xf32>
    %265 = tpu.matmul %249, %264, %cst_182 {dimension_numbers = #tpu.dot_dimension_numbers<[1], [0], [0], [1], [0, 0, 1, 1], [], []>} : vector<16x8xf32>, vector<8x16xf32>, vector<16x16xf32> -> vector<16x16xf32>
    %cst_183 = arith.constant 0.353553385 : f32
    %266 = vector.broadcast %cst_183 : f32 to vector<16x16xf32>
    %267 = arith.mulf %265, %266 : vector<16x16xf32>
    %268 = arith.addf %267, %5 : vector<16x16xf32>
    %cst_184 = arith.constant dense<0xFF800000> : vector<16xf32>
    %269 = vector.multi_reduction <maximumf>, %268, %cst_184 [1] : vector<16x16xf32> to vector<16xf32>
    %270 = vector.shape_cast %269 : vector<16xf32> to vector<16x1xf32>
    %271 = vector.broadcast %270 : vector<16x1xf32> to vector<16x16xf32>
    %272 = arith.subf %268, %271 : vector<16x16xf32>
    %273 = math.exp %272 : vector<16x16xf32>
    %cst_185 = arith.constant dense<0.000000e+00> : vector<16xf32>
    %274 = vector.multi_reduction <add>, %273, %cst_185 [1] : vector<16x16xf32> to vector<16xf32>
    %275 = vector.shape_cast %274 : vector<16xf32> to vector<16x1xf32>
    %276 = tpu.reciprocal %275 {approx = true} : vector<16x1xf32> -> vector<16x1xf32>
    %277 = vector.broadcast %276 : vector<16x1xf32> to vector<16x16xf32>
    %278 = arith.mulf %273, %277 : vector<16x16xf32>
    %cst_186 = arith.constant dense<0.000000e+00> : vector<16x8xf32>
    %279 = tpu.matmul %278, %263, %cst_186 {dimension_numbers = #tpu.dot_dimension_numbers<[1], [0], [0], [1], [0, 0, 1, 1], [], []>} : vector<16x16xf32>, vector<16x8xf32>, vector<16x8xf32> -> vector<16x8xf32>
    %c4_187 = arith.constant 4 : index
    %c0_188 = arith.constant 0 : index
    %c0_189 = arith.constant 0 : index
    %280 = vector.load %arg12[%c4_187, %c0_188, %c0_189] : memref<8x8x32xf32, #tpu.memory_space<vmem>>, vector<1x8x32xf32>
    %281 = vector.shape_cast %280 : vector<1x8x32xf32> to vector<8x32xf32>
    %cst_190 = arith.constant dense<0.000000e+00> : vector<16x32xf32>
    %282 = tpu.matmul %279, %281, %cst_190 {dimension_numbers = #tpu.dot_dimension_numbers<[1], [0], [0], [1], [0, 0, 1, 1], [], []>} : vector<16x8xf32>, vector<8x32xf32>, vector<16x32xf32> -> vector<16x32xf32>
    %c5 = arith.constant 5 : index
    %c0_191 = arith.constant 0 : index
    %c0_192 = arith.constant 0 : index
    %283 = vector.load %arg6[%c5, %c0_191, %c0_192] : memref<8x32x8xf32, #tpu.memory_space<vmem>>, vector<1x32x8xf32>
    %284 = vector.shape_cast %283 : vector<1x32x8xf32> to vector<32x8xf32>
    %cst_193 = arith.constant dense<0.000000e+00> : vector<16x8xf32>
    %285 = tpu.matmul %242, %284, %cst_193 {dimension_numbers = #tpu.dot_dimension_numbers<[1], [0], [0], [1], [0, 0, 1, 1], [], []>} : vector<16x32xf32>, vector<32x8xf32>, vector<16x8xf32> -> vector<16x8xf32>
    %c5_194 = arith.constant 5 : index
    %c0_195 = arith.constant 0 : index
    %c0_196 = arith.constant 0 : index
    %286 = vector.load %arg7[%c5_194, %c0_195, %c0_196] : memref<8x1x8xf32, #tpu.memory_space<vmem>>, vector<1x1x8xf32>
    %287 = vector.shape_cast %286 : vector<1x1x8xf32> to vector<1x8xf32>
    %288 = vector.broadcast %287 : vector<1x8xf32> to vector<16x8xf32>
    %289 = arith.addf %285, %288 : vector<16x8xf32>
    %c5_197 = arith.constant 5 : index
    %c0_198 = arith.constant 0 : index
    %c0_199 = arith.constant 0 : index
    %290 = vector.load %arg8[%c5_197, %c0_198, %c0_199] : memref<8x32x8xf32, #tpu.memory_space<vmem>>, vector<1x32x8xf32>
    %291 = vector.shape_cast %290 : vector<1x32x8xf32> to vector<32x8xf32>
    %cst_200 = arith.constant dense<0.000000e+00> : vector<16x8xf32>
    %292 = tpu.matmul %242, %291, %cst_200 {dimension_numbers = #tpu.dot_dimension_numbers<[1], [0], [0], [1], [0, 0, 1, 1], [], []>} : vector<16x32xf32>, vector<32x8xf32>, vector<16x8xf32> -> vector<16x8xf32>
    %c5_201 = arith.constant 5 : index
    %c0_202 = arith.constant 0 : index
    %c0_203 = arith.constant 0 : index
    %293 = vector.load %arg9[%c5_201, %c0_202, %c0_203] : memref<8x1x8xf32, #tpu.memory_space<vmem>>, vector<1x1x8xf32>
    %294 = vector.shape_cast %293 : vector<1x1x8xf32> to vector<1x8xf32>
    %295 = vector.broadcast %294 : vector<1x8xf32> to vector<16x8xf32>
    %296 = arith.addf %292, %295 : vector<16x8xf32>
    %c5_204 = arith.constant 5 : index
    %c0_205 = arith.constant 0 : index
    %c0_206 = arith.constant 0 : index
    %297 = vector.load %arg10[%c5_204, %c0_205, %c0_206] : memref<8x32x8xf32, #tpu.memory_space<vmem>>, vector<1x32x8xf32>
    %298 = vector.shape_cast %297 : vector<1x32x8xf32> to vector<32x8xf32>
    %cst_207 = arith.constant dense<0.000000e+00> : vector<16x8xf32>
    %299 = tpu.matmul %242, %298, %cst_207 {dimension_numbers = #tpu.dot_dimension_numbers<[1], [0], [0], [1], [0, 0, 1, 1], [], []>} : vector<16x32xf32>, vector<32x8xf32>, vector<16x8xf32> -> vector<16x8xf32>
    %c5_208 = arith.constant 5 : index
    %c0_209 = arith.constant 0 : index
    %c0_210 = arith.constant 0 : index
    %300 = vector.load %arg11[%c5_208, %c0_209, %c0_210] : memref<8x1x8xf32, #tpu.memory_space<vmem>>, vector<1x1x8xf32>
    %301 = vector.shape_cast %300 : vector<1x1x8xf32> to vector<1x8xf32>
    %302 = vector.broadcast %301 : vector<1x8xf32> to vector<16x8xf32>
    %303 = arith.addf %299, %302 : vector<16x8xf32>
    %304 = tpu.transpose %296, [1, 0] : vector<16x8xf32> -> vector<8x16xf32>
    %cst_211 = arith.constant dense<0.000000e+00> : vector<16x16xf32>
    %305 = tpu.matmul %289, %304, %cst_211 {dimension_numbers = #tpu.dot_dimension_numbers<[1], [0], [0], [1], [0, 0, 1, 1], [], []>} : vector<16x8xf32>, vector<8x16xf32>, vector<16x16xf32> -> vector<16x16xf32>
    %cst_212 = arith.constant 0.353553385 : f32
    %306 = vector.broadcast %cst_212 : f32 to vector<16x16xf32>
    %307 = arith.mulf %305, %306 : vector<16x16xf32>
    %308 = arith.addf %307, %5 : vector<16x16xf32>
    %cst_213 = arith.constant dense<0xFF800000> : vector<16xf32>
    %309 = vector.multi_reduction <maximumf>, %308, %cst_213 [1] : vector<16x16xf32> to vector<16xf32>
    %310 = vector.shape_cast %309 : vector<16xf32> to vector<16x1xf32>
    %311 = vector.broadcast %310 : vector<16x1xf32> to vector<16x16xf32>
    %312 = arith.subf %308, %311 : vector<16x16xf32>
    %313 = math.exp %312 : vector<16x16xf32>
    %cst_214 = arith.constant dense<0.000000e+00> : vector<16xf32>
    %314 = vector.multi_reduction <add>, %313, %cst_214 [1] : vector<16x16xf32> to vector<16xf32>
    %315 = vector.shape_cast %314 : vector<16xf32> to vector<16x1xf32>
    %316 = tpu.reciprocal %315 {approx = true} : vector<16x1xf32> -> vector<16x1xf32>
    %317 = vector.broadcast %316 : vector<16x1xf32> to vector<16x16xf32>
    %318 = arith.mulf %313, %317 : vector<16x16xf32>
    %cst_215 = arith.constant dense<0.000000e+00> : vector<16x8xf32>
    %319 = tpu.matmul %318, %303, %cst_215 {dimension_numbers = #tpu.dot_dimension_numbers<[1], [0], [0], [1], [0, 0, 1, 1], [], []>} : vector<16x16xf32>, vector<16x8xf32>, vector<16x8xf32> -> vector<16x8xf32>
    %c5_216 = arith.constant 5 : index
    %c0_217 = arith.constant 0 : index
    %c0_218 = arith.constant 0 : index
    %320 = vector.load %arg12[%c5_216, %c0_217, %c0_218] : memref<8x8x32xf32, #tpu.memory_space<vmem>>, vector<1x8x32xf32>
    %321 = vector.shape_cast %320 : vector<1x8x32xf32> to vector<8x32xf32>
    %cst_219 = arith.constant dense<0.000000e+00> : vector<16x32xf32>
    %322 = tpu.matmul %319, %321, %cst_219 {dimension_numbers = #tpu.dot_dimension_numbers<[1], [0], [0], [1], [0, 0, 1, 1], [], []>} : vector<16x8xf32>, vector<8x32xf32>, vector<16x32xf32> -> vector<16x32xf32>
    %323 = arith.addf %282, %322 : vector<16x32xf32>
    %c6 = arith.constant 6 : index
    %c0_220 = arith.constant 0 : index
    %c0_221 = arith.constant 0 : index
    %324 = vector.load %arg6[%c6, %c0_220, %c0_221] : memref<8x32x8xf32, #tpu.memory_space<vmem>>, vector<1x32x8xf32>
    %325 = vector.shape_cast %324 : vector<1x32x8xf32> to vector<32x8xf32>
    %cst_222 = arith.constant dense<0.000000e+00> : vector<16x8xf32>
    %326 = tpu.matmul %242, %325, %cst_222 {dimension_numbers = #tpu.dot_dimension_numbers<[1], [0], [0], [1], [0, 0, 1, 1], [], []>} : vector<16x32xf32>, vector<32x8xf32>, vector<16x8xf32> -> vector<16x8xf32>
    %c6_223 = arith.constant 6 : index
    %c0_224 = arith.constant 0 : index
    %c0_225 = arith.constant 0 : index
    %327 = vector.load %arg7[%c6_223, %c0_224, %c0_225] : memref<8x1x8xf32, #tpu.memory_space<vmem>>, vector<1x1x8xf32>
    %328 = vector.shape_cast %327 : vector<1x1x8xf32> to vector<1x8xf32>
    %329 = vector.broadcast %328 : vector<1x8xf32> to vector<16x8xf32>
    %330 = arith.addf %326, %329 : vector<16x8xf32>
    %c6_226 = arith.constant 6 : index
    %c0_227 = arith.constant 0 : index
    %c0_228 = arith.constant 0 : index
    %331 = vector.load %arg8[%c6_226, %c0_227, %c0_228] : memref<8x32x8xf32, #tpu.memory_space<vmem>>, vector<1x32x8xf32>
    %332 = vector.shape_cast %331 : vector<1x32x8xf32> to vector<32x8xf32>
    %cst_229 = arith.constant dense<0.000000e+00> : vector<16x8xf32>
    %333 = tpu.matmul %242, %332, %cst_229 {dimension_numbers = #tpu.dot_dimension_numbers<[1], [0], [0], [1], [0, 0, 1, 1], [], []>} : vector<16x32xf32>, vector<32x8xf32>, vector<16x8xf32> -> vector<16x8xf32>
    %c6_230 = arith.constant 6 : index
    %c0_231 = arith.constant 0 : index
    %c0_232 = arith.constant 0 : index
    %334 = vector.load %arg9[%c6_230, %c0_231, %c0_232] : memref<8x1x8xf32, #tpu.memory_space<vmem>>, vector<1x1x8xf32>
    %335 = vector.shape_cast %334 : vector<1x1x8xf32> to vector<1x8xf32>
    %336 = vector.broadcast %335 : vector<1x8xf32> to vector<16x8xf32>
    %337 = arith.addf %333, %336 : vector<16x8xf32>
    %c6_233 = arith.constant 6 : index
    %c0_234 = arith.constant 0 : index
    %c0_235 = arith.constant 0 : index
    %338 = vector.load %arg10[%c6_233, %c0_234, %c0_235] : memref<8x32x8xf32, #tpu.memory_space<vmem>>, vector<1x32x8xf32>
    %339 = vector.shape_cast %338 : vector<1x32x8xf32> to vector<32x8xf32>
    %cst_236 = arith.constant dense<0.000000e+00> : vector<16x8xf32>
    %340 = tpu.matmul %242, %339, %cst_236 {dimension_numbers = #tpu.dot_dimension_numbers<[1], [0], [0], [1], [0, 0, 1, 1], [], []>} : vector<16x32xf32>, vector<32x8xf32>, vector<16x8xf32> -> vector<16x8xf32>
    %c6_237 = arith.constant 6 : index
    %c0_238 = arith.constant 0 : index
    %c0_239 = arith.constant 0 : index
    %341 = vector.load %arg11[%c6_237, %c0_238, %c0_239] : memref<8x1x8xf32, #tpu.memory_space<vmem>>, vector<1x1x8xf32>
    %342 = vector.shape_cast %341 : vector<1x1x8xf32> to vector<1x8xf32>
    %343 = vector.broadcast %342 : vector<1x8xf32> to vector<16x8xf32>
    %344 = arith.addf %340, %343 : vector<16x8xf32>
    %345 = tpu.transpose %337, [1, 0] : vector<16x8xf32> -> vector<8x16xf32>
    %cst_240 = arith.constant dense<0.000000e+00> : vector<16x16xf32>
    %346 = tpu.matmul %330, %345, %cst_240 {dimension_numbers = #tpu.dot_dimension_numbers<[1], [0], [0], [1], [0, 0, 1, 1], [], []>} : vector<16x8xf32>, vector<8x16xf32>, vector<16x16xf32> -> vector<16x16xf32>
    %cst_241 = arith.constant 0.353553385 : f32
    %347 = vector.broadcast %cst_241 : f32 to vector<16x16xf32>
    %348 = arith.mulf %346, %347 : vector<16x16xf32>
    %349 = arith.addf %348, %5 : vector<16x16xf32>
    %cst_242 = arith.constant dense<0xFF800000> : vector<16xf32>
    %350 = vector.multi_reduction <maximumf>, %349, %cst_242 [1] : vector<16x16xf32> to vector<16xf32>
    %351 = vector.shape_cast %350 : vector<16xf32> to vector<16x1xf32>
    %352 = vector.broadcast %351 : vector<16x1xf32> to vector<16x16xf32>
    %353 = arith.subf %349, %352 : vector<16x16xf32>
    %354 = math.exp %353 : vector<16x16xf32>
    %cst_243 = arith.constant dense<0.000000e+00> : vector<16xf32>
    %355 = vector.multi_reduction <add>, %354, %cst_243 [1] : vector<16x16xf32> to vector<16xf32>
    %356 = vector.shape_cast %355 : vector<16xf32> to vector<16x1xf32>
    %357 = tpu.reciprocal %356 {approx = true} : vector<16x1xf32> -> vector<16x1xf32>
    %358 = vector.broadcast %357 : vector<16x1xf32> to vector<16x16xf32>
    %359 = arith.mulf %354, %358 : vector<16x16xf32>
    %cst_244 = arith.constant dense<0.000000e+00> : vector<16x8xf32>
    %360 = tpu.matmul %359, %344, %cst_244 {dimension_numbers = #tpu.dot_dimension_numbers<[1], [0], [0], [1], [0, 0, 1, 1], [], []>} : vector<16x16xf32>, vector<16x8xf32>, vector<16x8xf32> -> vector<16x8xf32>
    %c6_245 = arith.constant 6 : index
    %c0_246 = arith.constant 0 : index
    %c0_247 = arith.constant 0 : index
    %361 = vector.load %arg12[%c6_245, %c0_246, %c0_247] : memref<8x8x32xf32, #tpu.memory_space<vmem>>, vector<1x8x32xf32>
    %362 = vector.shape_cast %361 : vector<1x8x32xf32> to vector<8x32xf32>
    %cst_248 = arith.constant dense<0.000000e+00> : vector<16x32xf32>
    %363 = tpu.matmul %360, %362, %cst_248 {dimension_numbers = #tpu.dot_dimension_numbers<[1], [0], [0], [1], [0, 0, 1, 1], [], []>} : vector<16x8xf32>, vector<8x32xf32>, vector<16x32xf32> -> vector<16x32xf32>
    %364 = arith.addf %323, %363 : vector<16x32xf32>
    %c7 = arith.constant 7 : index
    %c0_249 = arith.constant 0 : index
    %c0_250 = arith.constant 0 : index
    %365 = vector.load %arg6[%c7, %c0_249, %c0_250] : memref<8x32x8xf32, #tpu.memory_space<vmem>>, vector<1x32x8xf32>
    %366 = vector.shape_cast %365 : vector<1x32x8xf32> to vector<32x8xf32>
    %cst_251 = arith.constant dense<0.000000e+00> : vector<16x8xf32>
    %367 = tpu.matmul %242, %366, %cst_251 {dimension_numbers = #tpu.dot_dimension_numbers<[1], [0], [0], [1], [0, 0, 1, 1], [], []>} : vector<16x32xf32>, vector<32x8xf32>, vector<16x8xf32> -> vector<16x8xf32>
    %c7_252 = arith.constant 7 : index
    %c0_253 = arith.constant 0 : index
    %c0_254 = arith.constant 0 : index
    %368 = vector.load %arg7[%c7_252, %c0_253, %c0_254] : memref<8x1x8xf32, #tpu.memory_space<vmem>>, vector<1x1x8xf32>
    %369 = vector.shape_cast %368 : vector<1x1x8xf32> to vector<1x8xf32>
    %370 = vector.broadcast %369 : vector<1x8xf32> to vector<16x8xf32>
    %371 = arith.addf %367, %370 : vector<16x8xf32>
    %c7_255 = arith.constant 7 : index
    %c0_256 = arith.constant 0 : index
    %c0_257 = arith.constant 0 : index
    %372 = vector.load %arg8[%c7_255, %c0_256, %c0_257] : memref<8x32x8xf32, #tpu.memory_space<vmem>>, vector<1x32x8xf32>
    %373 = vector.shape_cast %372 : vector<1x32x8xf32> to vector<32x8xf32>
    %cst_258 = arith.constant dense<0.000000e+00> : vector<16x8xf32>
    %374 = tpu.matmul %242, %373, %cst_258 {dimension_numbers = #tpu.dot_dimension_numbers<[1], [0], [0], [1], [0, 0, 1, 1], [], []>} : vector<16x32xf32>, vector<32x8xf32>, vector<16x8xf32> -> vector<16x8xf32>
    %c7_259 = arith.constant 7 : index
    %c0_260 = arith.constant 0 : index
    %c0_261 = arith.constant 0 : index
    %375 = vector.load %arg9[%c7_259, %c0_260, %c0_261] : memref<8x1x8xf32, #tpu.memory_space<vmem>>, vector<1x1x8xf32>
    %376 = vector.shape_cast %375 : vector<1x1x8xf32> to vector<1x8xf32>
    %377 = vector.broadcast %376 : vector<1x8xf32> to vector<16x8xf32>
    %378 = arith.addf %374, %377 : vector<16x8xf32>
    %c7_262 = arith.constant 7 : index
    %c0_263 = arith.constant 0 : index
    %c0_264 = arith.constant 0 : index
    %379 = vector.load %arg10[%c7_262, %c0_263, %c0_264] : memref<8x32x8xf32, #tpu.memory_space<vmem>>, vector<1x32x8xf32>
    %380 = vector.shape_cast %379 : vector<1x32x8xf32> to vector<32x8xf32>
    %cst_265 = arith.constant dense<0.000000e+00> : vector<16x8xf32>
    %381 = tpu.matmul %242, %380, %cst_265 {dimension_numbers = #tpu.dot_dimension_numbers<[1], [0], [0], [1], [0, 0, 1, 1], [], []>} : vector<16x32xf32>, vector<32x8xf32>, vector<16x8xf32> -> vector<16x8xf32>
    %c7_266 = arith.constant 7 : index
    %c0_267 = arith.constant 0 : index
    %c0_268 = arith.constant 0 : index
    %382 = vector.load %arg11[%c7_266, %c0_267, %c0_268] : memref<8x1x8xf32, #tpu.memory_space<vmem>>, vector<1x1x8xf32>
    %383 = vector.shape_cast %382 : vector<1x1x8xf32> to vector<1x8xf32>
    %384 = vector.broadcast %383 : vector<1x8xf32> to vector<16x8xf32>
    %385 = arith.addf %381, %384 : vector<16x8xf32>
    %386 = tpu.transpose %378, [1, 0] : vector<16x8xf32> -> vector<8x16xf32>
    %cst_269 = arith.constant dense<0.000000e+00> : vector<16x16xf32>
    %387 = tpu.matmul %371, %386, %cst_269 {dimension_numbers = #tpu.dot_dimension_numbers<[1], [0], [0], [1], [0, 0, 1, 1], [], []>} : vector<16x8xf32>, vector<8x16xf32>, vector<16x16xf32> -> vector<16x16xf32>
    %cst_270 = arith.constant 0.353553385 : f32
    %388 = vector.broadcast %cst_270 : f32 to vector<16x16xf32>
    %389 = arith.mulf %387, %388 : vector<16x16xf32>
    %390 = arith.addf %389, %5 : vector<16x16xf32>
    %cst_271 = arith.constant dense<0xFF800000> : vector<16xf32>
    %391 = vector.multi_reduction <maximumf>, %390, %cst_271 [1] : vector<16x16xf32> to vector<16xf32>
    %392 = vector.shape_cast %391 : vector<16xf32> to vector<16x1xf32>
    %393 = vector.broadcast %392 : vector<16x1xf32> to vector<16x16xf32>
    %394 = arith.subf %390, %393 : vector<16x16xf32>
    %395 = math.exp %394 : vector<16x16xf32>
    %cst_272 = arith.constant dense<0.000000e+00> : vector<16xf32>
    %396 = vector.multi_reduction <add>, %395, %cst_272 [1] : vector<16x16xf32> to vector<16xf32>
    %397 = vector.shape_cast %396 : vector<16xf32> to vector<16x1xf32>
    %398 = tpu.reciprocal %397 {approx = true} : vector<16x1xf32> -> vector<16x1xf32>
    %399 = vector.broadcast %398 : vector<16x1xf32> to vector<16x16xf32>
    %400 = arith.mulf %395, %399 : vector<16x16xf32>
    %cst_273 = arith.constant dense<0.000000e+00> : vector<16x8xf32>
    %401 = tpu.matmul %400, %385, %cst_273 {dimension_numbers = #tpu.dot_dimension_numbers<[1], [0], [0], [1], [0, 0, 1, 1], [], []>} : vector<16x16xf32>, vector<16x8xf32>, vector<16x8xf32> -> vector<16x8xf32>
    %c7_274 = arith.constant 7 : index
    %c0_275 = arith.constant 0 : index
    %c0_276 = arith.constant 0 : index
    %402 = vector.load %arg12[%c7_274, %c0_275, %c0_276] : memref<8x8x32xf32, #tpu.memory_space<vmem>>, vector<1x8x32xf32>
    %403 = vector.shape_cast %402 : vector<1x8x32xf32> to vector<8x32xf32>
    %cst_277 = arith.constant dense<0.000000e+00> : vector<16x32xf32>
    %404 = tpu.matmul %401, %403, %cst_277 {dimension_numbers = #tpu.dot_dimension_numbers<[1], [0], [0], [1], [0, 0, 1, 1], [], []>} : vector<16x8xf32>, vector<8x32xf32>, vector<16x32xf32> -> vector<16x32xf32>
    %405 = arith.addf %364, %404 : vector<16x32xf32>
    %c1_278 = arith.constant 1 : index
    %c0_279 = arith.constant 0 : index
    %c0_280 = arith.constant 0 : index
    %406 = vector.load %arg13[%c1_278, %c0_279, %c0_280] : memref<2x1x32xf32, #tpu.memory_space<vmem>>, vector<1x1x32xf32>
    %407 = vector.shape_cast %406 : vector<1x1x32xf32> to vector<1x32xf32>
    %408 = vector.broadcast %407 : vector<1x32xf32> to vector<16x32xf32>
    %409 = arith.addf %405, %408 : vector<16x32xf32>
    %410 = arith.addf %242, %409 : vector<16x32xf32>
    %c1_281 = arith.constant 1 : index
    %c0_282 = arith.constant 0 : index
    %c0_283 = arith.constant 0 : index
    %411 = vector.load %arg14[%c1_281, %c0_282, %c0_283] : memref<2x1x32xf32, #tpu.memory_space<vmem>>, vector<1x1x32xf32>
    %412 = vector.shape_cast %411 : vector<1x1x32xf32> to vector<1x32xf32>
    %c1_284 = arith.constant 1 : index
    %c0_285 = arith.constant 0 : index
    %c0_286 = arith.constant 0 : index
    %413 = vector.load %arg15[%c1_284, %c0_285, %c0_286] : memref<2x1x32xf32, #tpu.memory_space<vmem>>, vector<1x1x32xf32>
    %414 = vector.shape_cast %413 : vector<1x1x32xf32> to vector<1x32xf32>
    %cst_287 = arith.constant dense<0.000000e+00> : vector<16xf32>
    %415 = vector.multi_reduction <add>, %410, %cst_287 [1] : vector<16x32xf32> to vector<16xf32>
    %416 = vector.shape_cast %415 : vector<16xf32> to vector<16x1xf32>
    %cst_288 = arith.constant 3.200000e+01 : f32
    %417 = vector.broadcast %cst_288 : f32 to vector<16x1xf32>
    %418 = arith.divf %416, %417 : vector<16x1xf32>
    %419 = vector.broadcast %418 : vector<16x1xf32> to vector<16x32xf32>
    %420 = arith.subf %410, %419 : vector<16x32xf32>
    %421 = arith.mulf %420, %420 : vector<16x32xf32>
    %cst_289 = arith.constant dense<0.000000e+00> : vector<16xf32>
    %422 = vector.multi_reduction <add>, %421, %cst_289 [1] : vector<16x32xf32> to vector<16xf32>
    %423 = vector.shape_cast %422 : vector<16xf32> to vector<16x1xf32>
    %cst_290 = arith.constant 3.200000e+01 : f32
    %424 = vector.broadcast %cst_290 : f32 to vector<16x1xf32>
    %425 = arith.divf %423, %424 : vector<16x1xf32>
    %426 = vector.broadcast %418 : vector<16x1xf32> to vector<16x32xf32>
    %427 = arith.subf %410, %426 : vector<16x32xf32>
    %cst_291 = arith.constant 9.99999974E-6 : f32
    %428 = vector.broadcast %cst_291 : f32 to vector<16x1xf32>
    %429 = arith.addf %425, %428 : vector<16x1xf32>
    %430 = math.rsqrt %429 : vector<16x1xf32>
    %431 = vector.broadcast %430 : vector<16x1xf32> to vector<16x32xf32>
    %432 = arith.mulf %427, %431 : vector<16x32xf32>
    %433 = vector.broadcast %412 : vector<1x32xf32> to vector<16x32xf32>
    %434 = arith.mulf %432, %433 : vector<16x32xf32>
    %435 = vector.broadcast %414 : vector<1x32xf32> to vector<16x32xf32>
    %436 = arith.addf %434, %435 : vector<16x32xf32>
    %c1_292 = arith.constant 1 : index
    %c0_293 = arith.constant 0 : index
    %c0_294 = arith.constant 0 : index
    %437 = vector.load %arg16[%c1_292, %c0_293, %c0_294] : memref<2x32x64xf32, #tpu.memory_space<vmem>>, vector<1x32x64xf32>
    %438 = vector.shape_cast %437 : vector<1x32x64xf32> to vector<32x64xf32>
    %cst_295 = arith.constant dense<0.000000e+00> : vector<16x64xf32>
    %439 = tpu.matmul %436, %438, %cst_295 {dimension_numbers = #tpu.dot_dimension_numbers<[1], [0], [0], [1], [0, 0, 1, 1], [], []>} : vector<16x32xf32>, vector<32x64xf32>, vector<16x64xf32> -> vector<16x64xf32>
    %c1_296 = arith.constant 1 : index
    %c0_297 = arith.constant 0 : index
    %c0_298 = arith.constant 0 : index
    %440 = vector.load %arg17[%c1_296, %c0_297, %c0_298] : memref<2x1x64xf32, #tpu.memory_space<vmem>>, vector<1x1x64xf32>
    %441 = vector.shape_cast %440 : vector<1x1x64xf32> to vector<1x64xf32>
    %442 = vector.broadcast %441 : vector<1x64xf32> to vector<16x64xf32>
    %443 = arith.addf %439, %442 : vector<16x64xf32>
    %cst_299 = arith.constant 0.000000e+00 : f32
    %444 = vector.broadcast %cst_299 : f32 to vector<16x64xf32>
    %445 = arith.maximumf %443, %444 : vector<16x64xf32>
    %c1_300 = arith.constant 1 : index
    %c0_301 = arith.constant 0 : index
    %c0_302 = arith.constant 0 : index
    %446 = vector.load %arg18[%c1_300, %c0_301, %c0_302] : memref<2x64x32xf32, #tpu.memory_space<vmem>>, vector<1x64x32xf32>
    %447 = vector.shape_cast %446 : vector<1x64x32xf32> to vector<64x32xf32>
    %cst_303 = arith.constant dense<0.000000e+00> : vector<16x32xf32>
    %448 = tpu.matmul %445, %447, %cst_303 {dimension_numbers = #tpu.dot_dimension_numbers<[1], [0], [0], [1], [0, 0, 1, 1], [], []>} : vector<16x64xf32>, vector<64x32xf32>, vector<16x32xf32> -> vector<16x32xf32>
    %c1_304 = arith.constant 1 : index
    %c0_305 = arith.constant 0 : index
    %c0_306 = arith.constant 0 : index
    %449 = vector.load %arg19[%c1_304, %c0_305, %c0_306] : memref<2x1x32xf32, #tpu.memory_space<vmem>>, vector<1x1x32xf32>
    %450 = vector.shape_cast %449 : vector<1x1x32xf32> to vector<1x32xf32>
    %451 = vector.broadcast %450 : vector<1x32xf32> to vector<16x32xf32>
    %452 = arith.addf %448, %451 : vector<16x32xf32>
    %453 = arith.addf %436, %452 : vector<16x32xf32>
    %c1_307 = arith.constant 1 : index
    %c0_308 = arith.constant 0 : index
    %c0_309 = arith.constant 0 : index
    %454 = vector.load %arg20[%c1_307, %c0_308, %c0_309] : memref<2x1x32xf32, #tpu.memory_space<vmem>>, vector<1x1x32xf32>
    %455 = vector.shape_cast %454 : vector<1x1x32xf32> to vector<1x32xf32>
    %c1_310 = arith.constant 1 : index
    %c0_311 = arith.constant 0 : index
    %c0_312 = arith.constant 0 : index
    %456 = vector.load %arg21[%c1_310, %c0_311, %c0_312] : memref<2x1x32xf32, #tpu.memory_space<vmem>>, vector<1x1x32xf32>
    %457 = vector.shape_cast %456 : vector<1x1x32xf32> to vector<1x32xf32>
    %cst_313 = arith.constant dense<0.000000e+00> : vector<16xf32>
    %458 = vector.multi_reduction <add>, %453, %cst_313 [1] : vector<16x32xf32> to vector<16xf32>
    %459 = vector.shape_cast %458 : vector<16xf32> to vector<16x1xf32>
    %cst_314 = arith.constant 3.200000e+01 : f32
    %460 = vector.broadcast %cst_314 : f32 to vector<16x1xf32>
    %461 = arith.divf %459, %460 : vector<16x1xf32>
    %462 = vector.broadcast %461 : vector<16x1xf32> to vector<16x32xf32>
    %463 = arith.subf %453, %462 : vector<16x32xf32>
    %464 = arith.mulf %463, %463 : vector<16x32xf32>
    %cst_315 = arith.constant dense<0.000000e+00> : vector<16xf32>
    %465 = vector.multi_reduction <add>, %464, %cst_315 [1] : vector<16x32xf32> to vector<16xf32>
    %466 = vector.shape_cast %465 : vector<16xf32> to vector<16x1xf32>
    %cst_316 = arith.constant 3.200000e+01 : f32
    %467 = vector.broadcast %cst_316 : f32 to vector<16x1xf32>
    %468 = arith.divf %466, %467 : vector<16x1xf32>
    %469 = vector.broadcast %461 : vector<16x1xf32> to vector<16x32xf32>
    %470 = arith.subf %453, %469 : vector<16x32xf32>
    %cst_317 = arith.constant 9.99999974E-6 : f32
    %471 = vector.broadcast %cst_317 : f32 to vector<16x1xf32>
    %472 = arith.addf %468, %471 : vector<16x1xf32>
    %473 = math.rsqrt %472 : vector<16x1xf32>
    %474 = vector.broadcast %473 : vector<16x1xf32> to vector<16x32xf32>
    %475 = arith.mulf %470, %474 : vector<16x32xf32>
    %476 = vector.broadcast %455 : vector<1x32xf32> to vector<16x32xf32>
    %477 = arith.mulf %475, %476 : vector<16x32xf32>
    %478 = vector.broadcast %457 : vector<1x32xf32> to vector<16x32xf32>
    %479 = arith.addf %477, %478 : vector<16x32xf32>
    %c0_318 = arith.constant 0 : index
    %c0_319 = arith.constant 0 : index
    %480 = vector.load %arg22[%c0_318, %c0_319] : memref<32x32xf32, #tpu.memory_space<vmem>>, vector<32x32xf32>
    %cst_320 = arith.constant dense<0.000000e+00> : vector<16x32xf32>
    %481 = tpu.matmul %479, %480, %cst_320 {dimension_numbers = #tpu.dot_dimension_numbers<[1], [0], [0], [1], [0, 0, 1, 1], [], []>} : vector<16x32xf32>, vector<32x32xf32>, vector<16x32xf32> -> vector<16x32xf32>
    %c0_321 = arith.constant 0 : index
    %c0_322 = arith.constant 0 : index
    %482 = vector.load %arg23[%c0_321, %c0_322] : memref<1x32xf32, #tpu.memory_space<vmem>>, vector<1x32xf32>
    %483 = vector.broadcast %482 : vector<1x32xf32> to vector<16x32xf32>
    %484 = arith.addf %481, %483 : vector<16x32xf32>
    %cst_323 = arith.constant 0.000000e+00 : f32
    %485 = vector.broadcast %cst_323 : f32 to vector<16x32xf32>
    %486 = arith.maximumf %484, %485 : vector<16x32xf32>
    %c0_324 = arith.constant 0 : index
    %c0_325 = arith.constant 0 : index
    %487 = vector.load %arg24[%c0_324, %c0_325] : memref<32x4xf32, #tpu.memory_space<vmem>>, vector<32x4xf32>
    %cst_326 = arith.constant dense<0.000000e+00> : vector<16x4xf32>
    %488 = tpu.matmul %486, %487, %cst_326 {dimension_numbers = #tpu.dot_dimension_numbers<[1], [0], [0], [1], [0, 0, 1, 1], [], []>} : vector<16x32xf32>, vector<32x4xf32>, vector<16x4xf32> -> vector<16x4xf32>
    %c0_327 = arith.constant 0 : index
    %c0_328 = arith.constant 0 : index
    %489 = vector.load %arg25[%c0_327, %c0_328] : memref<1x4xf32, #tpu.memory_space<vmem>>, vector<1x4xf32>
    %490 = vector.broadcast %489 : vector<1x4xf32> to vector<16x4xf32>
    %491 = arith.addf %488, %490 : vector<16x4xf32>
    %c0_329 = arith.constant 0 : index
    %c0_330 = arith.constant 0 : index
    %492 = vector.load %arg5[%c0_329, %c0_330] : memref<2x16xf32, #tpu.memory_space<vmem>>, vector<2x16xf32>
    %cst_331 = arith.constant dense<0.000000e+00> : vector<2x32xf32>
    %493 = tpu.matmul %492, %486, %cst_331 {dimension_numbers = #tpu.dot_dimension_numbers<[1], [0], [0], [1], [0, 0, 1, 1], [], []>} : vector<2x16xf32>, vector<16x32xf32>, vector<2x32xf32> -> vector<2x32xf32>
    %c0_332 = arith.constant 0 : index
    %c0_333 = arith.constant 0 : index
    %494 = vector.load %arg27[%c0_332, %c0_333] : memref<2x32xf32, #tpu.memory_space<vmem>>, vector<2x32xf32>
    tpu.vector_store %arg27[%c0_332, %c0_333], %493 {strides = array<i32>} : memref<2x32xf32, #tpu.memory_space<vmem>>, vector<2x32xf32>,
    %c0_334 = arith.constant 0 : index
    %c0_335 = arith.constant 0 : index
    %495 = vector.load %arg4[%c0_334, %c0_335] : memref<2x16xf32, #tpu.memory_space<vmem>>, vector<2x16xf32>
    %cst_336 = arith.constant dense<0.000000e+00> : vector<2x4xf32>
    %496 = tpu.matmul %495, %491, %cst_336 {dimension_numbers = #tpu.dot_dimension_numbers<[1], [0], [0], [1], [0, 0, 1, 1], [], []>} : vector<2x16xf32>, vector<16x4xf32>, vector<2x4xf32> -> vector<2x4xf32>
    %c0_337 = arith.constant 0 : index
    %c0_338 = arith.constant 0 : index
    %497 = vector.load %arg26[%c0_337, %c0_338] : memref<2x4xf32, #tpu.memory_space<vmem>>, vector<2x4xf32>
    tpu.vector_store %arg26[%c0_337, %c0_338], %496 {strides = array<i32>} : memref<2x4xf32, #tpu.memory_space<vmem>>, vector<2x4xf32>,
    return
  }
  func.func @transform_0(%arg0: i32) -> (i32, i32) {
    %c0_i32 = arith.constant 0 : i32
    %c0_i32_0 = arith.constant 0 : i32
    %c0_i32_1 = arith.constant 0 : i32
    return %c0_i32, %c0_i32_0 : i32, i32
  }
  func.func @transform_1(%arg0: i32) -> (i32, i32) {
    %c0_i32 = arith.constant 0 : i32
    %c0_i32_0 = arith.constant 0 : i32
    %c0_i32_1 = arith.constant 0 : i32
    return %c0_i32, %c0_i32_0 : i32, i32
  }
  func.func @transform_2(%arg0: i32) -> (i32, i32) {
    %c0_i32 = arith.constant 0 : i32
    %c0_i32_0 = arith.constant 0 : i32
    %c0_i32_1 = arith.constant 0 : i32
    return %c0_i32, %c0_i32_0 : i32, i32
  }
  func.func @transform_3(%arg0: i32) -> (i32, i32) {
    %c0_i32 = arith.constant 0 : i32
    %c0_i32_0 = arith.constant 0 : i32
    %c0_i32_1 = arith.constant 0 : i32
    return %c0_i32, %c0_i32_0 : i32, i32
  }
  func.func @transform_4(%arg0: i32) -> (i32, i32) {
    %c0_i32 = arith.constant 0 : i32
    %c0_i32_0 = arith.constant 0 : i32
    %c0_i32_1 = arith.constant 0 : i32
    return %c0_i32, %c0_i32_0 : i32, i32
  }
  func.func @transform_5(%arg0: i32) -> (i32, i32, i32) {
    %c0_i32 = arith.constant 0 : i32
    %c0_i32_0 = arith.constant 0 : i32
    %c0_i32_1 = arith.constant 0 : i32
    %c0_i32_2 = arith.constant 0 : i32
    return %c0_i32, %c0_i32_0, %c0_i32_1 : i32, i32, i32
  }
  func.func @transform_6(%arg0: i32) -> (i32, i32, i32) {
    %c0_i32 = arith.constant 0 : i32
    %c0_i32_0 = arith.constant 0 : i32
    %c0_i32_1 = arith.constant 0 : i32
    %c0_i32_2 = arith.constant 0 : i32
    return %c0_i32, %c0_i32_0, %c0_i32_1 : i32, i32, i32
  }
  func.func @transform_7(%arg0: i32) -> (i32, i32, i32) {
    %c0_i32 = arith.constant 0 : i32
    %c0_i32_0 = arith.constant 0 : i32
    %c0_i32_1 = arith.constant 0 : i32
    %c0_i32_2 = arith.constant 0 : i32
    return %c0_i32, %c0_i32_0, %c0_i32_1 : i32, i32, i32
  }
  func.func @transform_8(%arg0: i32) -> (i32, i32, i32) {
    %c0_i32 = arith.constant 0 : i32
    %c0_i32_0 = arith.constant 0 : i32
    %c0_i32_1 = arith.constant 0 : i32
    %c0_i32_2 = arith.constant 0 : i32
    return %c0_i32, %c0_i32_0, %c0_i32_1 : i32, i32, i32
  }
  func.func @transform_9(%arg0: i32) -> (i32, i32, i32) {
    %c0_i32 = arith.constant 0 : i32
    %c0_i32_0 = arith.constant 0 : i32
    %c0_i32_1 = arith.constant 0 : i32
    %c0_i32_2 = arith.constant 0 : i32
    return %c0_i32, %c0_i32_0, %c0_i32_1 : i32, i32, i32
  }
  func.func @transform_10(%arg0: i32) -> (i32, i32, i32) {
    %c0_i32 = arith.constant 0 : i32
    %c0_i32_0 = arith.constant 0 : i32
    %c0_i32_1 = arith.constant 0 : i32
    %c0_i32_2 = arith.constant 0 : i32
    return %c0_i32, %c0_i32_0, %c0_i32_1 : i32, i32, i32
  }
  func.func @transform_11(%arg0: i32) -> (i32, i32, i32) {
    %c0_i32 = arith.constant 0 : i32
    %c0_i32_0 = arith.constant 0 : i32
    %c0_i32_1 = arith.constant 0 : i32
    %c0_i32_2 = arith.constant 0 : i32
    return %c0_i32, %c0_i32_0, %c0_i32_1 : i32, i32, i32
  }
  func.func @transform_12(%arg0: i32) -> (i32, i32, i32) {
    %c0_i32 = arith.constant 0 : i32
    %c0_i32_0 = arith.constant 0 : i32
    %c0_i32_1 = arith.constant 0 : i32
    %c0_i32_2 = arith.constant 0 : i32
    return %c0_i32, %c0_i32_0, %c0_i32_1 : i32, i32, i32
  }
  func.func @transform_13(%arg0: i32) -> (i32, i32, i32) {
    %c0_i32 = arith.constant 0 : i32
    %c0_i32_0 = arith.constant 0 : i32
    %c0_i32_1 = arith.constant 0 : i32
    %c0_i32_2 = arith.constant 0 : i32
    return %c0_i32, %c0_i32_0, %c0_i32_1 : i32, i32, i32
  }
  func.func @transform_14(%arg0: i32) -> (i32, i32, i32) {
    %c0_i32 = arith.constant 0 : i32
    %c0_i32_0 = arith.constant 0 : i32
    %c0_i32_1 = arith.constant 0 : i32
    %c0_i32_2 = arith.constant 0 : i32
    return %c0_i32, %c0_i32_0, %c0_i32_1 : i32, i32, i32
  }
  func.func @transform_15(%arg0: i32) -> (i32, i32, i32) {
    %c0_i32 = arith.constant 0 : i32
    %c0_i32_0 = arith.constant 0 : i32
    %c0_i32_1 = arith.constant 0 : i32
    %c0_i32_2 = arith.constant 0 : i32
    return %c0_i32, %c0_i32_0, %c0_i32_1 : i32, i32, i32
  }
  func.func @transform_16(%arg0: i32) -> (i32, i32, i32) {
    %c0_i32 = arith.constant 0 : i32
    %c0_i32_0 = arith.constant 0 : i32
    %c0_i32_1 = arith.constant 0 : i32
    %c0_i32_2 = arith.constant 0 : i32
    return %c0_i32, %c0_i32_0, %c0_i32_1 : i32, i32, i32
  }
  func.func @transform_17(%arg0: i32) -> (i32, i32, i32) {
    %c0_i32 = arith.constant 0 : i32
    %c0_i32_0 = arith.constant 0 : i32
    %c0_i32_1 = arith.constant 0 : i32
    %c0_i32_2 = arith.constant 0 : i32
    return %c0_i32, %c0_i32_0, %c0_i32_1 : i32, i32, i32
  }
  func.func @transform_18(%arg0: i32) -> (i32, i32, i32) {
    %c0_i32 = arith.constant 0 : i32
    %c0_i32_0 = arith.constant 0 : i32
    %c0_i32_1 = arith.constant 0 : i32
    %c0_i32_2 = arith.constant 0 : i32
    return %c0_i32, %c0_i32_0, %c0_i32_1 : i32, i32, i32
  }
  func.func @transform_19(%arg0: i32) -> (i32, i32, i32) {
    %c0_i32 = arith.constant 0 : i32
    %c0_i32_0 = arith.constant 0 : i32
    %c0_i32_1 = arith.constant 0 : i32
    %c0_i32_2 = arith.constant 0 : i32
    return %c0_i32, %c0_i32_0, %c0_i32_1 : i32, i32, i32
  }
  func.func @transform_20(%arg0: i32) -> (i32, i32, i32) {
    %c0_i32 = arith.constant 0 : i32
    %c0_i32_0 = arith.constant 0 : i32
    %c0_i32_1 = arith.constant 0 : i32
    %c0_i32_2 = arith.constant 0 : i32
    return %c0_i32, %c0_i32_0, %c0_i32_1 : i32, i32, i32
  }
  func.func @transform_21(%arg0: i32) -> (i32, i32) {
    %c0_i32 = arith.constant 0 : i32
    %c0_i32_0 = arith.constant 0 : i32
    %c0_i32_1 = arith.constant 0 : i32
    return %c0_i32, %c0_i32_0 : i32, i32
  }
  func.func @transform_22(%arg0: i32) -> (i32, i32) {
    %c0_i32 = arith.constant 0 : i32
    %c0_i32_0 = arith.constant 0 : i32
    %c0_i32_1 = arith.constant 0 : i32
    return %c0_i32, %c0_i32_0 : i32, i32
  }
  func.func @transform_23(%arg0: i32) -> (i32, i32) {
    %c0_i32 = arith.constant 0 : i32
    %c0_i32_0 = arith.constant 0 : i32
    %c0_i32_1 = arith.constant 0 : i32
    return %c0_i32, %c0_i32_0 : i32, i32
  }
  func.func @transform_24(%arg0: i32) -> (i32, i32) {
    %c0_i32 = arith.constant 0 : i32
    %c0_i32_0 = arith.constant 0 : i32
    %c0_i32_1 = arith.constant 0 : i32
    return %c0_i32, %c0_i32_0 : i32, i32
  }
  func.func @transform_25(%arg0: i32) -> (i32, i32) {
    %c0_i32 = arith.constant 0 : i32
    %c0_i32_0 = arith.constant 0 : i32
    %c0_i32_1 = arith.constant 0 : i32
    return %c0_i32, %c0_i32_0 : i32, i32
  }
  func.func @transform_26(%arg0: i32) -> (i32, i32) {
    %c0_i32 = arith.constant 0 : i32
    %c0_i32_0 = arith.constant 0 : i32
    %c0_i32_1 = arith.constant 0 : i32
    return %c0_i32, %c0_i32_0 : i32, i32
  }
}

</mosaic_0001>

<llo_original>
// kernel: tpu_custom_call.1
$region0: #{tpu_custom_call.1}
  #allocation0 [shape = 'u32[]', space=smem, size = 0x4, offset = 0x4, fixed_abs, tag = 'smem constant byte address 0x4 - core index']
  #allocation1 [shape = 'u32[72,128]{1,0:T(1,128)}', space=vmem, size = 0x9000, scoped, tag = 'internal scratch']
  %s0 = inlined_call_operand.vmem [shape: f32[16,32], index: 0, kind: input, shape index: {}]
  %s1 = inlined_call_operand.vmem [shape: f32[16,32], index: 1, kind: input, shape index: {}]
  %s2 = inlined_call_operand.vmem [shape: f32[16,16], index: 2, kind: input, shape index: {}]
  %s3 = inlined_call_operand.vmem [shape: f32[2,16], index: 3, kind: input, shape index: {}]
  %s4 = inlined_call_operand.vmem [shape: f32[2,16], index: 4, kind: input, shape index: {}]
  %s5 = inlined_call_operand.vmem [shape: f32[8,32,8], index: 5, kind: input, shape index: {}]
  %s6 = inlined_call_operand.vmem [shape: f32[8,1,8], index: 6, kind: input, shape index: {}]
  %s7 = inlined_call_operand.vmem [shape: f32[8,32,8], index: 7, kind: input, shape index: {}]
  %s8 = inlined_call_operand.vmem [shape: f32[8,1,8], index: 8, kind: input, shape index: {}]
  %s9 = inlined_call_operand.vmem [shape: f32[8,32,8], index: 9, kind: input, shape index: {}]
  %s10 = inlined_call_operand.vmem [shape: f32[8,1,8], index: 10, kind: input, shape index: {}]
  %s11 = inlined_call_operand.vmem [shape: f32[8,8,32], index: 11, kind: input, shape index: {}]
  %s12 = inlined_call_operand.vmem [shape: f32[2,1,32], index: 12, kind: input, shape index: {}]
  %s13 = inlined_call_operand.vmem [shape: f32[2,1,32], index: 13, kind: input, shape index: {}]
  %s14 = inlined_call_operand.vmem [shape: f32[2,1,32], index: 14, kind: input, shape index: {}]
  %s15 = inlined_call_operand.vmem [shape: f32[2,32,64], index: 15, kind: input, shape index: {}]
  %s16 = inlined_call_operand.vmem [shape: f32[2,1,64], index: 16, kind: input, shape index: {}]
  %s17 = inlined_call_operand.vmem [shape: f32[2,64,32], index: 17, kind: input, shape index: {}]
  %s18 = inlined_call_operand.vmem [shape: f32[2,1,32], index: 18, kind: input, shape index: {}]
  %s19 = inlined_call_operand.vmem [shape: f32[2,1,32], index: 19, kind: input, shape index: {}]
  %s20 = inlined_call_operand.vmem [shape: f32[2,1,32], index: 20, kind: input, shape index: {}]
  %s21 = inlined_call_operand.vmem [shape: f32[32,32], index: 21, kind: input, shape index: {}]
  %s22 = inlined_call_operand.vmem [shape: f32[1,32], index: 22, kind: input, shape index: {}]
  %s23 = inlined_call_operand.vmem [shape: f32[32,4], index: 23, kind: input, shape index: {}]
  %s24 = inlined_call_operand.vmem [shape: f32[1,4], index: 24, kind: input, shape index: {}]
  %s25 = inlined_call_operand.hbm [shape: f32[2,4], index: 25, kind: output, shape index: {0}]
  %s26 = inlined_call_operand.hbm [shape: f32[2,32], index: 26, kind: output, shape index: {1}]
  %27 = xla_tuple %s25, %s26
  %s28 = sld [smem:[#allocation0]]
  $region118: #{tpu_custom_call.1} parent=0
    _
  %s30 = ssub.s32 1, %s28
  %s31 = scalar_select 0, %s30, %s28
  $region1: #{tpu_custom_call.1} parent=0
    #allocation2 [shape = 'u8[1024]{0}', space=vmem, size = 0x400, scoped, tag = 'output window, operand 0, single buffered']
    #allocation3 [shape = 's32[1]{0}', space=sflag, size = 0x4, scoped, tag = 'scoped memory for tpu_custom_call.1']
    #allocation4 [shape = 'u8[1024]{0}', space=vmem, size = 0x400, scoped, tag = 'output window, operand 1, single buffered']
    #allocation5 [shape = 's32[1]{0}', space=sflag, size = 0x4, scoped, tag = 'scoped memory for tpu_custom_call.1']
    %32 = vsyncpa [#allocation3], 0
    %33 = vsyncpa [#allocation5], 0
    // Predicated region
    $region2: #{tpu_custom_call.1} parent=1 // pred_check
      _
    $region3: #{tpu_custom_call.1} parent=1 // pred_check_branch
      %35 = sbr.rel (0) target = $region5
    $region4: #{tpu_custom_call.1} parent=1 // pred_region
      _
    $region5: #{tpu_custom_call.1} parent=1 // pred_fallthru
      _
    // Predicated region
    $region6: #{tpu_custom_call.1} parent=1 // pred_check
      _
    $region7: #{tpu_custom_call.1} parent=1 // pred_check_branch
      %37 = sbr.rel (0) target = $region9
    $region8: #{tpu_custom_call.1} parent=1 // pred_region
      _
    $region9: #{tpu_custom_call.1} parent=1 // pred_fallthru
      _
    // Predicated region
    $region10: #{tpu_custom_call.1} parent=1 // pred_check
      _
    $region11: #{tpu_custom_call.1} parent=1 // pred_check_branch
      %39 = sbr.rel (0) target = $region13
    $region12: #{tpu_custom_call.1} parent=1 // pred_region
      _
    $region13: #{tpu_custom_call.1} parent=1 // pred_fallthru
      _
    // Predicated region
    $region14: #{tpu_custom_call.1} parent=1 // pred_check
      _
    $region15: #{tpu_custom_call.1} parent=1 // pred_check_branch
      %41 = sbr.rel (0) target = $region17
    $region16: #{tpu_custom_call.1} parent=1 // pred_region
      _
    $region17: #{tpu_custom_call.1} parent=1 // pred_fallthru
      _
    // Predicated region
    $region18: #{tpu_custom_call.1} parent=1 // pred_check
      _
    $region19: #{tpu_custom_call.1} parent=1 // pred_check_branch
      %43 = sbr.rel (0) target = $region21
    $region20: #{tpu_custom_call.1} parent=1 // pred_region
      _
    $region21: #{tpu_custom_call.1} parent=1 // pred_fallthru
      _
    // Predicated region
    $region22: #{tpu_custom_call.1} parent=1 // pred_check
      _
    $region23: #{tpu_custom_call.1} parent=1 // pred_check_branch
      %45 = sbr.rel (0) target = $region25
    $region24: #{tpu_custom_call.1} parent=1 // pred_region
      _
    $region25: #{tpu_custom_call.1} parent=1 // pred_fallthru
      _
    // Predicated region
    $region26: #{tpu_custom_call.1} parent=1 // pred_check
      _
    $region27: #{tpu_custom_call.1} parent=1 // pred_check_branch
      %47 = sbr.rel (0) target = $region29
    $region28: #{tpu_custom_call.1} parent=1 // pred_region
      _
    $region29: #{tpu_custom_call.1} parent=1 // pred_fallthru
      _
    // Predicated region
    $region30: #{tpu_custom_call.1} parent=1 // pred_check
      _
    $region31: #{tpu_custom_call.1} parent=1 // pred_check_branch
      %49 = sbr.rel (0) target = $region33
    $region32: #{tpu_custom_call.1} parent=1 // pred_region
      _
    $region33: #{tpu_custom_call.1} parent=1 // pred_fallthru
      _
    // Predicated region
    $region34: #{tpu_custom_call.1} parent=1 // pred_check
      _
    $region35: #{tpu_custom_call.1} parent=1 // pred_check_branch
      %51 = sbr.rel (0) target = $region37
    $region36: #{tpu_custom_call.1} parent=1 // pred_region
      _
    $region37: #{tpu_custom_call.1} parent=1 // pred_fallthru
      _
    // Predicated region
    $region38: #{tpu_custom_call.1} parent=1 // pred_check
      _
    $region39: #{tpu_custom_call.1} parent=1 // pred_check_branch
      %53 = sbr.rel (0) target = $region41
    $region40: #{tpu_custom_call.1} parent=1 // pred_region
      _
    $region41: #{tpu_custom_call.1} parent=1 // pred_fallthru
      _
    // Predicated region
    $region42: #{tpu_custom_call.1} parent=1 // pred_check
      _
    $region43: #{tpu_custom_call.1} parent=1 // pred_check_branch
      %55 = sbr.rel (0) target = $region45
    $region44: #{tpu_custom_call.1} parent=1 // pred_region
      _
    $region45: #{tpu_custom_call.1} parent=1 // pred_fallthru
      _
    // Predicated region
    $region46: #{tpu_custom_call.1} parent=1 // pred_check
      _
    $region47: #{tpu_custom_call.1} parent=1 // pred_check_branch
      %57 = sbr.rel (0) target = $region49
    $region48: #{tpu_custom_call.1} parent=1 // pred_region
      _
    $region49: #{tpu_custom_call.1} parent=1 // pred_fallthru
      _
    // Predicated region
    $region50: #{tpu_custom_call.1} parent=1 // pred_check
      _
    $region51: #{tpu_custom_call.1} parent=1 // pred_check_branch
      %59 = sbr.rel (0) target = $region53
    $region52: #{tpu_custom_call.1} parent=1 // pred_region
      _
    $region53: #{tpu_custom_call.1} parent=1 // pred_fallthru
      _
    // Predicated region
    $region54: #{tpu_custom_call.1} parent=1 // pred_check
      _
    $region55: #{tpu_custom_call.1} parent=1 // pred_check_branch
      %61 = sbr.rel (0) target = $region57
    $region56: #{tpu_custom_call.1} parent=1 // pred_region
      _
    $region57: #{tpu_custom_call.1} parent=1 // pred_fallthru
      _
    // Predicated region
    $region58: #{tpu_custom_call.1} parent=1 // pred_check
      _
    $region59: #{tpu_custom_call.1} parent=1 // pred_check_branch
      %63 = sbr.rel (0) target = $region61
    $region60: #{tpu_custom_call.1} parent=1 // pred_region
      _
    $region61: #{tpu_custom_call.1} parent=1 // pred_fallthru
      _
    // Predicated region
    $region62: #{tpu_custom_call.1} parent=1 // pred_check
      _
    $region63: #{tpu_custom_call.1} parent=1 // pred_check_branch
      %65 = sbr.rel (0) target = $region65
    $region64: #{tpu_custom_call.1} parent=1 // pred_region
      _
    $region65: #{tpu_custom_call.1} parent=1 // pred_fallthru
      _
    // Predicated region
    $region66: #{tpu_custom_call.1} parent=1 // pred_check
      _
    $region67: #{tpu_custom_call.1} parent=1 // pred_check_branch
      %67 = sbr.rel (0) target = $region69
    $region68: #{tpu_custom_call.1} parent=1 // pred_region
      _
    $region69: #{tpu_custom_call.1} parent=1 // pred_fallthru
      _
    // Predicated region
    $region70: #{tpu_custom_call.1} parent=1 // pred_check
      _
    $region71: #{tpu_custom_call.1} parent=1 // pred_check_branch
      %69 = sbr.rel (0) target = $region73
    $region72: #{tpu_custom_call.1} parent=1 // pred_region
      _
    $region73: #{tpu_custom_call.1} parent=1 // pred_fallthru
      _
    // Predicated region
    $region74: #{tpu_custom_call.1} parent=1 // pred_check
      _
    $region75: #{tpu_custom_call.1} parent=1 // pred_check_branch
      %71 = sbr.rel (0) target = $region77
    $region76: #{tpu_custom_call.1} parent=1 // pred_region
      _
    $region77: #{tpu_custom_call.1} parent=1 // pred_fallthru
      _
    // Predicated region
    $region78: #{tpu_custom_call.1} parent=1 // pred_check
      _
    $region79: #{tpu_custom_call.1} parent=1 // pred_check_branch
      %73 = sbr.rel (0) target = $region81
    $region80: #{tpu_custom_call.1} parent=1 // pred_region
      _
    $region81: #{tpu_custom_call.1} parent=1 // pred_fallthru
      _
    // Predicated region
    $region82: #{tpu_custom_call.1} parent=1 // pred_check
      _
    $region83: #{tpu_custom_call.1} parent=1 // pred_check_branch
      %75 = sbr.rel (0) target = $region85
    $region84: #{tpu_custom_call.1} parent=1 // pred_region
      _
    $region85: #{tpu_custom_call.1} parent=1 // pred_fallthru
      _
    // Predicated region
    $region86: #{tpu_custom_call.1} parent=1 // pred_check
      _
    $region87: #{tpu_custom_call.1} parent=1 // pred_check_branch
      %77 = sbr.rel (0) target = $region89
    $region88: #{tpu_custom_call.1} parent=1 // pred_region
      _
    $region89: #{tpu_custom_call.1} parent=1 // pred_fallthru
      _
    // Predicated region
    $region90: #{tpu_custom_call.1} parent=1 // pred_check
      _
    $region91: #{tpu_custom_call.1} parent=1 // pred_check_branch
      %79 = sbr.rel (0) target = $region93
    $region92: #{tpu_custom_call.1} parent=1 // pred_region
      _
    $region93: #{tpu_custom_call.1} parent=1 // pred_fallthru
      _
    // Predicated region
    $region94: #{tpu_custom_call.1} parent=1 // pred_check
      _
    $region95: #{tpu_custom_call.1} parent=1 // pred_check_branch
      %81 = sbr.rel (0) target = $region97
    $region96: #{tpu_custom_call.1} parent=1 // pred_region
      _
    $region97: #{tpu_custom_call.1} parent=1 // pred_fallthru
      _
    // Predicated region
    $region98: #{tpu_custom_call.1} parent=1 // pred_check
      _
    $region99: #{tpu_custom_call.1} parent=1 // pred_check_branch
      %83 = sbr.rel (0) target = $region101
    $region100: #{tpu_custom_call.1} parent=1 // pred_region
      _
    $region101: #{tpu_custom_call.1} parent=1 // pred_fallthru
      _
    %v84 = vld [vmem:[%s0] sm:$0xff]
    %v85 = vld [vmem:[%s0 + $0x8] sm:$0xff]
    %v86 = vmul.f32 %v84, 5.656854
    %v87 = vmul.f32 %v85, 5.656854
    %v88 = vld [vmem:[%s1] sm:$0xff]
    %v89 = vld [vmem:[%s1 + $0x8] sm:$0xff]
    %v90 = vadd.f32 %v86, %v88
    %v91 = vadd.f32 %v87, %v89
    %v92 = vld [vmem:[%s2] sm:$0xff]
    %v93 = vld [vmem:[%s2 + $0x8] sm:$0xff]
    %v94 = vld [vmem:[%s5] sm:$0xff]
    %v95 = vld [vmem:[%s5 + $0x8] sm:$0xff]
    %v96 = vld [vmem:[%s5 + $0x10] sm:$0xff]
    %v97 = vld [vmem:[%s5 + $0x18] sm:$0xff]
    %v98 = vld [vmem:[%s6] sm:$0x1]
    %v100 = vperm.slane %v98, 0
    %vm102 = vcmask 261120
    %v104 = vsel %vm102, %v90, 0
    %v107 = vsel %vm102, %v91, 0
    %109 = vmatpush.msra.mxu0 0.0
    %110 = vmatpush.msra.mxu0 0.0
    %111 = vmatpush.msra.mxu0 0.0
    %112 = vmatpush.msra.mxu0 0.0
    %113 = vmatpush.msra.mxu0 0.0
    %114 = vmatpush.msra.mxu0 0.0
    %115 = vmatpush.msra.mxu0 0.0
    %116 = vmatpush.msra.mxu0 0.0
    %117 = vmatpush.msra.mxu0 0.0
    %118 = vmatpush.msra.mxu0 0.0
    %119 = vmatpush.msra.mxu0 0.0
    %120 = vmatpush.msra.mxu0 0.0
    %121 = vmatpush.msra.mxu0 %v97
    %122 = vmatpush.msra.mxu0 %v96
    %123 = vmatpush.msra.mxu0 %v95
    %124 = vmatpush.msra.mxu0 %v94
    %125 = vmatmul.f32.gmra.mxu0 %v104
    %v126 = vpop.f32.mrf.mxu0
    %v127 = vadd.f32 %v100, %v126
    %128 = vmatmul.f32.gmra.mxu0 %v107
    %v129 = vpop.f32.mrf.mxu0
    %v130 = vadd.f32 %v100, %v129
    %131 = vdwg.mxu0
    %v132 = vld [vmem:[%s7] sm:$0xff]
    %v133 = vld [vmem:[%s7 + $0x8] sm:$0xff]
    %v134 = vld [vmem:[%s7 + $0x10] sm:$0xff]
    %v135 = vld [vmem:[%s7 + $0x18] sm:$0xff]
    %v136 = vld [vmem:[%s8] sm:$0x1]
    %v138 = vperm.slane %v136, 0
    %140 = vmatpush.msra.mxu0 0.0
    %141 = vmatpush.msra.mxu0 0.0
    %142 = vmatpush.msra.mxu0 0.0
    %143 = vmatpush.msra.mxu0 0.0
    %144 = vmatpush.msra.mxu0 0.0
    %145 = vmatpush.msra.mxu0 0.0
    %146 = vmatpush.msra.mxu0 0.0
    %147 = vmatpush.msra.mxu0 0.0
    %148 = vmatpush.msra.mxu0 0.0
    %149 = vmatpush.msra.mxu0 0.0
    %150 = vmatpush.msra.mxu0 0.0
    %151 = vmatpush.msra.mxu0 0.0
    %152 = vmatpush.msra.mxu0 %v135
    %153 = vmatpush.msra.mxu0 %v134
    %154 = vmatpush.msra.mxu0 %v133
    %155 = vmatpush.msra.mxu0 %v132
    %156 = vmatmul.f32.gmra.mxu0 %v104
    %v157 = vpop.f32.mrf.mxu0
    %v158 = vadd.f32 %v138, %v157
    %159 = vmatmul.f32.gmra.mxu0 %v107
    %v160 = vpop.f32.mrf.mxu0
    %v161 = vadd.f32 %v138, %v160
    %162 = vdwg.mxu0
    %v163 = vld [vmem:[%s9] sm:$0xff]
    %v164 = vld [vmem:[%s9 + $0x8] sm:$0xff]
    %v165 = vld [vmem:[%s9 + $0x10] sm:$0xff]
    %v166 = vld [vmem:[%s9 + $0x18] sm:$0xff]
    %v167 = vld [vmem:[%s10] sm:$0x1]
    %v169 = vperm.slane %v167, 0
    %171 = vmatpush.msra.mxu0 0.0
    %172 = vmatpush.msra.mxu0 0.0
    %173 = vmatpush.msra.mxu0 0.0
    %174 = vmatpush.msra.mxu0 0.0
    %175 = vmatpush.msra.mxu0 0.0
    %176 = vmatpush.msra.mxu0 0.0
    %177 = vmatpush.msra.mxu0 0.0
    %178 = vmatpush.msra.mxu0 0.0
    %179 = vmatpush.msra.mxu0 0.0
    %180 = vmatpush.msra.mxu0 0.0
    %181 = vmatpush.msra.mxu0 0.0
    %182 = vmatpush.msra.mxu0 0.0
    %183 = vmatpush.msra.mxu0 %v166
    %184 = vmatpush.msra.mxu0 %v165
    %185 = vmatpush.msra.mxu0 %v164
    %186 = vmatpush.msra.mxu0 %v163
    %187 = vmatmul.f32.gmra.mxu0 %v104
    %v188 = vpop.f32.mrf.mxu0
    %v189 = vadd.f32 %v169, %v188
    %190 = vmatmul.f32.gmra.mxu0 %v107
    %v191 = vpop.f32.mrf.mxu0
    %v192 = vadd.f32 %v169, %v191
    %193 = vdwg.mxu0
    %vm194 = vcmask 64512
    %v196 = vsel %vm194, %v127, 0
    %v199 = vsel %vm194, %v130, 0
    %v202 = vsel %vm194, %v158, 0
    %v205 = vsel %vm194, %v161, 0
    %207 = vmatpush.xpose.msra.mxu0 0.0
    %208 = vmatpush.xpose.msra.mxu0 0.0
    %209 = vmatpush.xpose.msra.mxu0 0.0
    %210 = vmatpush.xpose.msra.mxu0 0.0
    %211 = vmatpush.xpose.msra.mxu0 0.0
    %212 = vmatpush.xpose.msra.mxu0 0.0
    %213 = vmatpush.xpose.msra.mxu0 0.0
    %214 = vmatpush.xpose.msra.mxu0 0.0
    %215 = vmatpush.xpose.msra.mxu0 0.0
    %216 = vmatpush.xpose.msra.mxu0 0.0
    %217 = vmatpush.xpose.msra.mxu0 0.0
    %218 = vmatpush.xpose.msra.mxu0 0.0
    %219 = vmatpush.xpose.msra.mxu0 0.0
    %220 = vmatpush.xpose.msra.mxu0 0.0
    %221 = vmatpush.xpose.msra.mxu0 %v205
    %222 = vmatpush.xpose.msra.mxu0 %v202
    %223 = vmatmul.f32.gmra.mxu0 %v196
    %v224 = vpop.f32.mrf.mxu0
    %v225 = vadd.f32 0.0, %v224
    %226 = vmatmul.f32.gmra.mxu0 %v199
    %v227 = vpop.f32.mrf.mxu0
    %v228 = vadd.f32 0.0, %v227
    %229 = vdwg.mxu0
    %v230 = vmul.f32 %v225, 0.35355338
    %v231 = vmul.f32 %v228, 0.35355338
    %v232 = vadd.f32 %v230, %v92
    %v233 = vadd.f32 %v231, %v93
    %vm234 = vcmask 130048
    %v235 = vsel %vm234, %v232, -inf
    %236 = vmax.xlane.f32.xlu0 %v235
    %v237 = vpop.xlane.xlu0 %236
    %v238 = vsel %vm234, %v233, -inf
    %239 = vmax.xlane.f32.xlu0 %v238
    %v240 = vpop.xlane.xlu0 %239
    %v241 = vsub.f32 %v232, %v237
    %v242 = vsub.f32 %v233, %v240
    %v243 = vmul.f32 %v241, 1.442695
    %v244 = vpow.pop %v243
    %v245 = vmul.f32 %v242, 1.442695
    %v246 = vpow.pop %v245
    %v247 = vsel %vm234, %v244, 0.0
    %248 = vadd.xlane.f32.xlu0 %v247
    %v249 = vpop.xlane.xlu0 %248
    %v250 = vsel %vm234, %v246, 0.0
    %251 = vadd.xlane.f32.xlu0 %v250
    %v252 = vpop.xlane.xlu0 %251
    %v253 = vrcp.pop %v249
    %v254 = vrcp.pop %v252
    %v255 = vmul.f32 %v244, %v253
    %v256 = vmul.f32 %v246, %v254
    %v258 = vsel %vm234, %v255, 0
    %v261 = vsel %vm234, %v256, 0
    %263 = vmatpush.msra.mxu0 0.0
    %264 = vmatpush.msra.mxu0 0.0
    %265 = vmatpush.msra.mxu0 0.0
    %266 = vmatpush.msra.mxu0 0.0
    %267 = vmatpush.msra.mxu0 0.0
    %268 = vmatpush.msra.mxu0 0.0
    %269 = vmatpush.msra.mxu0 0.0
    %270 = vmatpush.msra.mxu0 0.0
    %271 = vmatpush.msra.mxu0 0.0
    %272 = vmatpush.msra.mxu0 0.0
    %273 = vmatpush.msra.mxu0 0.0
    %274 = vmatpush.msra.mxu0 0.0
    %275 = vmatpush.msra.mxu0 0.0
    %276 = vmatpush.msra.mxu0 0.0
    %277 = vmatpush.msra.mxu0 %v192
    %278 = vmatpush.msra.mxu0 %v189
    %279 = vmatmul.f32.gmra.mxu0 %v258
    %v280 = vpop.f32.mrf.mxu0
    %v281 = vadd.f32 0.0, %v280
    %282 = vmatmul.f32.gmra.mxu0 %v261
    %v283 = vpop.f32.mrf.mxu0
    %v284 = vadd.f32 0.0, %v283
    %285 = vdwg.mxu0
    %v286 = vld [vmem:[%s11] sm:$0xff]
    %s287 = scalar_lea.vmem %s5, 32
    %v288 = vld [vmem:[%s287] sm:$0xff]
    %v289 = vld [vmem:[%s287 + $0x8] sm:$0xff]
    %v290 = vld [vmem:[%s287 + $0x10] sm:$0xff]
    %v291 = vld [vmem:[%s287 + $0x18] sm:$0xff]
    %s292 = scalar_lea.vmem %s6, 1
    %v293 = vld [vmem:[%s292] sm:$0x1]
    %v295 = vperm.slane %v293, 0
    %297 = vmatpush.msra.mxu0 0.0
    %298 = vmatpush.msra.mxu0 0.0
    %299 = vmatpush.msra.mxu0 0.0
    %300 = vmatpush.msra.mxu0 0.0
    %301 = vmatpush.msra.mxu0 0.0
    %302 = vmatpush.msra.mxu0 0.0
    %303 = vmatpush.msra.mxu0 0.0
    %304 = vmatpush.msra.mxu0 0.0
    %305 = vmatpush.msra.mxu0 0.0
    %306 = vmatpush.msra.mxu0 0.0
    %307 = vmatpush.msra.mxu0 0.0
    %308 = vmatpush.msra.mxu0 0.0
    %309 = vmatpush.msra.mxu0 %v291
    %310 = vmatpush.msra.mxu0 %v290
    %311 = vmatpush.msra.mxu0 %v289
    %312 = vmatpush.msra.mxu0 %v288
    %313 = vmatmul.f32.gmra.mxu0 %v104
    %v314 = vpop.f32.mrf.mxu0
    %v315 = vadd.f32 %v295, %v314
    %316 = vmatmul.f32.gmra.mxu0 %v107
    %v317 = vpop.f32.mrf.mxu0
    %v318 = vadd.f32 %v295, %v317
    %319 = vdwg.mxu0
    %s320 = scalar_lea.vmem %s7, 32
    %v321 = vld [vmem:[%s320] sm:$0xff]
    %v322 = vld [vmem:[%s320 + $0x8] sm:$0xff]
    %v323 = vld [vmem:[%s320 + $0x10] sm:$0xff]
    %v324 = vld [vmem:[%s320 + $0x18] sm:$0xff]
    %s325 = scalar_lea.vmem %s8, 1
    %v326 = vld [vmem:[%s325] sm:$0x1]
    %v328 = vperm.slane %v326, 0
    %330 = vmatpush.msra.mxu0 0.0
    %331 = vmatpush.msra.mxu0 0.0
    %332 = vmatpush.msra.mxu0 0.0
    %333 = vmatpush.msra.mxu0 0.0
    %334 = vmatpush.msra.mxu0 0.0
    %335 = vmatpush.msra.mxu0 0.0
    %336 = vmatpush.msra.mxu0 0.0
    %337 = vmatpush.msra.mxu0 0.0
    %338 = vmatpush.msra.mxu0 0.0
    %339 = vmatpush.msra.mxu0 0.0
    %340 = vmatpush.msra.mxu0 0.0
    %341 = vmatpush.msra.mxu0 0.0
    %342 = vmatpush.msra.mxu0 %v324
    %343 = vmatpush.msra.mxu0 %v323
    %344 = vmatpush.msra.mxu0 %v322
    %345 = vmatpush.msra.mxu0 %v321
    %346 = vmatmul.f32.gmra.mxu0 %v104
    %v347 = vpop.f32.mrf.mxu0
    %v348 = vadd.f32 %v328, %v347
    %349 = vmatmul.f32.gmra.mxu0 %v107
    %v350 = vpop.f32.mrf.mxu0
    %v351 = vadd.f32 %v328, %v350
    %352 = vdwg.mxu0
    %s353 = scalar_lea.vmem %s9, 32
    %v354 = vld [vmem:[%s353] sm:$0xff]
    %v355 = vld [vmem:[%s353 + $0x8] sm:$0xff]
    %v356 = vld [vmem:[%s353 + $0x10] sm:$0xff]
    %v357 = vld [vmem:[%s353 + $0x18] sm:$0xff]
    %s358 = scalar_lea.vmem %s10, 1
    %v359 = vld [vmem:[%s358] sm:$0x1]
    %v361 = vperm.slane %v359, 0
    %363 = vmatpush.msra.mxu0 0.0
    %364 = vmatpush.msra.mxu0 0.0
    %365 = vmatpush.msra.mxu0 0.0
    %366 = vmatpush.msra.mxu0 0.0
    %367 = vmatpush.msra.mxu0 0.0
    %368 = vmatpush.msra.mxu0 0.0
    %369 = vmatpush.msra.mxu0 0.0
    %370 = vmatpush.msra.mxu0 0.0
    %371 = vmatpush.msra.mxu0 0.0
    %372 = vmatpush.msra.mxu0 0.0
    %373 = vmatpush.msra.mxu0 0.0
    %374 = vmatpush.msra.mxu0 0.0
    %375 = vmatpush.msra.mxu0 %v357
    %376 = vmatpush.msra.mxu0 %v356
    %377 = vmatpush.msra.mxu0 %v355
    %378 = vmatpush.msra.mxu0 %v354
    %379 = vmatmul.f32.gmra.mxu0 %v104
    %v380 = vpop.f32.mrf.mxu0
    %v381 = vadd.f32 %v361, %v380
    %382 = vmatmul.f32.gmra.mxu0 %v107
    %v383 = vpop.f32.mrf.mxu0
    %v384 = vadd.f32 %v361, %v383
    %385 = vdwg.mxu0
    %v387 = vsel %vm194, %v315, 0
    %v390 = vsel %vm194, %v318, 0
    %v393 = vsel %vm194, %v348, 0
    %v396 = vsel %vm194, %v351, 0
    %398 = vmatpush.xpose.msra.mxu0 0.0
    %399 = vmatpush.xpose.msra.mxu0 0.0
    %400 = vmatpush.xpose.msra.mxu0 0.0
    %401 = vmatpush.xpose.msra.mxu0 0.0
    %402 = vmatpush.xpose.msra.mxu0 0.0
    %403 = vmatpush.xpose.msra.mxu0 0.0
    %404 = vmatpush.xpose.msra.mxu0 0.0
    %405 = vmatpush.xpose.msra.mxu0 0.0
    %406 = vmatpush.xpose.msra.mxu0 0.0
    %407 = vmatpush.xpose.msra.mxu0 0.0
    %408 = vmatpush.xpose.msra.mxu0 0.0
    %409 = vmatpush.xpose.msra.mxu0 0.0
    %410 = vmatpush.xpose.msra.mxu0 0.0
    %411 = vmatpush.xpose.msra.mxu0 0.0
    %412 = vmatpush.xpose.msra.mxu0 %v396
    %413 = vmatpush.xpose.msra.mxu0 %v393
    %414 = vmatmul.f32.gmra.mxu0 %v387
    %v415 = vpop.f32.mrf.mxu0
    %v416 = vadd.f32 0.0, %v415
    %417 = vmatmul.f32.gmra.mxu0 %v390
    %v418 = vpop.f32.mrf.mxu0
    %v419 = vadd.f32 0.0, %v418
    %420 = vdwg.mxu0
    %v421 = vmul.f32 %v416, 0.35355338
    %v422 = vmul.f32 %v419, 0.35355338
    %v423 = vadd.f32 %v421, %v92
    %v424 = vadd.f32 %v422, %v93
    %v425 = vsel %vm234, %v423, -inf
    %426 = vmax.xlane.f32.xlu0 %v425
    %v427 = vpop.xlane.xlu0 %426
    %v428 = vsel %vm234, %v424, -inf
    %429 = vmax.xlane.f32.xlu0 %v428
    %v430 = vpop.xlane.xlu0 %429
    %v431 = vsub.f32 %v423, %v427
    %v432 = vsub.f32 %v424, %v430
    %v433 = vmul.f32 %v431, 1.442695
    %v434 = vpow.pop %v433
    %v435 = vmul.f32 %v432, 1.442695
    %v436 = vpow.pop %v435
    %v437 = vsel %vm234, %v434, 0.0
    %438 = vadd.xlane.f32.xlu0 %v437
    %v439 = vpop.xlane.xlu0 %438
    %v440 = vsel %vm234, %v436, 0.0
    %441 = vadd.xlane.f32.xlu0 %v440
    %v442 = vpop.xlane.xlu0 %441
    %v443 = vrcp.pop %v439
    %v444 = vrcp.pop %v442
    %v445 = vmul.f32 %v434, %v443
    %v446 = vmul.f32 %v436, %v444
    %v448 = vsel %vm234, %v445, 0
    %v451 = vsel %vm234, %v446, 0
    %453 = vmatpush.msra.mxu0 0.0
    %454 = vmatpush.msra.mxu0 0.0
    %455 = vmatpush.msra.mxu0 0.0
    %456 = vmatpush.msra.mxu0 0.0
    %457 = vmatpush.msra.mxu0 0.0
    %458 = vmatpush.msra.mxu0 0.0
    %459 = vmatpush.msra.mxu0 0.0
    %460 = vmatpush.msra.mxu0 0.0
    %461 = vmatpush.msra.mxu0 0.0
    %462 = vmatpush.msra.mxu0 0.0
    %463 = vmatpush.msra.mxu0 0.0
    %464 = vmatpush.msra.mxu0 0.0
    %465 = vmatpush.msra.mxu0 0.0
    %466 = vmatpush.msra.mxu0 0.0
    %467 = vmatpush.msra.mxu0 %v384
    %468 = vmatpush.msra.mxu0 %v381
    %469 = vmatmul.f32.gmra.mxu0 %v448
    %v470 = vpop.f32.mrf.mxu0
    %v471 = vadd.f32 0.0, %v470
    %472 = vmatmul.f32.gmra.mxu0 %v451
    %v473 = vpop.f32.mrf.mxu0
    %v474 = vadd.f32 0.0, %v473
    %475 = vdwg.mxu0
    %s476 = scalar_lea.vmem %s11, 8
    %v477 = vld [vmem:[%s476] sm:$0xff]
    %v479 = vsel %vm194, %v471, 0
    %v482 = vsel %vm194, %v474, 0
    %484 = vmatpush.msra.mxu0 0.0
    %485 = vmatpush.msra.mxu0 0.0
    %486 = vmatpush.msra.mxu0 0.0
    %487 = vmatpush.msra.mxu0 0.0
    %488 = vmatpush.msra.mxu0 0.0
    %489 = vmatpush.msra.mxu0 0.0
    %490 = vmatpush.msra.mxu0 0.0
    %491 = vmatpush.msra.mxu0 0.0
    %492 = vmatpush.msra.mxu0 0.0
    %493 = vmatpush.msra.mxu0 0.0
    %494 = vmatpush.msra.mxu0 0.0
    %495 = vmatpush.msra.mxu0 0.0
    %496 = vmatpush.msra.mxu0 0.0
    %497 = vmatpush.msra.mxu0 0.0
    %498 = vmatpush.msra.mxu0 0.0
    %499 = vmatpush.msra.mxu0 %v477
    %500 = vmatmul.f32.gmra.mxu0 %v479
    %v501 = vpop.f32.mrf.mxu0
    %v502 = vadd.f32 0.0, %v501
    %503 = vmatmul.f32.gmra.mxu0 %v482
    %v504 = vpop.f32.mrf.mxu0
    %v505 = vadd.f32 0.0, %v504
    %506 = vdwg.mxu0
    %v508 = vsel %vm194, %v281, 0
    %v511 = vsel %vm194, %v284, 0
    %513 = vmatpush.msra.mxu0 0.0
    %514 = vmatpush.msra.mxu0 0.0
    %515 = vmatpush.msra.mxu0 0.0
    %516 = vmatpush.msra.mxu0 0.0
    %517 = vmatpush.msra.mxu0 0.0
    %518 = vmatpush.msra.mxu0 0.0
    %519 = vmatpush.msra.mxu0 0.0
    %520 = vmatpush.msra.mxu0 0.0
    %521 = vmatpush.msra.mxu0 0.0
    %522 = vmatpush.msra.mxu0 0.0
    %523 = vmatpush.msra.mxu0 0.0
    %524 = vmatpush.msra.mxu0 0.0
    %525 = vmatpush.msra.mxu0 0.0
    %526 = vmatpush.msra.mxu0 0.0
    %527 = vmatpush.msra.mxu0 0.0
    %528 = vmatpush.msra.mxu0 %v286
    %529 = vmatmul.f32.gmra.mxu0 %v508
    %v530 = vpop.f32.mrf.mxu0
    %v531 = vadd.f32 %v502, %v530
    %532 = vmatmul.f32.gmra.mxu0 %v511
    %v533 = vpop.f32.mrf.mxu0
    %v534 = vadd.f32 %v505, %v533
    %535 = vdwg.mxu0
    %s536 = scalar_lea.vmem %s5, 64
    %v537 = vld [vmem:[%s536] sm:$0xff]
    %v538 = vld [vmem:[%s536 + $0x8] sm:$0xff]
    %v539 = vld [vmem:[%s536 + $0x10] sm:$0xff]
    %v540 = vld [vmem:[%s536 + $0x18] sm:$0xff]
    %s541 = scalar_lea.vmem %s6, 2
    %v542 = vld [vmem:[%s541] sm:$0x1]
    %v544 = vperm.slane %v542, 0
    %546 = vmatpush.msra.mxu0 0.0
    %547 = vmatpush.msra.mxu0 0.0
    %548 = vmatpush.msra.mxu0 0.0
    %549 = vmatpush.msra.mxu0 0.0
    %550 = vmatpush.msra.mxu0 0.0
    %551 = vmatpush.msra.mxu0 0.0
    %552 = vmatpush.msra.mxu0 0.0
    %553 = vmatpush.msra.mxu0 0.0
    %554 = vmatpush.msra.mxu0 0.0
    %555 = vmatpush.msra.mxu0 0.0
    %556 = vmatpush.msra.mxu0 0.0
    %557 = vmatpush.msra.mxu0 0.0
    %558 = vmatpush.msra.mxu0 %v540
    %559 = vmatpush.msra.mxu0 %v539
    %560 = vmatpush.msra.mxu0 %v538
    %561 = vmatpush.msra.mxu0 %v537
    %562 = vmatmul.f32.gmra.mxu0 %v104
    %v563 = vpop.f32.mrf.mxu0
    %v564 = vadd.f32 %v544, %v563
    %565 = vmatmul.f32.gmra.mxu0 %v107
    %v566 = vpop.f32.mrf.mxu0
    %v567 = vadd.f32 %v544, %v566
    %568 = vdwg.mxu0
    %s569 = scalar_lea.vmem %s7, 64
    %v570 = vld [vmem:[%s569] sm:$0xff]
    %v571 = vld [vmem:[%s569 + $0x8] sm:$0xff]
    %v572 = vld [vmem:[%s569 + $0x10] sm:$0xff]
    %v573 = vld [vmem:[%s569 + $0x18] sm:$0xff]
    %s574 = scalar_lea.vmem %s8, 2
    %v575 = vld [vmem:[%s574] sm:$0x1]
    %v577 = vperm.slane %v575, 0
    %579 = vmatpush.msra.mxu0 0.0
    %580 = vmatpush.msra.mxu0 0.0
    %581 = vmatpush.msra.mxu0 0.0
    %582 = vmatpush.msra.mxu0 0.0
    %583 = vmatpush.msra.mxu0 0.0
    %584 = vmatpush.msra.mxu0 0.0
    %585 = vmatpush.msra.mxu0 0.0
    %586 = vmatpush.msra.mxu0 0.0
    %587 = vmatpush.msra.mxu0 0.0
    %588 = vmatpush.msra.mxu0 0.0
    %589 = vmatpush.msra.mxu0 0.0
    %590 = vmatpush.msra.mxu0 0.0
    %591 = vmatpush.msra.mxu0 %v573
    %592 = vmatpush.msra.mxu0 %v572
    %593 = vmatpush.msra.mxu0 %v571
    %594 = vmatpush.msra.mxu0 %v570
    %595 = vmatmul.f32.gmra.mxu0 %v104
    %v596 = vpop.f32.mrf.mxu0
    %v597 = vadd.f32 %v577, %v596
    %598 = vmatmul.f32.gmra.mxu0 %v107
    %v599 = vpop.f32.mrf.mxu0
    %v600 = vadd.f32 %v577, %v599
    %601 = vdwg.mxu0
    %s602 = scalar_lea.vmem %s9, 64
    %v603 = vld [vmem:[%s602] sm:$0xff]
    %v604 = vld [vmem:[%s602 + $0x8] sm:$0xff]
    %v605 = vld [vmem:[%s602 + $0x10] sm:$0xff]
    %v606 = vld [vmem:[%s602 + $0x18] sm:$0xff]
    %s607 = scalar_lea.vmem %s10, 2
    %v608 = vld [vmem:[%s607] sm:$0x1]
    %v610 = vperm.slane %v608, 0
    %612 = vmatpush.msra.mxu0 0.0
    %613 = vmatpush.msra.mxu0 0.0
    %614 = vmatpush.msra.mxu0 0.0
    %615 = vmatpush.msra.mxu0 0.0
    %616 = vmatpush.msra.mxu0 0.0
    %617 = vmatpush.msra.mxu0 0.0
    %618 = vmatpush.msra.mxu0 0.0
    %619 = vmatpush.msra.mxu0 0.0
    %620 = vmatpush.msra.mxu0 0.0
    %621 = vmatpush.msra.mxu0 0.0
    %622 = vmatpush.msra.mxu0 0.0
    %623 = vmatpush.msra.mxu0 0.0
    %624 = vmatpush.msra.mxu0 %v606
    %625 = vmatpush.msra.mxu0 %v605
    %626 = vmatpush.msra.mxu0 %v604
    %627 = vmatpush.msra.mxu0 %v603
    %628 = vmatmul.f32.gmra.mxu0 %v104
    %v629 = vpop.f32.mrf.mxu0
    %v630 = vadd.f32 %v610, %v629
    %631 = vmatmul.f32.gmra.mxu0 %v107
    %v632 = vpop.f32.mrf.mxu0
    %v633 = vadd.f32 %v610, %v632
    %634 = vdwg.mxu0
    %v636 = vsel %vm194, %v564, 0
    %v639 = vsel %vm194, %v567, 0
    %v642 = vsel %vm194, %v597, 0
    %v645 = vsel %vm194, %v600, 0
    %647 = vmatpush.xpose.msra.mxu0 0.0
    %648 = vmatpush.xpose.msra.mxu0 0.0
    %649 = vmatpush.xpose.msra.mxu0 0.0
    %650 = vmatpush.xpose.msra.mxu0 0.0
    %651 = vmatpush.xpose.msra.mxu0 0.0
    %652 = vmatpush.xpose.msra.mxu0 0.0
    %653 = vmatpush.xpose.msra.mxu0 0.0
    %654 = vmatpush.xpose.msra.mxu0 0.0
    %655 = vmatpush.xpose.msra.mxu0 0.0
    %656 = vmatpush.xpose.msra.mxu0 0.0
    %657 = vmatpush.xpose.msra.mxu0 0.0
    %658 = vmatpush.xpose.msra.mxu0 0.0
    %659 = vmatpush.xpose.msra.mxu0 0.0
    %660 = vmatpush.xpose.msra.mxu0 0.0
    %661 = vmatpush.xpose.msra.mxu0 %v645
    %662 = vmatpush.xpose.msra.mxu0 %v642
    %663 = vmatmul.f32.gmra.mxu0 %v636
    %v664 = vpop.f32.mrf.mxu0
    %v665 = vadd.f32 0.0, %v664
    %666 = vmatmul.f32.gmra.mxu0 %v639
    %v667 = vpop.f32.mrf.mxu0
    %v668 = vadd.f32 0.0, %v667
    %669 = vdwg.mxu0
    %v670 = vmul.f32 %v665, 0.35355338
    %v671 = vmul.f32 %v668, 0.35355338
    %v672 = vadd.f32 %v670, %v92
    %v673 = vadd.f32 %v671, %v93
    %v674 = vsel %vm234, %v672, -inf
    %675 = vmax.xlane.f32.xlu0 %v674
    %v676 = vpop.xlane.xlu0 %675
    %v677 = vsel %vm234, %v673, -inf
    %678 = vmax.xlane.f32.xlu0 %v677
    %v679 = vpop.xlane.xlu0 %678
    %v680 = vsub.f32 %v672, %v676
    %v681 = vsub.f32 %v673, %v679
    %v682 = vmul.f32 %v680, 1.442695
    %v683 = vpow.pop %v682
    %v684 = vmul.f32 %v681, 1.442695
    %v685 = vpow.pop %v684
    %v686 = vsel %vm234, %v683, 0.0
    %687 = vadd.xlane.f32.xlu0 %v686
    %v688 = vpop.xlane.xlu0 %687
    %v689 = vsel %vm234, %v685, 0.0
    %690 = vadd.xlane.f32.xlu0 %v689
    %v691 = vpop.xlane.xlu0 %690
    %v692 = vrcp.pop %v688
    %v693 = vrcp.pop %v691
    %v694 = vmul.f32 %v683, %v692
    %v695 = vmul.f32 %v685, %v693
    %v697 = vsel %vm234, %v694, 0
    %v700 = vsel %vm234, %v695, 0
    %702 = vmatpush.msra.mxu0 0.0
    %703 = vmatpush.msra.mxu0 0.0
    %704 = vmatpush.msra.mxu0 0.0
    %705 = vmatpush.msra.mxu0 0.0
    %706 = vmatpush.msra.mxu0 0.0
    %707 = vmatpush.msra.mxu0 0.0
    %708 = vmatpush.msra.mxu0 0.0
    %709 = vmatpush.msra.mxu0 0.0
    %710 = vmatpush.msra.mxu0 0.0
    %711 = vmatpush.msra.mxu0 0.0
    %712 = vmatpush.msra.mxu0 0.0
    %713 = vmatpush.msra.mxu0 0.0
    %714 = vmatpush.msra.mxu0 0.0
    %715 = vmatpush.msra.mxu0 0.0
    %716 = vmatpush.msra.mxu0 %v633
    %717 = vmatpush.msra.mxu0 %v630
    %718 = vmatmul.f32.gmra.mxu0 %v697
    %v719 = vpop.f32.mrf.mxu0
    %v720 = vadd.f32 0.0, %v719
    %721 = vmatmul.f32.gmra.mxu0 %v700
    %v722 = vpop.f32.mrf.mxu0
    %v723 = vadd.f32 0.0, %v722
    %724 = vdwg.mxu0
    %s725 = scalar_lea.vmem %s11, 16
    %v726 = vld [vmem:[%s725] sm:$0xff]
    %v728 = vsel %vm194, %v720, 0
    %v731 = vsel %vm194, %v723, 0
    %733 = vmatpush.msra.mxu0 0.0
    %734 = vmatpush.msra.mxu0 0.0
    %735 = vmatpush.msra.mxu0 0.0
    %736 = vmatpush.msra.mxu0 0.0
    %737 = vmatpush.msra.mxu0 0.0
    %738 = vmatpush.msra.mxu0 0.0
    %739 = vmatpush.msra.mxu0 0.0
    %740 = vmatpush.msra.mxu0 0.0
    %741 = vmatpush.msra.mxu0 0.0
    %742 = vmatpush.msra.mxu0 0.0
    %743 = vmatpush.msra.mxu0 0.0
    %744 = vmatpush.msra.mxu0 0.0
    %745 = vmatpush.msra.mxu0 0.0
    %746 = vmatpush.msra.mxu0 0.0
    %747 = vmatpush.msra.mxu0 0.0
    %748 = vmatpush.msra.mxu0 %v726
    %749 = vmatmul.f32.gmra.mxu0 %v728
    %v750 = vpop.f32.mrf.mxu0
    %v751 = vadd.f32 0.0, %v750
    %752 = vmatmul.f32.gmra.mxu0 %v731
    %v753 = vpop.f32.mrf.mxu0
    %v754 = vadd.f32 0.0, %v753
    %755 = vdwg.mxu0
    %v756 = vadd.f32 %v531, %v751
    %v757 = vadd.f32 %v534, %v754
    %s758 = scalar_lea.vmem %s5, 96
    %v759 = vld [vmem:[%s758] sm:$0xff]
    %v760 = vld [vmem:[%s758 + $0x8] sm:$0xff]
    %v761 = vld [vmem:[%s758 + $0x10] sm:$0xff]
    %v762 = vld [vmem:[%s758 + $0x18] sm:$0xff]
    %s763 = scalar_lea.vmem %s6, 3
    %v764 = vld [vmem:[%s763] sm:$0x1]
    %v766 = vperm.slane %v764, 0
    %768 = vmatpush.msra.mxu0 0.0
    %769 = vmatpush.msra.mxu0 0.0
    %770 = vmatpush.msra.mxu0 0.0
    %771 = vmatpush.msra.mxu0 0.0
    %772 = vmatpush.msra.mxu0 0.0
    %773 = vmatpush.msra.mxu0 0.0
    %774 = vmatpush.msra.mxu0 0.0
    %775 = vmatpush.msra.mxu0 0.0
    %776 = vmatpush.msra.mxu0 0.0
    %777 = vmatpush.msra.mxu0 0.0
    %778 = vmatpush.msra.mxu0 0.0
    %779 = vmatpush.msra.mxu0 0.0
    %780 = vmatpush.msra.mxu0 %v762
    %781 = vmatpush.msra.mxu0 %v761
    %782 = vmatpush.msra.mxu0 %v760
    %783 = vmatpush.msra.mxu0 %v759
    %784 = vmatmul.f32.gmra.mxu0 %v104
    %v785 = vpop.f32.mrf.mxu0
    %v786 = vadd.f32 %v766, %v785
    %787 = vmatmul.f32.gmra.mxu0 %v107
    %v788 = vpop.f32.mrf.mxu0
    %v789 = vadd.f32 %v766, %v788
    %790 = vdwg.mxu0
    %s791 = scalar_lea.vmem %s7, 96
    %v792 = vld [vmem:[%s791] sm:$0xff]
    %v793 = vld [vmem:[%s791 + $0x8] sm:$0xff]
    %v794 = vld [vmem:[%s791 + $0x10] sm:$0xff]
    %v795 = vld [vmem:[%s791 + $0x18] sm:$0xff]
    %s796 = scalar_lea.vmem %s8, 3
    %v797 = vld [vmem:[%s796] sm:$0x1]
    %v799 = vperm.slane %v797, 0
    %801 = vmatpush.msra.mxu0 0.0
    %802 = vmatpush.msra.mxu0 0.0
    %803 = vmatpush.msra.mxu0 0.0
    %804 = vmatpush.msra.mxu0 0.0
    %805 = vmatpush.msra.mxu0 0.0
    %806 = vmatpush.msra.mxu0 0.0
    %807 = vmatpush.msra.mxu0 0.0
    %808 = vmatpush.msra.mxu0 0.0
    %809 = vmatpush.msra.mxu0 0.0
    %810 = vmatpush.msra.mxu0 0.0
    %811 = vmatpush.msra.mxu0 0.0
    %812 = vmatpush.msra.mxu0 0.0
    %813 = vmatpush.msra.mxu0 %v795
    %814 = vmatpush.msra.mxu0 %v794
    %815 = vmatpush.msra.mxu0 %v793
    %816 = vmatpush.msra.mxu0 %v792
    %817 = vmatmul.f32.gmra.mxu0 %v104
    %v818 = vpop.f32.mrf.mxu0
    %v819 = vadd.f32 %v799, %v818
    %820 = vmatmul.f32.gmra.mxu0 %v107
    %v821 = vpop.f32.mrf.mxu0
    %v822 = vadd.f32 %v799, %v821
    %823 = vdwg.mxu0
    %s824 = scalar_lea.vmem %s9, 96
    %v825 = vld [vmem:[%s824] sm:$0xff]
    %v826 = vld [vmem:[%s824 + $0x8] sm:$0xff]
    %v827 = vld [vmem:[%s824 + $0x10] sm:$0xff]
    %v828 = vld [vmem:[%s824 + $0x18] sm:$0xff]
    %s829 = scalar_lea.vmem %s10, 3
    %v830 = vld [vmem:[%s829] sm:$0x1]
    %v832 = vperm.slane %v830, 0
    %834 = vmatpush.msra.mxu0 0.0
    %835 = vmatpush.msra.mxu0 0.0
    %836 = vmatpush.msra.mxu0 0.0
    %837 = vmatpush.msra.mxu0 0.0
    %838 = vmatpush.msra.mxu0 0.0
    %839 = vmatpush.msra.mxu0 0.0
    %840 = vmatpush.msra.mxu0 0.0
    %841 = vmatpush.msra.mxu0 0.0
    %842 = vmatpush.msra.mxu0 0.0
    %843 = vmatpush.msra.mxu0 0.0
    %844 = vmatpush.msra.mxu0 0.0
    %845 = vmatpush.msra.mxu0 0.0
    %846 = vmatpush.msra.mxu0 %v828
    %847 = vmatpush.msra.mxu0 %v827
    %848 = vmatpush.msra.mxu0 %v826
    %849 = vmatpush.msra.mxu0 %v825
    %850 = vmatmul.f32.gmra.mxu0 %v104
    %v851 = vpop.f32.mrf.mxu0
    %v852 = vadd.f32 %v832, %v851
    %853 = vmatmul.f32.gmra.mxu0 %v107
    %v854 = vpop.f32.mrf.mxu0
    %v855 = vadd.f32 %v832, %v854
    %856 = vdwg.mxu0
    %v858 = vsel %vm194, %v786, 0
    %v861 = vsel %vm194, %v789, 0
    %v864 = vsel %vm194, %v819, 0
    %v867 = vsel %vm194, %v822, 0
    %869 = vmatpush.xpose.msra.mxu0 0.0
    %870 = vmatpush.xpose.msra.mxu0 0.0
    %871 = vmatpush.xpose.msra.mxu0 0.0
    %872 = vmatpush.xpose.msra.mxu0 0.0
    %873 = vmatpush.xpose.msra.mxu0 0.0
    %874 = vmatpush.xpose.msra.mxu0 0.0
    %875 = vmatpush.xpose.msra.mxu0 0.0
    %876 = vmatpush.xpose.msra.mxu0 0.0
    %877 = vmatpush.xpose.msra.mxu0 0.0
    %878 = vmatpush.xpose.msra.mxu0 0.0
    %879 = vmatpush.xpose.msra.mxu0 0.0
    %880 = vmatpush.xpose.msra.mxu0 0.0
    %881 = vmatpush.xpose.msra.mxu0 0.0
    %882 = vmatpush.xpose.msra.mxu0 0.0
    %883 = vmatpush.xpose.msra.mxu0 %v867
    %884 = vmatpush.xpose.msra.mxu0 %v864
    %885 = vmatmul.f32.gmra.mxu0 %v858
    %v886 = vpop.f32.mrf.mxu0
    %v887 = vadd.f32 0.0, %v886
    %888 = vmatmul.f32.gmra.mxu0 %v861
    %v889 = vpop.f32.mrf.mxu0
    %v890 = vadd.f32 0.0, %v889
    %891 = vdwg.mxu0
    %v892 = vmul.f32 %v887, 0.35355338
    %v893 = vmul.f32 %v890, 0.35355338
    %v894 = vadd.f32 %v892, %v92
    %v895 = vadd.f32 %v893, %v93
    %v896 = vsel %vm234, %v894, -inf
    %897 = vmax.xlane.f32.xlu0 %v896
    %v898 = vpop.xlane.xlu0 %897
    %v899 = vsel %vm234, %v895, -inf
    %900 = vmax.xlane.f32.xlu0 %v899
    %v901 = vpop.xlane.xlu0 %900
    %v902 = vsub.f32 %v894, %v898
    %v903 = vsub.f32 %v895, %v901
    %v904 = vmul.f32 %v902, 1.442695
    %v905 = vpow.pop %v904
    %v906 = vmul.f32 %v903, 1.442695
    %v907 = vpow.pop %v906
    %v908 = vsel %vm234, %v905, 0.0
    %909 = vadd.xlane.f32.xlu0 %v908
    %v910 = vpop.xlane.xlu0 %909
    %v911 = vsel %vm234, %v907, 0.0
    %912 = vadd.xlane.f32.xlu0 %v911
    %v913 = vpop.xlane.xlu0 %912
    %v914 = vrcp.pop %v910
    %v915 = vrcp.pop %v913
    %v916 = vmul.f32 %v905, %v914
    %v917 = vmul.f32 %v907, %v915
    %v919 = vsel %vm234, %v916, 0
    %v922 = vsel %vm234, %v917, 0
    %924 = vmatpush.msra.mxu0 0.0
    %925 = vmatpush.msra.mxu0 0.0
    %926 = vmatpush.msra.mxu0 0.0
    %927 = vmatpush.msra.mxu0 0.0
    %928 = vmatpush.msra.mxu0 0.0
    %929 = vmatpush.msra.mxu0 0.0
    %930 = vmatpush.msra.mxu0 0.0
    %931 = vmatpush.msra.mxu0 0.0
    %932 = vmatpush.msra.mxu0 0.0
    %933 = vmatpush.msra.mxu0 0.0
    %934 = vmatpush.msra.mxu0 0.0
    %935 = vmatpush.msra.mxu0 0.0
    %936 = vmatpush.msra.mxu0 0.0
    %937 = vmatpush.msra.mxu0 0.0
    %938 = vmatpush.msra.mxu0 %v855
    %939 = vmatpush.msra.mxu0 %v852
    %940 = vmatmul.f32.gmra.mxu0 %v919
    %v941 = vpop.f32.mrf.mxu0
    %v942 = vadd.f32 0.0, %v941
    %943 = vmatmul.f32.gmra.mxu0 %v922
    %v944 = vpop.f32.mrf.mxu0
    %v945 = vadd.f32 0.0, %v944
    %946 = vdwg.mxu0
    %s947 = scalar_lea.vmem %s11, 24
    %v948 = vld [vmem:[%s947] sm:$0xff]
    %v950 = vsel %vm194, %v942, 0
    %v953 = vsel %vm194, %v945, 0
    %955 = vmatpush.msra.mxu0 0.0
    %956 = vmatpush.msra.mxu0 0.0
    %957 = vmatpush.msra.mxu0 0.0
    %958 = vmatpush.msra.mxu0 0.0
    %959 = vmatpush.msra.mxu0 0.0
    %960 = vmatpush.msra.mxu0 0.0
    %961 = vmatpush.msra.mxu0 0.0
    %962 = vmatpush.msra.mxu0 0.0
    %963 = vmatpush.msra.mxu0 0.0
    %964 = vmatpush.msra.mxu0 0.0
    %965 = vmatpush.msra.mxu0 0.0
    %966 = vmatpush.msra.mxu0 0.0
    %967 = vmatpush.msra.mxu0 0.0
    %968 = vmatpush.msra.mxu0 0.0
    %969 = vmatpush.msra.mxu0 0.0
    %970 = vmatpush.msra.mxu0 %v948
    %971 = vmatmul.f32.gmra.mxu0 %v950
    %v972 = vpop.f32.mrf.mxu0
    %v973 = vadd.f32 0.0, %v972
    %974 = vmatmul.f32.gmra.mxu0 %v953
    %v975 = vpop.f32.mrf.mxu0
    %v976 = vadd.f32 0.0, %v975
    %977 = vdwg.mxu0
    %v978 = vadd.f32 %v756, %v973
    %v979 = vadd.f32 %v757, %v976
    %v980 = vld [vmem:[%s12] sm:$0x1]
    %v982 = vperm.slane %v980, 0
    %v984 = vadd.f32 %v978, %v982
    %v985 = vadd.f32 %v979, %v982
    %v986 = vadd.f32 %v90, %v984
    %v987 = vadd.f32 %v91, %v985
    %v988 = vld [vmem:[%s13] sm:$0x1]
    %v989 = vld [vmem:[%s14] sm:$0x1]
    %v990 = vsel %vm102, %v986, 0.0
    %991 = vadd.xlane.f32.xlu0 %v990
    %v992 = vpop.xlane.xlu0 %991
    %v993 = vsel %vm102, %v987, 0.0
    %994 = vadd.xlane.f32.xlu0 %v993
    %v995 = vpop.xlane.xlu0 %994
    %v996 = vrcp.pop 32.0
    %v997 = vmul.f32 32.0, %v996
    %v998 = vsub.f32 1.0, %v997
    %v999 = vmul.f32 %v996, %v998
    %v1000 = vadd.f32 %v996, %v999
    %vm1001 = vweird.f32 %v996
    %v1002 = vsel %vm1001, %v996, %v1000
    %v1003 = vmul.f32 %v992, %v1002
    %v1004 = vmul.f32 %v995, %v1002
    %v1005 = vsub.f32 %v986, %v1003
    %v1006 = vsub.f32 %v987, %v1004
    %v1007 = vmul.f32 %v1005, %v1005
    %v1008 = vmul.f32 %v1006, %v1006
    %v1009 = vsel %vm102, %v1007, 0.0
    %1010 = vadd.xlane.f32.xlu0 %v1009
    %v1011 = vpop.xlane.xlu0 %1010
    %v1012 = vsel %vm102, %v1008, 0.0
    %1013 = vadd.xlane.f32.xlu0 %v1012
    %v1014 = vpop.xlane.xlu0 %1013
    %v1015 = vmul.f32 %v1011, %v1002
    %v1016 = vmul.f32 %v1014, %v1002
    %v1017 = vadd.f32 %v1015, 1e-05
    %v1018 = vadd.f32 %v1016, 1e-05
    %v1019 = vrsqrt.pop %v1017
    %v1020 = vmul.f32 %v1019, %v1017
    %v1021 = vmul.f32 %v1020, %v1019
    %v1022 = vmul.f32 0.5, %v1021
    %v1023 = vsub.f32 1.5, %v1022
    %v1024 = vmul.f32 %v1019, %v1023
    %vm1025 = vweird.f32 %v1017
    %vm1026 = vweird.f32 %v1019
    %vm1027 = vmor %vm1025, %vm1026
    %v1028 = vsel %vm1027, %v1019, %v1024
    %v1029 = vrsqrt.pop %v1018
    %v1030 = vmul.f32 %v1029, %v1018
    %v1031 = vmul.f32 %v1030, %v1029
    %v1032 = vmul.f32 0.5, %v1031
    %v1033 = vsub.f32 1.5, %v1032
    %v1034 = vmul.f32 %v1029, %v1033
    %vm1035 = vweird.f32 %v1018
    %vm1036 = vweird.f32 %v1029
    %vm1037 = vmor %vm1035, %vm1036
    %v1038 = vsel %vm1037, %v1029, %v1034
    %v1039 = vmul.f32 %v1005, %v1028
    %v1040 = vmul.f32 %v1006, %v1038
    %v1042 = vperm.slane %v988, 0
    %v1044 = vmul.f32 %v1039, %v1042
    %v1045 = vmul.f32 %v1040, %v1042
    %v1047 = vperm.slane %v989, 0
    %v1049 = vadd.f32 %v1044, %v1047
    %v1050 = vadd.f32 %v1045, %v1047
    %v1051 = vld [vmem:[%s15] sm:$0xff]
    %v1052 = vld [vmem:[%s15 + $0x8] sm:$0xff]
    %v1053 = vld [vmem:[%s15 + $0x10] sm:$0xff]
    %v1054 = vld [vmem:[%s15 + $0x18] sm:$0xff]
    %v1055 = vld [vmem:[%s16] sm:$0x1]
    %v1057 = vperm.slane %v1055, 0
    %v1060 = vsel %vm102, %v1049, 0
    %v1063 = vsel %vm102, %v1050, 0
    %1065 = vmatpush.msra.mxu0 0.0
    %1066 = vmatpush.msra.mxu0 0.0
    %1067 = vmatpush.msra.mxu0 0.0
    %1068 = vmatpush.msra.mxu0 0.0
    %1069 = vmatpush.msra.mxu0 0.0
    %1070 = vmatpush.msra.mxu0 0.0
    %1071 = vmatpush.msra.mxu0 0.0
    %1072 = vmatpush.msra.mxu0 0.0
    %1073 = vmatpush.msra.mxu0 0.0
    %1074 = vmatpush.msra.mxu0 0.0
    %1075 = vmatpush.msra.mxu0 0.0
    %1076 = vmatpush.msra.mxu0 0.0
    %1077 = vmatpush.msra.mxu0 %v1054
    %1078 = vmatpush.msra.mxu0 %v1053
    %1079 = vmatpush.msra.mxu0 %v1052
    %1080 = vmatpush.msra.mxu0 %v1051
    %1081 = vmatmul.f32.gmra.mxu0 %v1060
    %v1082 = vpop.f32.mrf.mxu0
    %v1083 = vadd.f32 %v1057, %v1082
    %1084 = vmatmul.f32.gmra.mxu0 %v1063
    %v1085 = vpop.f32.mrf.mxu0
    %v1086 = vadd.f32 %v1057, %v1085
    %1087 = vdwg.mxu0
    %v1088 = vmax.f32 %v1083, 0.0
    %v1089 = vmax.f32 %v1086, 0.0
    %v1090 = vld [vmem:[%s17] sm:$0xff]
    %v1091 = vld [vmem:[%s17 + $0x8] sm:$0xff]
    %v1092 = vld [vmem:[%s17 + $0x10] sm:$0xff]
    %v1093 = vld [vmem:[%s17 + $0x18] sm:$0xff]
    %v1094 = vld [vmem:[%s17 + $0x20] sm:$0xff]
    %v1095 = vld [vmem:[%s17 + $0x28] sm:$0xff]
    %v1096 = vld [vmem:[%s17 + $0x30] sm:$0xff]
    %v1097 = vld [vmem:[%s17 + $0x38] sm:$0xff]
    %v1098 = vld [vmem:[%s18] sm:$0x1]
    %v1100 = vperm.slane %v1098, 0
    %vm1102 = vcmask 523264
    %v1104 = vsel %vm1102, %v1088, 0
    %v1107 = vsel %vm1102, %v1089, 0
    %1109 = vmatpush.msra.mxu0 0.0
    %1110 = vmatpush.msra.mxu0 0.0
    %1111 = vmatpush.msra.mxu0 0.0
    %1112 = vmatpush.msra.mxu0 0.0
    %1113 = vmatpush.msra.mxu0 0.0
    %1114 = vmatpush.msra.mxu0 0.0
    %1115 = vmatpush.msra.mxu0 0.0
    %1116 = vmatpush.msra.mxu0 0.0
    %1117 = vmatpush.msra.mxu0 %v1097
    %1118 = vmatpush.msra.mxu0 %v1096
    %1119 = vmatpush.msra.mxu0 %v1095
    %1120 = vmatpush.msra.mxu0 %v1094
    %1121 = vmatpush.msra.mxu0 %v1093
    %1122 = vmatpush.msra.mxu0 %v1092
    %1123 = vmatpush.msra.mxu0 %v1091
    %1124 = vmatpush.msra.mxu0 %v1090
    %1125 = vmatmul.f32.gmra.mxu0 %v1104
    %v1126 = vpop.f32.mrf.mxu0
    %v1127 = vadd.f32 %v1100, %v1126
    %1128 = vmatmul.f32.gmra.mxu0 %v1107
    %v1129 = vpop.f32.mrf.mxu0
    %v1130 = vadd.f32 %v1100, %v1129
    %1131 = vdwg.mxu0
    %v1132 = vadd.f32 %v1049, %v1127
    %v1133 = vadd.f32 %v1050, %v1130
    %v1134 = vld [vmem:[%s19] sm:$0x1]
    %v1135 = vld [vmem:[%s20] sm:$0x1]
    %v1136 = vsel %vm102, %v1132, 0.0
    %1137 = vadd.xlane.f32.xlu0 %v1136
    %v1138 = vpop.xlane.xlu0 %1137
    %v1139 = vsel %vm102, %v1133, 0.0
    %1140 = vadd.xlane.f32.xlu0 %v1139
    %v1141 = vpop.xlane.xlu0 %1140
    %v1142 = vmul.f32 %v1138, %v1002
    %v1143 = vmul.f32 %v1141, %v1002
    %v1144 = vsub.f32 %v1132, %v1142
    %v1145 = vsub.f32 %v1133, %v1143
    %v1146 = vmul.f32 %v1144, %v1144
    %v1147 = vmul.f32 %v1145, %v1145
    %v1148 = vsel %vm102, %v1146, 0.0
    %1149 = vadd.xlane.f32.xlu0 %v1148
    %v1150 = vpop.xlane.xlu0 %1149
    %v1151 = vsel %vm102, %v1147, 0.0
    %1152 = vadd.xlane.f32.xlu0 %v1151
    %v1153 = vpop.xlane.xlu0 %1152
    %v1154 = vmul.f32 %v1150, %v1002
    %v1155 = vmul.f32 %v1153, %v1002
    %v1156 = vadd.f32 %v1154, 1e-05
    %v1157 = vadd.f32 %v1155, 1e-05
    %v1158 = vrsqrt.pop %v1156
    %v1159 = vmul.f32 %v1158, %v1156
    %v1160 = vmul.f32 %v1159, %v1158
    %v1161 = vmul.f32 0.5, %v1160
    %v1162 = vsub.f32 1.5, %v1161
    %v1163 = vmul.f32 %v1158, %v1162
    %vm1164 = vweird.f32 %v1156
    %vm1165 = vweird.f32 %v1158
    %vm1166 = vmor %vm1164, %vm1165
    %v1167 = vsel %vm1166, %v1158, %v1163
    %v1168 = vrsqrt.pop %v1157
    %v1169 = vmul.f32 %v1168, %v1157
    %v1170 = vmul.f32 %v1169, %v1168
    %v1171 = vmul.f32 0.5, %v1170
    %v1172 = vsub.f32 1.5, %v1171
    %v1173 = vmul.f32 %v1168, %v1172
    %vm1174 = vweird.f32 %v1157
    %vm1175 = vweird.f32 %v1168
    %vm1176 = vmor %vm1174, %vm1175
    %v1177 = vsel %vm1176, %v1168, %v1173
    %v1178 = vmul.f32 %v1144, %v1167
    %v1179 = vmul.f32 %v1145, %v1177
    %v1181 = vperm.slane %v1134, 0
    %v1183 = vmul.f32 %v1178, %v1181
    %v1184 = vmul.f32 %v1179, %v1181
    %v1186 = vperm.slane %v1135, 0
    %v1188 = vadd.f32 %v1183, %v1186
    %v1189 = vadd.f32 %v1184, %v1186
    %s1190 = scalar_lea.vmem %s5, 128
    %v1191 = vld [vmem:[%s1190] sm:$0xff]
    %v1192 = vld [vmem:[%s1190 + $0x8] sm:$0xff]
    %v1193 = vld [vmem:[%s1190 + $0x10] sm:$0xff]
    %v1194 = vld [vmem:[%s1190 + $0x18] sm:$0xff]
    %s1195 = scalar_lea.vmem %s6, 4
    %v1196 = vld [vmem:[%s1195] sm:$0x1]
    %v1198 = vperm.slane %v1196, 0
    %v1201 = vsel %vm102, %v1188, 0
    %v1204 = vsel %vm102, %v1189, 0
    %1206 = vmatpush.msra.mxu0 0.0
    %1207 = vmatpush.msra.mxu0 0.0
    %1208 = vmatpush.msra.mxu0 0.0
    %1209 = vmatpush.msra.mxu0 0.0
    %1210 = vmatpush.msra.mxu0 0.0
    %1211 = vmatpush.msra.mxu0 0.0
    %1212 = vmatpush.msra.mxu0 0.0
    %1213 = vmatpush.msra.mxu0 0.0
    %1214 = vmatpush.msra.mxu0 0.0
    %1215 = vmatpush.msra.mxu0 0.0
    %1216 = vmatpush.msra.mxu0 0.0
    %1217 = vmatpush.msra.mxu0 0.0
    %1218 = vmatpush.msra.mxu0 %v1194
    %1219 = vmatpush.msra.mxu0 %v1193
    %1220 = vmatpush.msra.mxu0 %v1192
    %1221 = vmatpush.msra.mxu0 %v1191
    %1222 = vmatmul.f32.gmra.mxu0 %v1201
    %v1223 = vpop.f32.mrf.mxu0
    %v1224 = vadd.f32 %v1198, %v1223
    %1225 = vmatmul.f32.gmra.mxu0 %v1204
    %v1226 = vpop.f32.mrf.mxu0
    %v1227 = vadd.f32 %v1198, %v1226
    %1228 = vdwg.mxu0
    %s1229 = scalar_lea.vmem %s7, 128
    %v1230 = vld [vmem:[%s1229] sm:$0xff]
    %v1231 = vld [vmem:[%s1229 + $0x8] sm:$0xff]
    %v1232 = vld [vmem:[%s1229 + $0x10] sm:$0xff]
    %v1233 = vld [vmem:[%s1229 + $0x18] sm:$0xff]
    %s1234 = scalar_lea.vmem %s8, 4
    %v1235 = vld [vmem:[%s1234] sm:$0x1]
    %v1237 = vperm.slane %v1235, 0
    %1239 = vmatpush.msra.mxu0 0.0
    %1240 = vmatpush.msra.mxu0 0.0
    %1241 = vmatpush.msra.mxu0 0.0
    %1242 = vmatpush.msra.mxu0 0.0
    %1243 = vmatpush.msra.mxu0 0.0
    %1244 = vmatpush.msra.mxu0 0.0
    %1245 = vmatpush.msra.mxu0 0.0
    %1246 = vmatpush.msra.mxu0 0.0
    %1247 = vmatpush.msra.mxu0 0.0
    %1248 = vmatpush.msra.mxu0 0.0
    %1249 = vmatpush.msra.mxu0 0.0
    %1250 = vmatpush.msra.mxu0 0.0
    %1251 = vmatpush.msra.mxu0 %v1233
    %1252 = vmatpush.msra.mxu0 %v1232
    %1253 = vmatpush.msra.mxu0 %v1231
    %1254 = vmatpush.msra.mxu0 %v1230
    %1255 = vmatmul.f32.gmra.mxu0 %v1201
    %v1256 = vpop.f32.mrf.mxu0
    %v1257 = vadd.f32 %v1237, %v1256
    %1258 = vmatmul.f32.gmra.mxu0 %v1204
    %v1259 = vpop.f32.mrf.mxu0
    %v1260 = vadd.f32 %v1237, %v1259
    %1261 = vdwg.mxu0
    %s1262 = scalar_lea.vmem %s9, 128
    %v1263 = vld [vmem:[%s1262] sm:$0xff]
    %v1264 = vld [vmem:[%s1262 + $0x8] sm:$0xff]
    %v1265 = vld [vmem:[%s1262 + $0x10] sm:$0xff]
    %v1266 = vld [vmem:[%s1262 + $0x18] sm:$0xff]
    %s1267 = scalar_lea.vmem %s10, 4
    %v1268 = vld [vmem:[%s1267] sm:$0x1]
    %v1270 = vperm.slane %v1268, 0
    %1272 = vmatpush.msra.mxu0 0.0
    %1273 = vmatpush.msra.mxu0 0.0
    %1274 = vmatpush.msra.mxu0 0.0
    %1275 = vmatpush.msra.mxu0 0.0
    %1276 = vmatpush.msra.mxu0 0.0
    %1277 = vmatpush.msra.mxu0 0.0
    %1278 = vmatpush.msra.mxu0 0.0
    %1279 = vmatpush.msra.mxu0 0.0
    %1280 = vmatpush.msra.mxu0 0.0
    %1281 = vmatpush.msra.mxu0 0.0
    %1282 = vmatpush.msra.mxu0 0.0
    %1283 = vmatpush.msra.mxu0 0.0
    %1284 = vmatpush.msra.mxu0 %v1266
    %1285 = vmatpush.msra.mxu0 %v1265
    %1286 = vmatpush.msra.mxu0 %v1264
    %1287 = vmatpush.msra.mxu0 %v1263
    %1288 = vmatmul.f32.gmra.mxu0 %v1201
    %v1289 = vpop.f32.mrf.mxu0
    %v1290 = vadd.f32 %v1270, %v1289
    %1291 = vmatmul.f32.gmra.mxu0 %v1204
    %v1292 = vpop.f32.mrf.mxu0
    %v1293 = vadd.f32 %v1270, %v1292
    %1294 = vdwg.mxu0
    %v1296 = vsel %vm194, %v1224, 0
    %v1299 = vsel %vm194, %v1227, 0
    %v1302 = vsel %vm194, %v1257, 0
    %v1305 = vsel %vm194, %v1260, 0
    %1307 = vmatpush.xpose.msra.mxu0 0.0
    %1308 = vmatpush.xpose.msra.mxu0 0.0
    %1309 = vmatpush.xpose.msra.mxu0 0.0
    %1310 = vmatpush.xpose.msra.mxu0 0.0
    %1311 = vmatpush.xpose.msra.mxu0 0.0
    %1312 = vmatpush.xpose.msra.mxu0 0.0
    %1313 = vmatpush.xpose.msra.mxu0 0.0
    %1314 = vmatpush.xpose.msra.mxu0 0.0
    %1315 = vmatpush.xpose.msra.mxu0 0.0
    %1316 = vmatpush.xpose.msra.mxu0 0.0
    %1317 = vmatpush.xpose.msra.mxu0 0.0
    %1318 = vmatpush.xpose.msra.mxu0 0.0
    %1319 = vmatpush.xpose.msra.mxu0 0.0
    %1320 = vmatpush.xpose.msra.mxu0 0.0
    %1321 = vmatpush.xpose.msra.mxu0 %v1305
    %1322 = vmatpush.xpose.msra.mxu0 %v1302
    %1323 = vmatmul.f32.gmra.mxu0 %v1296
    %v1324 = vpop.f32.mrf.mxu0
    %v1325 = vadd.f32 0.0, %v1324
    %1326 = vmatmul.f32.gmra.mxu0 %v1299
    %v1327 = vpop.f32.mrf.mxu0
    %v1328 = vadd.f32 0.0, %v1327
    %1329 = vdwg.mxu0
    %v1330 = vmul.f32 %v1325, 0.35355338
    %v1331 = vmul.f32 %v1328, 0.35355338
    %v1332 = vadd.f32 %v1330, %v92
    %v1333 = vadd.f32 %v1331, %v93
    %v1334 = vsel %vm234, %v1332, -inf
    %1335 = vmax.xlane.f32.xlu0 %v1334
    %v1336 = vpop.xlane.xlu0 %1335
    %v1337 = vsel %vm234, %v1333, -inf
    %1338 = vmax.xlane.f32.xlu0 %v1337
    %v1339 = vpop.xlane.xlu0 %1338
    %v1340 = vsub.f32 %v1332, %v1336
    %v1341 = vsub.f32 %v1333, %v1339
    %v1342 = vmul.f32 %v1340, 1.442695
    %v1343 = vpow.pop %v1342
    %v1344 = vmul.f32 %v1341, 1.442695
    %v1345 = vpow.pop %v1344
    %v1346 = vsel %vm234, %v1343, 0.0
    %1347 = vadd.xlane.f32.xlu0 %v1346
    %v1348 = vpop.xlane.xlu0 %1347
    %v1349 = vsel %vm234, %v1345, 0.0
    %1350 = vadd.xlane.f32.xlu0 %v1349
    %v1351 = vpop.xlane.xlu0 %1350
    %v1352 = vrcp.pop %v1348
    %v1353 = vrcp.pop %v1351
    %v1354 = vmul.f32 %v1343, %v1352
    %v1355 = vmul.f32 %v1345, %v1353
    %v1357 = vsel %vm234, %v1354, 0
    %v1360 = vsel %vm234, %v1355, 0
    %1362 = vmatpush.msra.mxu0 0.0
    %1363 = vmatpush.msra.mxu0 0.0
    %1364 = vmatpush.msra.mxu0 0.0
    %1365 = vmatpush.msra.mxu0 0.0
    %1366 = vmatpush.msra.mxu0 0.0
    %1367 = vmatpush.msra.mxu0 0.0
    %1368 = vmatpush.msra.mxu0 0.0
    %1369 = vmatpush.msra.mxu0 0.0
    %1370 = vmatpush.msra.mxu0 0.0
    %1371 = vmatpush.msra.mxu0 0.0
    %1372 = vmatpush.msra.mxu0 0.0
    %1373 = vmatpush.msra.mxu0 0.0
    %1374 = vmatpush.msra.mxu0 0.0
    %1375 = vmatpush.msra.mxu0 0.0
    %1376 = vmatpush.msra.mxu0 %v1293
    %1377 = vmatpush.msra.mxu0 %v1290
    %1378 = vmatmul.f32.gmra.mxu0 %v1357
    %v1379 = vpop.f32.mrf.mxu0
    %v1380 = vadd.f32 0.0, %v1379
    %1381 = vmatmul.f32.gmra.mxu0 %v1360
    %v1382 = vpop.f32.mrf.mxu0
    %v1383 = vadd.f32 0.0, %v1382
    %1384 = vdwg.mxu0
    %s1385 = scalar_lea.vmem %s11, 32
    %v1386 = vld [vmem:[%s1385] sm:$0xff]
    %s1387 = scalar_lea.vmem %s5, 160
    %v1388 = vld [vmem:[%s1387] sm:$0xff]
    %v1389 = vld [vmem:[%s1387 + $0x8] sm:$0xff]
    %v1390 = vld [vmem:[%s1387 + $0x10] sm:$0xff]
    %v1391 = vld [vmem:[%s1387 + $0x18] sm:$0xff]
    %s1392 = scalar_lea.vmem %s6, 5
    %v1393 = vld [vmem:[%s1392] sm:$0x1]
    %v1395 = vperm.slane %v1393, 0
    %1397 = vmatpush.msra.mxu0 0.0
    %1398 = vmatpush.msra.mxu0 0.0
    %1399 = vmatpush.msra.mxu0 0.0
    %1400 = vmatpush.msra.mxu0 0.0
    %1401 = vmatpush.msra.mxu0 0.0
    %1402 = vmatpush.msra.mxu0 0.0
    %1403 = vmatpush.msra.mxu0 0.0
    %1404 = vmatpush.msra.mxu0 0.0
    %1405 = vmatpush.msra.mxu0 0.0
    %1406 = vmatpush.msra.mxu0 0.0
    %1407 = vmatpush.msra.mxu0 0.0
    %1408 = vmatpush.msra.mxu0 0.0
    %1409 = vmatpush.msra.mxu0 %v1391
    %1410 = vmatpush.msra.mxu0 %v1390
    %1411 = vmatpush.msra.mxu0 %v1389
    %1412 = vmatpush.msra.mxu0 %v1388
    %1413 = vmatmul.f32.gmra.mxu0 %v1201
    %v1414 = vpop.f32.mrf.mxu0
    %v1415 = vadd.f32 %v1395, %v1414
    %1416 = vmatmul.f32.gmra.mxu0 %v1204
    %v1417 = vpop.f32.mrf.mxu0
    %v1418 = vadd.f32 %v1395, %v1417
    %1419 = vdwg.mxu0
    %s1420 = scalar_lea.vmem %s7, 160
    %v1421 = vld [vmem:[%s1420] sm:$0xff]
    %v1422 = vld [vmem:[%s1420 + $0x8] sm:$0xff]
    %v1423 = vld [vmem:[%s1420 + $0x10] sm:$0xff]
    %v1424 = vld [vmem:[%s1420 + $0x18] sm:$0xff]
    %s1425 = scalar_lea.vmem %s8, 5
    %v1426 = vld [vmem:[%s1425] sm:$0x1]
    %v1428 = vperm.slane %v1426, 0
    %1430 = vmatpush.msra.mxu0 0.0
    %1431 = vmatpush.msra.mxu0 0.0
    %1432 = vmatpush.msra.mxu0 0.0
    %1433 = vmatpush.msra.mxu0 0.0
    %1434 = vmatpush.msra.mxu0 0.0
    %1435 = vmatpush.msra.mxu0 0.0
    %1436 = vmatpush.msra.mxu0 0.0
    %1437 = vmatpush.msra.mxu0 0.0
    %1438 = vmatpush.msra.mxu0 0.0
    %1439 = vmatpush.msra.mxu0 0.0
    %1440 = vmatpush.msra.mxu0 0.0
    %1441 = vmatpush.msra.mxu0 0.0
    %1442 = vmatpush.msra.mxu0 %v1424
    %1443 = vmatpush.msra.mxu0 %v1423
    %1444 = vmatpush.msra.mxu0 %v1422
    %1445 = vmatpush.msra.mxu0 %v1421
    %1446 = vmatmul.f32.gmra.mxu0 %v1201
    %v1447 = vpop.f32.mrf.mxu0
    %v1448 = vadd.f32 %v1428, %v1447
    %1449 = vmatmul.f32.gmra.mxu0 %v1204
    %v1450 = vpop.f32.mrf.mxu0
    %v1451 = vadd.f32 %v1428, %v1450
    %1452 = vdwg.mxu0
    %s1453 = scalar_lea.vmem %s9, 160
    %v1454 = vld [vmem:[%s1453] sm:$0xff]
    %v1455 = vld [vmem:[%s1453 + $0x8] sm:$0xff]
    %v1456 = vld [vmem:[%s1453 + $0x10] sm:$0xff]
    %v1457 = vld [vmem:[%s1453 + $0x18] sm:$0xff]
    %s1458 = scalar_lea.vmem %s10, 5
    %v1459 = vld [vmem:[%s1458] sm:$0x1]
    %v1461 = vperm.slane %v1459, 0
    %1463 = vmatpush.msra.mxu0 0.0
    %1464 = vmatpush.msra.mxu0 0.0
    %1465 = vmatpush.msra.mxu0 0.0
    %1466 = vmatpush.msra.mxu0 0.0
    %1467 = vmatpush.msra.mxu0 0.0
    %1468 = vmatpush.msra.mxu0 0.0
    %1469 = vmatpush.msra.mxu0 0.0
    %1470 = vmatpush.msra.mxu0 0.0
    %1471 = vmatpush.msra.mxu0 0.0
    %1472 = vmatpush.msra.mxu0 0.0
    %1473 = vmatpush.msra.mxu0 0.0
    %1474 = vmatpush.msra.mxu0 0.0
    %1475 = vmatpush.msra.mxu0 %v1457
    %1476 = vmatpush.msra.mxu0 %v1456
    %1477 = vmatpush.msra.mxu0 %v1455
    %1478 = vmatpush.msra.mxu0 %v1454
    %1479 = vmatmul.f32.gmra.mxu0 %v1201
    %v1480 = vpop.f32.mrf.mxu0
    %v1481 = vadd.f32 %v1461, %v1480
    %1482 = vmatmul.f32.gmra.mxu0 %v1204
    %v1483 = vpop.f32.mrf.mxu0
    %v1484 = vadd.f32 %v1461, %v1483
    %1485 = vdwg.mxu0
    %v1487 = vsel %vm194, %v1415, 0
    %v1490 = vsel %vm194, %v1418, 0
    %v1493 = vsel %vm194, %v1448, 0
    %v1496 = vsel %vm194, %v1451, 0
    %1498 = vmatpush.xpose.msra.mxu0 0.0
    %1499 = vmatpush.xpose.msra.mxu0 0.0
    %1500 = vmatpush.xpose.msra.mxu0 0.0
    %1501 = vmatpush.xpose.msra.mxu0 0.0
    %1502 = vmatpush.xpose.msra.mxu0 0.0
    %1503 = vmatpush.xpose.msra.mxu0 0.0
    %1504 = vmatpush.xpose.msra.mxu0 0.0
    %1505 = vmatpush.xpose.msra.mxu0 0.0
    %1506 = vmatpush.xpose.msra.mxu0 0.0
    %1507 = vmatpush.xpose.msra.mxu0 0.0
    %1508 = vmatpush.xpose.msra.mxu0 0.0
    %1509 = vmatpush.xpose.msra.mxu0 0.0
    %1510 = vmatpush.xpose.msra.mxu0 0.0
    %1511 = vmatpush.xpose.msra.mxu0 0.0
    %1512 = vmatpush.xpose.msra.mxu0 %v1496
    %1513 = vmatpush.xpose.msra.mxu0 %v1493
    %1514 = vmatmul.f32.gmra.mxu0 %v1487
    %v1515 = vpop.f32.mrf.mxu0
    %v1516 = vadd.f32 0.0, %v1515
    %1517 = vmatmul.f32.gmra.mxu0 %v1490
    %v1518 = vpop.f32.mrf.mxu0
    %v1519 = vadd.f32 0.0, %v1518
    %1520 = vdwg.mxu0
    %v1521 = vmul.f32 %v1516, 0.35355338
    %v1522 = vmul.f32 %v1519, 0.35355338
    %v1523 = vadd.f32 %v1521, %v92
    %v1524 = vadd.f32 %v1522, %v93
    %v1525 = vsel %vm234, %v1523, -inf
    %1526 = vmax.xlane.f32.xlu0 %v1525
    %v1527 = vpop.xlane.xlu0 %1526
    %v1528 = vsel %vm234, %v1524, -inf
    %1529 = vmax.xlane.f32.xlu0 %v1528
    %v1530 = vpop.xlane.xlu0 %1529
    %v1531 = vsub.f32 %v1523, %v1527
    %v1532 = vsub.f32 %v1524, %v1530
    %v1533 = vmul.f32 %v1531, 1.442695
    %v1534 = vpow.pop %v1533
    %v1535 = vmul.f32 %v1532, 1.442695
    %v1536 = vpow.pop %v1535
    %v1537 = vsel %vm234, %v1534, 0.0
    %1538 = vadd.xlane.f32.xlu0 %v1537
    %v1539 = vpop.xlane.xlu0 %1538
    %v1540 = vsel %vm234, %v1536, 0.0
    %1541 = vadd.xlane.f32.xlu0 %v1540
    %v1542 = vpop.xlane.xlu0 %1541
    %v1543 = vrcp.pop %v1539
    %v1544 = vrcp.pop %v1542
    %v1545 = vmul.f32 %v1534, %v1543
    %v1546 = vmul.f32 %v1536, %v1544
    %v1548 = vsel %vm234, %v1545, 0
    %v1551 = vsel %vm234, %v1546, 0
    %1553 = vmatpush.msra.mxu0 0.0
    %1554 = vmatpush.msra.mxu0 0.0
    %1555 = vmatpush.msra.mxu0 0.0
    %1556 = vmatpush.msra.mxu0 0.0
    %1557 = vmatpush.msra.mxu0 0.0
    %1558 = vmatpush.msra.mxu0 0.0
    %1559 = vmatpush.msra.mxu0 0.0
    %1560 = vmatpush.msra.mxu0 0.0
    %1561 = vmatpush.msra.mxu0 0.0
    %1562 = vmatpush.msra.mxu0 0.0
    %1563 = vmatpush.msra.mxu0 0.0
    %1564 = vmatpush.msra.mxu0 0.0
    %1565 = vmatpush.msra.mxu0 0.0
    %1566 = vmatpush.msra.mxu0 0.0
    %1567 = vmatpush.msra.mxu0 %v1484
    %1568 = vmatpush.msra.mxu0 %v1481
    %1569 = vmatmul.f32.gmra.mxu0 %v1548
    %v1570 = vpop.f32.mrf.mxu0
    %v1571 = vadd.f32 0.0, %v1570
    %1572 = vmatmul.f32.gmra.mxu0 %v1551
    %v1573 = vpop.f32.mrf.mxu0
    %v1574 = vadd.f32 0.0, %v1573
    %1575 = vdwg.mxu0
    %s1576 = scalar_lea.vmem %s11, 40
    %v1577 = vld [vmem:[%s1576] sm:$0xff]
    %v1579 = vsel %vm194, %v1571, 0
    %v1582 = vsel %vm194, %v1574, 0
    %1584 = vmatpush.msra.mxu0 0.0
    %1585 = vmatpush.msra.mxu0 0.0
    %1586 = vmatpush.msra.mxu0 0.0
    %1587 = vmatpush.msra.mxu0 0.0
    %1588 = vmatpush.msra.mxu0 0.0
    %1589 = vmatpush.msra.mxu0 0.0
    %1590 = vmatpush.msra.mxu0 0.0
    %1591 = vmatpush.msra.mxu0 0.0
    %1592 = vmatpush.msra.mxu0 0.0
    %1593 = vmatpush.msra.mxu0 0.0
    %1594 = vmatpush.msra.mxu0 0.0
    %1595 = vmatpush.msra.mxu0 0.0
    %1596 = vmatpush.msra.mxu0 0.0
    %1597 = vmatpush.msra.mxu0 0.0
    %1598 = vmatpush.msra.mxu0 0.0
    %1599 = vmatpush.msra.mxu0 %v1577
    %1600 = vmatmul.f32.gmra.mxu0 %v1579
    %v1601 = vpop.f32.mrf.mxu0
    %v1602 = vadd.f32 0.0, %v1601
    %1603 = vmatmul.f32.gmra.mxu0 %v1582
    %v1604 = vpop.f32.mrf.mxu0
    %v1605 = vadd.f32 0.0, %v1604
    %1606 = vdwg.mxu0
    %v1608 = vsel %vm194, %v1380, 0
    %v1611 = vsel %vm194, %v1383, 0
    %1613 = vmatpush.msra.mxu0 0.0
    %1614 = vmatpush.msra.mxu0 0.0
    %1615 = vmatpush.msra.mxu0 0.0
    %1616 = vmatpush.msra.mxu0 0.0
    %1617 = vmatpush.msra.mxu0 0.0
    %1618 = vmatpush.msra.mxu0 0.0
    %1619 = vmatpush.msra.mxu0 0.0
    %1620 = vmatpush.msra.mxu0 0.0
    %1621 = vmatpush.msra.mxu0 0.0
    %1622 = vmatpush.msra.mxu0 0.0
    %1623 = vmatpush.msra.mxu0 0.0
    %1624 = vmatpush.msra.mxu0 0.0
    %1625 = vmatpush.msra.mxu0 0.0
    %1626 = vmatpush.msra.mxu0 0.0
    %1627 = vmatpush.msra.mxu0 0.0
    %1628 = vmatpush.msra.mxu0 %v1386
    %1629 = vmatmul.f32.gmra.mxu0 %v1608
    %v1630 = vpop.f32.mrf.mxu0
    %v1631 = vadd.f32 %v1602, %v1630
    %1632 = vmatmul.f32.gmra.mxu0 %v1611
    %v1633 = vpop.f32.mrf.mxu0
    %v1634 = vadd.f32 %v1605, %v1633
    %1635 = vdwg.mxu0
    %s1636 = scalar_lea.vmem %s5, 192
    %v1637 = vld [vmem:[%s1636] sm:$0xff]
    %v1638 = vld [vmem:[%s1636 + $0x8] sm:$0xff]
    %v1639 = vld [vmem:[%s1636 + $0x10] sm:$0xff]
    %v1640 = vld [vmem:[%s1636 + $0x18] sm:$0xff]
    %s1641 = scalar_lea.vmem %s6, 6
    %v1642 = vld [vmem:[%s1641] sm:$0x1]
    %v1644 = vperm.slane %v1642, 0
    %1646 = vmatpush.msra.mxu0 0.0
    %1647 = vmatpush.msra.mxu0 0.0
    %1648 = vmatpush.msra.mxu0 0.0
    %1649 = vmatpush.msra.mxu0 0.0
    %1650 = vmatpush.msra.mxu0 0.0
    %1651 = vmatpush.msra.mxu0 0.0
    %1652 = vmatpush.msra.mxu0 0.0
    %1653 = vmatpush.msra.mxu0 0.0
    %1654 = vmatpush.msra.mxu0 0.0
    %1655 = vmatpush.msra.mxu0 0.0
    %1656 = vmatpush.msra.mxu0 0.0
    %1657 = vmatpush.msra.mxu0 0.0
    %1658 = vmatpush.msra.mxu0 %v1640
    %1659 = vmatpush.msra.mxu0 %v1639
    %1660 = vmatpush.msra.mxu0 %v1638
    %1661 = vmatpush.msra.mxu0 %v1637
    %1662 = vmatmul.f32.gmra.mxu0 %v1201
    %v1663 = vpop.f32.mrf.mxu0
    %v1664 = vadd.f32 %v1644, %v1663
    %1665 = vmatmul.f32.gmra.mxu0 %v1204
    %v1666 = vpop.f32.mrf.mxu0
    %v1667 = vadd.f32 %v1644, %v1666
    %1668 = vdwg.mxu0
    %s1669 = scalar_lea.vmem %s7, 192
    %v1670 = vld [vmem:[%s1669] sm:$0xff]
    %v1671 = vld [vmem:[%s1669 + $0x8] sm:$0xff]
    %v1672 = vld [vmem:[%s1669 + $0x10] sm:$0xff]
    %v1673 = vld [vmem:[%s1669 + $0x18] sm:$0xff]
    %s1674 = scalar_lea.vmem %s8, 6
    %v1675 = vld [vmem:[%s1674] sm:$0x1]
    %v1677 = vperm.slane %v1675, 0
    %1679 = vmatpush.msra.mxu0 0.0
    %1680 = vmatpush.msra.mxu0 0.0
    %1681 = vmatpush.msra.mxu0 0.0
    %1682 = vmatpush.msra.mxu0 0.0
    %1683 = vmatpush.msra.mxu0 0.0
    %1684 = vmatpush.msra.mxu0 0.0
    %1685 = vmatpush.msra.mxu0 0.0
    %1686 = vmatpush.msra.mxu0 0.0
    %1687 = vmatpush.msra.mxu0 0.0
    %1688 = vmatpush.msra.mxu0 0.0
    %1689 = vmatpush.msra.mxu0 0.0
    %1690 = vmatpush.msra.mxu0 0.0
    %1691 = vmatpush.msra.mxu0 %v1673
    %1692 = vmatpush.msra.mxu0 %v1672
    %1693 = vmatpush.msra.mxu0 %v1671
    %1694 = vmatpush.msra.mxu0 %v1670
    %1695 = vmatmul.f32.gmra.mxu0 %v1201
    %v1696 = vpop.f32.mrf.mxu0
    %v1697 = vadd.f32 %v1677, %v1696
    %1698 = vmatmul.f32.gmra.mxu0 %v1204
    %v1699 = vpop.f32.mrf.mxu0
    %v1700 = vadd.f32 %v1677, %v1699
    %1701 = vdwg.mxu0
    %s1702 = scalar_lea.vmem %s9, 192
    %v1703 = vld [vmem:[%s1702] sm:$0xff]
    %v1704 = vld [vmem:[%s1702 + $0x8] sm:$0xff]
    %v1705 = vld [vmem:[%s1702 + $0x10] sm:$0xff]
    %v1706 = vld [vmem:[%s1702 + $0x18] sm:$0xff]
    %s1707 = scalar_lea.vmem %s10, 6
    %v1708 = vld [vmem:[%s1707] sm:$0x1]
    %v1710 = vperm.slane %v1708, 0
    %1712 = vmatpush.msra.mxu0 0.0
    %1713 = vmatpush.msra.mxu0 0.0
    %1714 = vmatpush.msra.mxu0 0.0
    %1715 = vmatpush.msra.mxu0 0.0
    %1716 = vmatpush.msra.mxu0 0.0
    %1717 = vmatpush.msra.mxu0 0.0
    %1718 = vmatpush.msra.mxu0 0.0
    %1719 = vmatpush.msra.mxu0 0.0
    %1720 = vmatpush.msra.mxu0 0.0
    %1721 = vmatpush.msra.mxu0 0.0
    %1722 = vmatpush.msra.mxu0 0.0
    %1723 = vmatpush.msra.mxu0 0.0
    %1724 = vmatpush.msra.mxu0 %v1706
    %1725 = vmatpush.msra.mxu0 %v1705
    %1726 = vmatpush.msra.mxu0 %v1704
    %1727 = vmatpush.msra.mxu0 %v1703
    %1728 = vmatmul.f32.gmra.mxu0 %v1201
    %v1729 = vpop.f32.mrf.mxu0
    %v1730 = vadd.f32 %v1710, %v1729
    %1731 = vmatmul.f32.gmra.mxu0 %v1204
    %v1732 = vpop.f32.mrf.mxu0
    %v1733 = vadd.f32 %v1710, %v1732
    %1734 = vdwg.mxu0
    %v1736 = vsel %vm194, %v1664, 0
    %v1739 = vsel %vm194, %v1667, 0
    %v1742 = vsel %vm194, %v1697, 0
    %v1745 = vsel %vm194, %v1700, 0
    %1747 = vmatpush.xpose.msra.mxu0 0.0
    %1748 = vmatpush.xpose.msra.mxu0 0.0
    %1749 = vmatpush.xpose.msra.mxu0 0.0
    %1750 = vmatpush.xpose.msra.mxu0 0.0
    %1751 = vmatpush.xpose.msra.mxu0 0.0
    %1752 = vmatpush.xpose.msra.mxu0 0.0
    %1753 = vmatpush.xpose.msra.mxu0 0.0
    %1754 = vmatpush.xpose.msra.mxu0 0.0
    %1755 = vmatpush.xpose.msra.mxu0 0.0
    %1756 = vmatpush.xpose.msra.mxu0 0.0
    %1757 = vmatpush.xpose.msra.mxu0 0.0
    %1758 = vmatpush.xpose.msra.mxu0 0.0
    %1759 = vmatpush.xpose.msra.mxu0 0.0
    %1760 = vmatpush.xpose.msra.mxu0 0.0
    %1761 = vmatpush.xpose.msra.mxu0 %v1745
    %1762 = vmatpush.xpose.msra.mxu0 %v1742
    %1763 = vmatmul.f32.gmra.mxu0 %v1736
    %v1764 = vpop.f32.mrf.mxu0
    %v1765 = vadd.f32 0.0, %v1764
    %1766 = vmatmul.f32.gmra.mxu0 %v1739
    %v1767 = vpop.f32.mrf.mxu0
    %v1768 = vadd.f32 0.0, %v1767
    %1769 = vdwg.mxu0
    %v1770 = vmul.f32 %v1765, 0.35355338
    %v1771 = vmul.f32 %v1768, 0.35355338
    %v1772 = vadd.f32 %v1770, %v92
    %v1773 = vadd.f32 %v1771, %v93
    %v1774 = vsel %vm234, %v1772, -inf
    %1775 = vmax.xlane.f32.xlu0 %v1774
    %v1776 = vpop.xlane.xlu0 %1775
    %v1777 = vsel %vm234, %v1773, -inf
    %1778 = vmax.xlane.f32.xlu0 %v1777
    %v1779 = vpop.xlane.xlu0 %1778
    %v1780 = vsub.f32 %v1772, %v1776
    %v1781 = vsub.f32 %v1773, %v1779
    %v1782 = vmul.f32 %v1780, 1.442695
    %v1783 = vpow.pop %v1782
    %v1784 = vmul.f32 %v1781, 1.442695
    %v1785 = vpow.pop %v1784
    %v1786 = vsel %vm234, %v1783, 0.0
    %1787 = vadd.xlane.f32.xlu0 %v1786
    %v1788 = vpop.xlane.xlu0 %1787
    %v1789 = vsel %vm234, %v1785, 0.0
    %1790 = vadd.xlane.f32.xlu0 %v1789
    %v1791 = vpop.xlane.xlu0 %1790
    %v1792 = vrcp.pop %v1788
    %v1793 = vrcp.pop %v1791
    %v1794 = vmul.f32 %v1783, %v1792
    %v1795 = vmul.f32 %v1785, %v1793
    %v1797 = vsel %vm234, %v1794, 0
    %v1800 = vsel %vm234, %v1795, 0
    %1802 = vmatpush.msra.mxu0 0.0
    %1803 = vmatpush.msra.mxu0 0.0
    %1804 = vmatpush.msra.mxu0 0.0
    %1805 = vmatpush.msra.mxu0 0.0
    %1806 = vmatpush.msra.mxu0 0.0
    %1807 = vmatpush.msra.mxu0 0.0
    %1808 = vmatpush.msra.mxu0 0.0
    %1809 = vmatpush.msra.mxu0 0.0
    %1810 = vmatpush.msra.mxu0 0.0
    %1811 = vmatpush.msra.mxu0 0.0
    %1812 = vmatpush.msra.mxu0 0.0
    %1813 = vmatpush.msra.mxu0 0.0
    %1814 = vmatpush.msra.mxu0 0.0
    %1815 = vmatpush.msra.mxu0 0.0
    %1816 = vmatpush.msra.mxu0 %v1733
    %1817 = vmatpush.msra.mxu0 %v1730
    %1818 = vmatmul.f32.gmra.mxu0 %v1797
    %v1819 = vpop.f32.mrf.mxu0
    %v1820 = vadd.f32 0.0, %v1819
    %1821 = vmatmul.f32.gmra.mxu0 %v1800
    %v1822 = vpop.f32.mrf.mxu0
    %v1823 = vadd.f32 0.0, %v1822
    %1824 = vdwg.mxu0
    %s1825 = scalar_lea.vmem %s11, 48
    %v1826 = vld [vmem:[%s1825] sm:$0xff]
    %v1828 = vsel %vm194, %v1820, 0
    %v1831 = vsel %vm194, %v1823, 0
    %1833 = vmatpush.msra.mxu0 0.0
    %1834 = vmatpush.msra.mxu0 0.0
    %1835 = vmatpush.msra.mxu0 0.0
    %1836 = vmatpush.msra.mxu0 0.0
    %1837 = vmatpush.msra.mxu0 0.0
    %1838 = vmatpush.msra.mxu0 0.0
    %1839 = vmatpush.msra.mxu0 0.0
    %1840 = vmatpush.msra.mxu0 0.0
    %1841 = vmatpush.msra.mxu0 0.0
    %1842 = vmatpush.msra.mxu0 0.0
    %1843 = vmatpush.msra.mxu0 0.0
    %1844 = vmatpush.msra.mxu0 0.0
    %1845 = vmatpush.msra.mxu0 0.0
    %1846 = vmatpush.msra.mxu0 0.0
    %1847 = vmatpush.msra.mxu0 0.0
    %1848 = vmatpush.msra.mxu0 %v1826
    %1849 = vmatmul.f32.gmra.mxu0 %v1828
    %v1850 = vpop.f32.mrf.mxu0
    %v1851 = vadd.f32 0.0, %v1850
    %1852 = vmatmul.f32.gmra.mxu0 %v1831
    %v1853 = vpop.f32.mrf.mxu0
    %v1854 = vadd.f32 0.0, %v1853
    %1855 = vdwg.mxu0
    %v1856 = vadd.f32 %v1631, %v1851
    %v1857 = vadd.f32 %v1634, %v1854
    %s1858 = scalar_lea.vmem %s5, 224
    %v1859 = vld [vmem:[%s1858] sm:$0xff]
    %v1860 = vld [vmem:[%s1858 + $0x8] sm:$0xff]
    %v1861 = vld [vmem:[%s1858 + $0x10] sm:$0xff]
    %v1862 = vld [vmem:[%s1858 + $0x18] sm:$0xff]
    %s1863 = scalar_lea.vmem %s6, 7
    %v1864 = vld [vmem:[%s1863] sm:$0x1]
    %v1866 = vperm.slane %v1864, 0
    %1868 = vmatpush.msra.mxu0 0.0
    %1869 = vmatpush.msra.mxu0 0.0
    %1870 = vmatpush.msra.mxu0 0.0
    %1871 = vmatpush.msra.mxu0 0.0
    %1872 = vmatpush.msra.mxu0 0.0
    %1873 = vmatpush.msra.mxu0 0.0
    %1874 = vmatpush.msra.mxu0 0.0
    %1875 = vmatpush.msra.mxu0 0.0
    %1876 = vmatpush.msra.mxu0 0.0
    %1877 = vmatpush.msra.mxu0 0.0
    %1878 = vmatpush.msra.mxu0 0.0
    %1879 = vmatpush.msra.mxu0 0.0
    %1880 = vmatpush.msra.mxu0 %v1862
    %1881 = vmatpush.msra.mxu0 %v1861
    %1882 = vmatpush.msra.mxu0 %v1860
    %1883 = vmatpush.msra.mxu0 %v1859
    %1884 = vmatmul.f32.gmra.mxu0 %v1201
    %v1885 = vpop.f32.mrf.mxu0
    %v1886 = vadd.f32 %v1866, %v1885
    %1887 = vmatmul.f32.gmra.mxu0 %v1204
    %v1888 = vpop.f32.mrf.mxu0
    %v1889 = vadd.f32 %v1866, %v1888
    %1890 = vdwg.mxu0
    %s1891 = scalar_lea.vmem %s7, 224
    %v1892 = vld [vmem:[%s1891] sm:$0xff]
    %v1893 = vld [vmem:[%s1891 + $0x8] sm:$0xff]
    %v1894 = vld [vmem:[%s1891 + $0x10] sm:$0xff]
    %v1895 = vld [vmem:[%s1891 + $0x18] sm:$0xff]
    %s1896 = scalar_lea.vmem %s8, 7
    %v1897 = vld [vmem:[%s1896] sm:$0x1]
    %v1899 = vperm.slane %v1897, 0
    %1901 = vmatpush.msra.mxu0 0.0
    %1902 = vmatpush.msra.mxu0 0.0
    %1903 = vmatpush.msra.mxu0 0.0
    %1904 = vmatpush.msra.mxu0 0.0
    %1905 = vmatpush.msra.mxu0 0.0
    %1906 = vmatpush.msra.mxu0 0.0
    %1907 = vmatpush.msra.mxu0 0.0
    %1908 = vmatpush.msra.mxu0 0.0
    %1909 = vmatpush.msra.mxu0 0.0
    %1910 = vmatpush.msra.mxu0 0.0
    %1911 = vmatpush.msra.mxu0 0.0
    %1912 = vmatpush.msra.mxu0 0.0
    %1913 = vmatpush.msra.mxu0 %v1895
    %1914 = vmatpush.msra.mxu0 %v1894
    %1915 = vmatpush.msra.mxu0 %v1893
    %1916 = vmatpush.msra.mxu0 %v1892
    %1917 = vmatmul.f32.gmra.mxu0 %v1201
    %v1918 = vpop.f32.mrf.mxu0
    %v1919 = vadd.f32 %v1899, %v1918
    %1920 = vmatmul.f32.gmra.mxu0 %v1204
    %v1921 = vpop.f32.mrf.mxu0
    %v1922 = vadd.f32 %v1899, %v1921
    %1923 = vdwg.mxu0
    %s1924 = scalar_lea.vmem %s9, 224
    %v1925 = vld [vmem:[%s1924] sm:$0xff]
    %v1926 = vld [vmem:[%s1924 + $0x8] sm:$0xff]
    %v1927 = vld [vmem:[%s1924 + $0x10] sm:$0xff]
    %v1928 = vld [vmem:[%s1924 + $0x18] sm:$0xff]
    %s1929 = scalar_lea.vmem %s10, 7
    %v1930 = vld [vmem:[%s1929] sm:$0x1]
    %v1932 = vperm.slane %v1930, 0
    %1934 = vmatpush.msra.mxu0 0.0
    %1935 = vmatpush.msra.mxu0 0.0
    %1936 = vmatpush.msra.mxu0 0.0
    %1937 = vmatpush.msra.mxu0 0.0
    %1938 = vmatpush.msra.mxu0 0.0
    %1939 = vmatpush.msra.mxu0 0.0
    %1940 = vmatpush.msra.mxu0 0.0
    %1941 = vmatpush.msra.mxu0 0.0
    %1942 = vmatpush.msra.mxu0 0.0
    %1943 = vmatpush.msra.mxu0 0.0
    %1944 = vmatpush.msra.mxu0 0.0
    %1945 = vmatpush.msra.mxu0 0.0
    %1946 = vmatpush.msra.mxu0 %v1928
    %1947 = vmatpush.msra.mxu0 %v1927
    %1948 = vmatpush.msra.mxu0 %v1926
    %1949 = vmatpush.msra.mxu0 %v1925
    %1950 = vmatmul.f32.gmra.mxu0 %v1201
    %v1951 = vpop.f32.mrf.mxu0
    %v1952 = vadd.f32 %v1932, %v1951
    %1953 = vmatmul.f32.gmra.mxu0 %v1204
    %v1954 = vpop.f32.mrf.mxu0
    %v1955 = vadd.f32 %v1932, %v1954
    %1956 = vdwg.mxu0
    %v1958 = vsel %vm194, %v1886, 0
    %v1961 = vsel %vm194, %v1889, 0
    %v1964 = vsel %vm194, %v1919, 0
    %v1967 = vsel %vm194, %v1922, 0
    %1969 = vmatpush.xpose.msra.mxu0 0.0
    %1970 = vmatpush.xpose.msra.mxu0 0.0
    %1971 = vmatpush.xpose.msra.mxu0 0.0
    %1972 = vmatpush.xpose.msra.mxu0 0.0
    %1973 = vmatpush.xpose.msra.mxu0 0.0
    %1974 = vmatpush.xpose.msra.mxu0 0.0
    %1975 = vmatpush.xpose.msra.mxu0 0.0
    %1976 = vmatpush.xpose.msra.mxu0 0.0
    %1977 = vmatpush.xpose.msra.mxu0 0.0
    %1978 = vmatpush.xpose.msra.mxu0 0.0
    %1979 = vmatpush.xpose.msra.mxu0 0.0
    %1980 = vmatpush.xpose.msra.mxu0 0.0
    %1981 = vmatpush.xpose.msra.mxu0 0.0
    %1982 = vmatpush.xpose.msra.mxu0 0.0
    %1983 = vmatpush.xpose.msra.mxu0 %v1967
    %1984 = vmatpush.xpose.msra.mxu0 %v1964
    %1985 = vmatmul.f32.gmra.mxu0 %v1958
    %v1986 = vpop.f32.mrf.mxu0
    %v1987 = vadd.f32 0.0, %v1986
    %1988 = vmatmul.f32.gmra.mxu0 %v1961
    %v1989 = vpop.f32.mrf.mxu0
    %v1990 = vadd.f32 0.0, %v1989
    %1991 = vdwg.mxu0
    %v1992 = vmul.f32 %v1987, 0.35355338
    %v1993 = vmul.f32 %v1990, 0.35355338
    %v1994 = vadd.f32 %v1992, %v92
    %v1995 = vadd.f32 %v1993, %v93
    %v1996 = vsel %vm234, %v1994, -inf
    %1997 = vmax.xlane.f32.xlu0 %v1996
    %v1998 = vpop.xlane.xlu0 %1997
    %v1999 = vsel %vm234, %v1995, -inf
    %2000 = vmax.xlane.f32.xlu0 %v1999
    %v2001 = vpop.xlane.xlu0 %2000
    %v2002 = vsub.f32 %v1994, %v1998
    %v2003 = vsub.f32 %v1995, %v2001
    %v2004 = vmul.f32 %v2002, 1.442695
    %v2005 = vpow.pop %v2004
    %v2006 = vmul.f32 %v2003, 1.442695
    %v2007 = vpow.pop %v2006
    %v2008 = vsel %vm234, %v2005, 0.0
    %2009 = vadd.xlane.f32.xlu0 %v2008
    %v2010 = vpop.xlane.xlu0 %2009
    %v2011 = vsel %vm234, %v2007, 0.0
    %2012 = vadd.xlane.f32.xlu0 %v2011
    %v2013 = vpop.xlane.xlu0 %2012
    %v2014 = vrcp.pop %v2010
    %v2015 = vrcp.pop %v2013
    %v2016 = vmul.f32 %v2005, %v2014
    %v2017 = vmul.f32 %v2007, %v2015
    %v2019 = vsel %vm234, %v2016, 0
    %v2022 = vsel %vm234, %v2017, 0
    %2024 = vmatpush.msra.mxu0 0.0
    %2025 = vmatpush.msra.mxu0 0.0
    %2026 = vmatpush.msra.mxu0 0.0
    %2027 = vmatpush.msra.mxu0 0.0
    %2028 = vmatpush.msra.mxu0 0.0
    %2029 = vmatpush.msra.mxu0 0.0
    %2030 = vmatpush.msra.mxu0 0.0
    %2031 = vmatpush.msra.mxu0 0.0
    %2032 = vmatpush.msra.mxu0 0.0
    %2033 = vmatpush.msra.mxu0 0.0
    %2034 = vmatpush.msra.mxu0 0.0
    %2035 = vmatpush.msra.mxu0 0.0
    %2036 = vmatpush.msra.mxu0 0.0
    %2037 = vmatpush.msra.mxu0 0.0
    %2038 = vmatpush.msra.mxu0 %v1955
    %2039 = vmatpush.msra.mxu0 %v1952
    %2040 = vmatmul.f32.gmra.mxu0 %v2019
    %v2041 = vpop.f32.mrf.mxu0
    %v2042 = vadd.f32 0.0, %v2041
    %2043 = vmatmul.f32.gmra.mxu0 %v2022
    %v2044 = vpop.f32.mrf.mxu0
    %v2045 = vadd.f32 0.0, %v2044
    %2046 = vdwg.mxu0
    %s2047 = scalar_lea.vmem %s11, 56
    %v2048 = vld [vmem:[%s2047] sm:$0xff]
    %v2050 = vsel %vm194, %v2042, 0
    %v2053 = vsel %vm194, %v2045, 0
    %2055 = vmatpush.msra.mxu0 0.0
    %2056 = vmatpush.msra.mxu0 0.0
    %2057 = vmatpush.msra.mxu0 0.0
    %2058 = vmatpush.msra.mxu0 0.0
    %2059 = vmatpush.msra.mxu0 0.0
    %2060 = vmatpush.msra.mxu0 0.0
    %2061 = vmatpush.msra.mxu0 0.0
    %2062 = vmatpush.msra.mxu0 0.0
    %2063 = vmatpush.msra.mxu0 0.0
    %2064 = vmatpush.msra.mxu0 0.0
    %2065 = vmatpush.msra.mxu0 0.0
    %2066 = vmatpush.msra.mxu0 0.0
    %2067 = vmatpush.msra.mxu0 0.0
    %2068 = vmatpush.msra.mxu0 0.0
    %2069 = vmatpush.msra.mxu0 0.0
    %2070 = vmatpush.msra.mxu0 %v2048
    %2071 = vmatmul.f32.gmra.mxu0 %v2050
    %v2072 = vpop.f32.mrf.mxu0
    %v2073 = vadd.f32 0.0, %v2072
    %2074 = vmatmul.f32.gmra.mxu0 %v2053
    %v2075 = vpop.f32.mrf.mxu0
    %v2076 = vadd.f32 0.0, %v2075
    %2077 = vdwg.mxu0
    %v2078 = vadd.f32 %v1856, %v2073
    %v2079 = vadd.f32 %v1857, %v2076
    %s2080 = scalar_lea.vmem %s12, 1
    %v2081 = vld [vmem:[%s2080] sm:$0x1]
    %v2083 = vperm.slane %v2081, 0
    %v2085 = vadd.f32 %v2078, %v2083
    %v2086 = vadd.f32 %v2079, %v2083
    %v2087 = vadd.f32 %v1188, %v2085
    %v2088 = vadd.f32 %v1189, %v2086
    %s2089 = scalar_lea.vmem %s13, 1
    %v2090 = vld [vmem:[%s2089] sm:$0x1]
    %s2091 = scalar_lea.vmem %s14, 1
    %v2092 = vld [vmem:[%s2091] sm:$0x1]
    %v2093 = vsel %vm102, %v2087, 0.0
    %2094 = vadd.xlane.f32.xlu0 %v2093
    %v2095 = vpop.xlane.xlu0 %2094
    %v2096 = vsel %vm102, %v2088, 0.0
    %2097 = vadd.xlane.f32.xlu0 %v2096
    %v2098 = vpop.xlane.xlu0 %2097
    %v2099 = vmul.f32 %v2095, %v1002
    %v2100 = vmul.f32 %v2098, %v1002
    %v2101 = vsub.f32 %v2087, %v2099
    %v2102 = vsub.f32 %v2088, %v2100
    %v2103 = vmul.f32 %v2101, %v2101
    %v2104 = vmul.f32 %v2102, %v2102
    %v2105 = vsel %vm102, %v2103, 0.0
    %2106 = vadd.xlane.f32.xlu0 %v2105
    %v2107 = vpop.xlane.xlu0 %2106
    %v2108 = vsel %vm102, %v2104, 0.0
    %2109 = vadd.xlane.f32.xlu0 %v2108
    %v2110 = vpop.xlane.xlu0 %2109
    %v2111 = vmul.f32 %v2107, %v1002
    %v2112 = vmul.f32 %v2110, %v1002
    %v2113 = vadd.f32 %v2111, 1e-05
    %v2114 = vadd.f32 %v2112, 1e-05
    %v2115 = vrsqrt.pop %v2113
    %v2116 = vmul.f32 %v2115, %v2113
    %v2117 = vmul.f32 %v2116, %v2115
    %v2118 = vmul.f32 0.5, %v2117
    %v2119 = vsub.f32 1.5, %v2118
    %v2120 = vmul.f32 %v2115, %v2119
    %vm2121 = vweird.f32 %v2113
    %vm2122 = vweird.f32 %v2115
    %vm2123 = vmor %vm2121, %vm2122
    %v2124 = vsel %vm2123, %v2115, %v2120
    %v2125 = vrsqrt.pop %v2114
    %v2126 = vmul.f32 %v2125, %v2114
    %v2127 = vmul.f32 %v2126, %v2125
    %v2128 = vmul.f32 0.5, %v2127
    %v2129 = vsub.f32 1.5, %v2128
    %v2130 = vmul.f32 %v2125, %v2129
    %vm2131 = vweird.f32 %v2114
    %vm2132 = vweird.f32 %v2125
    %vm2133 = vmor %vm2131, %vm2132
    %v2134 = vsel %vm2133, %v2125, %v2130
    %v2135 = vmul.f32 %v2101, %v2124
    %v2136 = vmul.f32 %v2102, %v2134
    %v2138 = vperm.slane %v2090, 0
    %v2140 = vmul.f32 %v2135, %v2138
    %v2141 = vmul.f32 %v2136, %v2138
    %v2143 = vperm.slane %v2092, 0
    %v2145 = vadd.f32 %v2140, %v2143
    %v2146 = vadd.f32 %v2141, %v2143
    %s2147 = scalar_lea.vmem %s15, 32
    %v2148 = vld [vmem:[%s2147] sm:$0xff]
    %v2149 = vld [vmem:[%s2147 + $0x8] sm:$0xff]
    %v2150 = vld [vmem:[%s2147 + $0x10] sm:$0xff]
    %v2151 = vld [vmem:[%s2147 + $0x18] sm:$0xff]
    %s2152 = scalar_lea.vmem %s16, 1
    %v2153 = vld [vmem:[%s2152] sm:$0x1]
    %v2155 = vperm.slane %v2153, 0
    %v2158 = vsel %vm102, %v2145, 0
    %v2161 = vsel %vm102, %v2146, 0
    %2163 = vmatpush.msra.mxu0 0.0
    %2164 = vmatpush.msra.mxu0 0.0
    %2165 = vmatpush.msra.mxu0 0.0
    %2166 = vmatpush.msra.mxu0 0.0
    %2167 = vmatpush.msra.mxu0 0.0
    %2168 = vmatpush.msra.mxu0 0.0
    %2169 = vmatpush.msra.mxu0 0.0
    %2170 = vmatpush.msra.mxu0 0.0
    %2171 = vmatpush.msra.mxu0 0.0
    %2172 = vmatpush.msra.mxu0 0.0
    %2173 = vmatpush.msra.mxu0 0.0
    %2174 = vmatpush.msra.mxu0 0.0
    %2175 = vmatpush.msra.mxu0 %v2151
    %2176 = vmatpush.msra.mxu0 %v2150
    %2177 = vmatpush.msra.mxu0 %v2149
    %2178 = vmatpush.msra.mxu0 %v2148
    %2179 = vmatmul.f32.gmra.mxu0 %v2158
    %v2180 = vpop.f32.mrf.mxu0
    %v2181 = vadd.f32 %v2155, %v2180
    %2182 = vmatmul.f32.gmra.mxu0 %v2161
    %v2183 = vpop.f32.mrf.mxu0
    %v2184 = vadd.f32 %v2155, %v2183
    %2185 = vdwg.mxu0
    %v2186 = vmax.f32 %v2181, 0.0
    %v2187 = vmax.f32 %v2184, 0.0
    %s2188 = scalar_lea.vmem %s17, 64
    %v2189 = vld [vmem:[%s2188] sm:$0xff]
    %v2190 = vld [vmem:[%s2188 + $0x8] sm:$0xff]
    %v2191 = vld [vmem:[%s2188 + $0x10] sm:$0xff]
    %v2192 = vld [vmem:[%s2188 + $0x18] sm:$0xff]
    %v2193 = vld [vmem:[%s2188 + $0x20] sm:$0xff]
    %v2194 = vld [vmem:[%s2188 + $0x28] sm:$0xff]
    %v2195 = vld [vmem:[%s2188 + $0x30] sm:$0xff]
    %v2196 = vld [vmem:[%s2188 + $0x38] sm:$0xff]
    %s2197 = scalar_lea.vmem %s18, 1
    %v2198 = vld [vmem:[%s2197] sm:$0x1]
    %v2200 = vperm.slane %v2198, 0
    %v2203 = vsel %vm1102, %v2186, 0
    %v2206 = vsel %vm1102, %v2187, 0
    %2208 = vmatpush.msra.mxu0 0.0
    %2209 = vmatpush.msra.mxu0 0.0
    %2210 = vmatpush.msra.mxu0 0.0
    %2211 = vmatpush.msra.mxu0 0.0
    %2212 = vmatpush.msra.mxu0 0.0
    %2213 = vmatpush.msra.mxu0 0.0
    %2214 = vmatpush.msra.mxu0 0.0
    %2215 = vmatpush.msra.mxu0 0.0
    %2216 = vmatpush.msra.mxu0 %v2196
    %2217 = vmatpush.msra.mxu0 %v2195
    %2218 = vmatpush.msra.mxu0 %v2194
    %2219 = vmatpush.msra.mxu0 %v2193
    %2220 = vmatpush.msra.mxu0 %v2192
    %2221 = vmatpush.msra.mxu0 %v2191
    %2222 = vmatpush.msra.mxu0 %v2190
    %2223 = vmatpush.msra.mxu0 %v2189
    %2224 = vmatmul.f32.gmra.mxu0 %v2203
    %v2225 = vpop.f32.mrf.mxu0
    %v2226 = vadd.f32 %v2200, %v2225
    %2227 = vmatmul.f32.gmra.mxu0 %v2206
    %v2228 = vpop.f32.mrf.mxu0
    %v2229 = vadd.f32 %v2200, %v2228
    %2230 = vdwg.mxu0
    %v2231 = vadd.f32 %v2145, %v2226
    %v2232 = vadd.f32 %v2146, %v2229
    %s2233 = scalar_lea.vmem %s19, 1
    %v2234 = vld [vmem:[%s2233] sm:$0x1]
    %s2235 = scalar_lea.vmem %s20, 1
    %v2236 = vld [vmem:[%s2235] sm:$0x1]
    %v2237 = vsel %vm102, %v2231, 0.0
    %2238 = vadd.xlane.f32.xlu0 %v2237
    %v2239 = vpop.xlane.xlu0 %2238
    %v2240 = vsel %vm102, %v2232, 0.0
    %2241 = vadd.xlane.f32.xlu0 %v2240
    %v2242 = vpop.xlane.xlu0 %2241
    %v2243 = vmul.f32 %v2239, %v1002
    %v2244 = vmul.f32 %v2242, %v1002
    %v2245 = vsub.f32 %v2231, %v2243
    %v2246 = vsub.f32 %v2232, %v2244
    %v2247 = vmul.f32 %v2245, %v2245
    %v2248 = vmul.f32 %v2246, %v2246
    %v2249 = vsel %vm102, %v2247, 0.0
    %2250 = vadd.xlane.f32.xlu0 %v2249
    %v2251 = vpop.xlane.xlu0 %2250
    %v2252 = vsel %vm102, %v2248, 0.0
    %2253 = vadd.xlane.f32.xlu0 %v2252
    %v2254 = vpop.xlane.xlu0 %2253
    %v2255 = vmul.f32 %v2251, %v1002
    %v2256 = vmul.f32 %v2254, %v1002
    %v2257 = vadd.f32 %v2255, 1e-05
    %v2258 = vadd.f32 %v2256, 1e-05
    %v2259 = vrsqrt.pop %v2257
    %v2260 = vmul.f32 %v2259, %v2257
    %v2261 = vmul.f32 %v2260, %v2259
    %v2262 = vmul.f32 0.5, %v2261
    %v2263 = vsub.f32 1.5, %v2262
    %v2264 = vmul.f32 %v2259, %v2263
    %vm2265 = vweird.f32 %v2257
    %vm2266 = vweird.f32 %v2259
    %vm2267 = vmor %vm2265, %vm2266
    %v2268 = vsel %vm2267, %v2259, %v2264
    %v2269 = vrsqrt.pop %v2258
    %v2270 = vmul.f32 %v2269, %v2258
    %v2271 = vmul.f32 %v2270, %v2269
    %v2272 = vmul.f32 0.5, %v2271
    %v2273 = vsub.f32 1.5, %v2272
    %v2274 = vmul.f32 %v2269, %v2273
    %vm2275 = vweird.f32 %v2258
    %vm2276 = vweird.f32 %v2269
    %vm2277 = vmor %vm2275, %vm2276
    %v2278 = vsel %vm2277, %v2269, %v2274
    %v2279 = vmul.f32 %v2245, %v2268
    %v2280 = vmul.f32 %v2246, %v2278
    %v2282 = vperm.slane %v2234, 0
    %v2284 = vmul.f32 %v2279, %v2282
    %v2285 = vmul.f32 %v2280, %v2282
    %v2287 = vperm.slane %v2236, 0
    %v2289 = vadd.f32 %v2284, %v2287
    %v2290 = vadd.f32 %v2285, %v2287
    %v2291 = vld [vmem:[%s21] sm:$0xff]
    %v2292 = vld [vmem:[%s21 + $0x8] sm:$0xff]
    %v2293 = vld [vmem:[%s21 + $0x10] sm:$0xff]
    %v2294 = vld [vmem:[%s21 + $0x18] sm:$0xff]
    %v2295 = vld [vmem:[%s22] sm:$0x1]
    %v2297 = vperm.slane %v2295, 0
    %v2300 = vsel %vm102, %v2289, 0
    %v2303 = vsel %vm102, %v2290, 0
    %2305 = vmatpush.msra.mxu0 0.0
    %2306 = vmatpush.msra.mxu0 0.0
    %2307 = vmatpush.msra.mxu0 0.0
    %2308 = vmatpush.msra.mxu0 0.0
    %2309 = vmatpush.msra.mxu0 0.0
    %2310 = vmatpush.msra.mxu0 0.0
    %2311 = vmatpush.msra.mxu0 0.0
    %2312 = vmatpush.msra.mxu0 0.0
    %2313 = vmatpush.msra.mxu0 0.0
    %2314 = vmatpush.msra.mxu0 0.0
    %2315 = vmatpush.msra.mxu0 0.0
    %2316 = vmatpush.msra.mxu0 0.0
    %2317 = vmatpush.msra.mxu0 %v2294
    %2318 = vmatpush.msra.mxu0 %v2293
    %2319 = vmatpush.msra.mxu0 %v2292
    %2320 = vmatpush.msra.mxu0 %v2291
    %2321 = vmatmul.f32.gmra.mxu0 %v2300
    %v2322 = vpop.f32.mrf.mxu0
    %v2323 = vadd.f32 %v2297, %v2322
    %2324 = vmatmul.f32.gmra.mxu0 %v2303
    %v2325 = vpop.f32.mrf.mxu0
    %v2326 = vadd.f32 %v2297, %v2325
    %2327 = vdwg.mxu0
    %v2328 = vmax.f32 %v2323, 0.0
    %v2329 = vmax.f32 %v2326, 0.0
    %v2330 = vld [vmem:[%s23] sm:$0xff]
    %v2331 = vld [vmem:[%s23 + $0x8] sm:$0xff]
    %v2332 = vld [vmem:[%s23 + $0x10] sm:$0xff]
    %v2333 = vld [vmem:[%s23 + $0x18] sm:$0xff]
    %v2334 = vld [vmem:[%s24] sm:$0x1]
    %v2336 = vperm.slane %v2334, 0
    %v2339 = vsel %vm102, %v2328, 0
    %v2342 = vsel %vm102, %v2329, 0
    %2344 = vmatpush.msra.mxu0 0.0
    %2345 = vmatpush.msra.mxu0 0.0
    %2346 = vmatpush.msra.mxu0 0.0
    %2347 = vmatpush.msra.mxu0 0.0
    %2348 = vmatpush.msra.mxu0 0.0
    %2349 = vmatpush.msra.mxu0 0.0
    %2350 = vmatpush.msra.mxu0 0.0
    %2351 = vmatpush.msra.mxu0 0.0
    %2352 = vmatpush.msra.mxu0 0.0
    %2353 = vmatpush.msra.mxu0 0.0
    %2354 = vmatpush.msra.mxu0 0.0
    %2355 = vmatpush.msra.mxu0 0.0
    %2356 = vmatpush.msra.mxu0 %v2333
    %2357 = vmatpush.msra.mxu0 %v2332
    %2358 = vmatpush.msra.mxu0 %v2331
    %2359 = vmatpush.msra.mxu0 %v2330
    %2360 = vmatmul.f32.gmra.mxu0 %v2339
    %v2361 = vpop.f32.mrf.mxu0
    %v2362 = vadd.f32 %v2336, %v2361
    %2363 = vmatmul.f32.gmra.mxu0 %v2342
    %v2364 = vpop.f32.mrf.mxu0
    %v2365 = vadd.f32 %v2336, %v2364
    %2366 = vdwg.mxu0
    %v2367 = vld [vmem:[%s4] sm:$0x3]
    %v2369 = vsel %vm234, %v2367, 0
    %2371 = vmatpush.msra.mxu0 0.0
    %2372 = vmatpush.msra.mxu0 0.0
    %2373 = vmatpush.msra.mxu0 0.0
    %2374 = vmatpush.msra.mxu0 0.0
    %2375 = vmatpush.msra.mxu0 0.0
    %2376 = vmatpush.msra.mxu0 0.0
    %2377 = vmatpush.msra.mxu0 0.0
    %2378 = vmatpush.msra.mxu0 0.0
    %2379 = vmatpush.msra.mxu0 0.0
    %2380 = vmatpush.msra.mxu0 0.0
    %2381 = vmatpush.msra.mxu0 0.0
    %2382 = vmatpush.msra.mxu0 0.0
    %2383 = vmatpush.msra.mxu0 0.0
    %2384 = vmatpush.msra.mxu0 0.0
    %2385 = vmatpush.msra.mxu0 %v2329
    %2386 = vmatpush.msra.mxu0 %v2328
    %2387 = vmatmul.f32.gmra.mxu0 %v2369
    %v2388 = vpop.f32.mrf.mxu0
    %v2389 = vadd.f32 0.0, %v2388
    %2390 = vdwg.mxu0
    %vm2391 = vcmask 254976
    %2392 = vst.msk [vmem:[#allocation4] sm:$0x3] %vm2391, %v2389
    %v2393 = vld [vmem:[%s3] sm:$0x3]
    %v2395 = vsel %vm234, %v2393, 0
    %2397 = vmatpush.msra.mxu0 0.0
    %2398 = vmatpush.msra.mxu0 0.0
    %2399 = vmatpush.msra.mxu0 0.0
    %2400 = vmatpush.msra.mxu0 0.0
    %2401 = vmatpush.msra.mxu0 0.0
    %2402 = vmatpush.msra.mxu0 0.0
    %2403 = vmatpush.msra.mxu0 0.0
    %2404 = vmatpush.msra.mxu0 0.0
    %2405 = vmatpush.msra.mxu0 0.0
    %2406 = vmatpush.msra.mxu0 0.0
    %2407 = vmatpush.msra.mxu0 0.0
    %2408 = vmatpush.msra.mxu0 0.0
    %2409 = vmatpush.msra.mxu0 0.0
    %2410 = vmatpush.msra.mxu0 0.0
    %2411 = vmatpush.msra.mxu0 %v2365
    %2412 = vmatpush.msra.mxu0 %v2362
    %2413 = vmatmul.f32.gmra.mxu0 %v2395
    %v2414 = vpop.f32.mrf.mxu0
    %v2415 = vadd.f32 0.0, %v2414
    %2416 = vdwg.mxu0
    %vm2417 = vcmask 25600
    %2418 = vst.msk [vmem:[#allocation2] sm:$0x3] %vm2417, %v2415
    // Predicated region
    $region102: #{tpu_custom_call.1} parent=1 // pred_check
      _
    $region103: #{tpu_custom_call.1} parent=1 // pred_check_branch
      %2420 = sbr.rel (0) target = $region105
    $region104: #{tpu_custom_call.1} parent=1 // pred_region
      %2422 = vsyncadd [#allocation3], 0
      %s2424 = sshll.u32 [#allocation2], 4
      %s2425 = int_to_ptr.vmem [resolvable:$true] %s2424
      %s2426 = sshll.u32 %s25, 4
      %s2427 = int_to_ptr.hbm [resolvable:$true] %s2426
      %2429 = dma.vmem_to_hbm [thread:$0]  %s2425, 32, %s2427, [#allocation3]
    $region105: #{tpu_custom_call.1} parent=1 // pred_fallthru
      _
    // Predicated region
    $region106: #{tpu_custom_call.1} parent=1 // pred_check
      _
    $region107: #{tpu_custom_call.1} parent=1 // pred_check_branch
      %2431 = sbr.rel (0) target = $region109
    $region108: #{tpu_custom_call.1} parent=1 // pred_region
      %2433 = vsyncadd [#allocation5], 0
      %s2435 = sshll.u32 [#allocation4], 4
      %s2436 = int_to_ptr.vmem [resolvable:$true] %s2435
      %s2437 = sshll.u32 %s26, 4
      %s2438 = int_to_ptr.hbm [resolvable:$true] %s2437
      %2440 = dma.vmem_to_hbm [thread:$0]  %s2436, 32, %s2438, [#allocation5]
    $region109: #{tpu_custom_call.1} parent=1 // pred_fallthru
      _
    // Predicated region
    $region110: #{tpu_custom_call.1} parent=1 // pred_check
      _
    $region111: #{tpu_custom_call.1} parent=1 // pred_check_branch
      %2442 = sbr.rel (0) target = $region113
    $region112: #{tpu_custom_call.1} parent=1 // pred_region
      %2444 = dma.done [#allocation3], 32
    $region113: #{tpu_custom_call.1} parent=1 // pred_fallthru
      _
    // Predicated region
    $region114: #{tpu_custom_call.1} parent=1 // pred_check
      _
    $region115: #{tpu_custom_call.1} parent=1 // pred_check_branch
      %2446 = sbr.rel (0) target = $region117
    $region116: #{tpu_custom_call.1} parent=1 // pred_region
      %2448 = dma.done [#allocation5], 32
    $region117: #{tpu_custom_call.1} parent=1 // pred_fallthru
      _
    %2449 = vsyncpa [#allocation3], 1
    %2450 = vsyncpa [#allocation5], 1

</llo_original>
